<compile_context>
chip_gen: v5e
topology: v5e:2x2
jax: 0.10.0
libtpu: 0.0.40
codegen_flags: <defaults>
</compile_context>

<pallas_src>
import functools

import jax
import jax.numpy as jnp
from jax import lax
from jax.experimental import pallas as pl
from jax.experimental.pallas import tpu as pltpu


# ----------------------------------------------------------------------------
# Fused kernel
# ----------------------------------------------------------------------------
def _cnn_fused_kernel(x_ref,
                      k1_ref, b1_ref, k2_ref, b2_ref, k3_ref, b3_ref,
                      fc1w_ref, fc1b_ref, fc2w_ref, fc2b_ref,
                      o_ref,
                      a0, y1, a1, y2, a2, y3):
    bt = x_ref.shape[0]

    def set_padded(dst_ref, interior, hsz):
        # dst_ref: (bt, hsz+2, L) row-padded activation buffer (f32).
        lanes = dst_ref.shape[2]
        zrow = jnp.zeros((bt, 1, lanes), jnp.float32)
        dst_ref[:, 0:1, :] = zrow                       # top pad row
        dst_ref[:, hsz + 1:hsz + 2, :] = zrow           # bottom pad row
        dst_ref[:, 1:hsz + 1, :] = interior

    def conv_relu_colpool(src_ref, band_ref, bias_ref, ybuf_ref, hsz):
        # src_ref : (bt, hsz+2, W*Cin)  f32, row-padded, channels packed in lanes
        # band_ref: (3, W*Cin, W*Cout)  bf16 banded conv weights; output columns
        #           ordered [even spatial cols | odd spatial cols]
        # ybuf_ref: (bt*hsz, (W//2)*Cout) f32 <- column-pooled conv + bias + ReLU
        lanes_in = band_ref.shape[1]
        half = band_ref.shape[2] // 2
        acc = None
        for dy in range(3):                             # 3 big MXU matmuls
            lhs = src_ref[:, dy:dy + hsz, :].reshape(bt * hsz, lanes_in)
            contrib = jnp.dot(lhs.astype(jnp.bfloat16), band_ref[dy],
                              preferred_element_type=jnp.float32)
            acc = contrib if dy == 0 else acc + contrib  # register accumulation
        # column half of the 2x2 maxpool: even/odd columns are contiguous halves.
        colmax = jnp.maximum(acc[:, :half], acc[:, half:])
        ybuf_ref[...] = jnp.maximum(colmax + bias_ref[...], 0.0)   # single store

    def row_pool(ybuf_ref, m2):
        # row half of the 2x2 maxpool: stride-2 sublane reads + VPU max.
        return jnp.maximum(ybuf_ref[pl.ds(0, m2, 2), :],
                           ybuf_ref[pl.ds(1, m2, 2), :])

    # ---- layer 1: (32, 32, Cin) -> pooled (16, 16, C1) -----------------------
    set_padded(a0, x_ref[...], 32)
    conv_relu_colpool(a0, k1_ref, b1_ref, y1, 32)
    p1 = row_pool(y1, bt * 16)                          # (bt*16, 16*C1)

    # ---- layer 2: (16, 16, C1) -> pooled (8, 8, C2) --------------------------
    set_padded(a1, p1.reshape(bt, 16, p1.shape[1]), 16)
    conv_relu_colpool(a1, k2_ref, b2_ref, y2, 16)
    p2 = row_pool(y2, bt * 8)                           # (bt*8, 8*C2)

    # ---- layer 3: (8, 8, C2) -> conv + ReLU + column-pool into y3 ------------
    set_padded(a2, p2.reshape(bt, 8, p2.shape[1]), 8)
    conv_relu_colpool(a2, k3_ref, b3_ref, y3, 8)

    # ---- head: row-pool of layer 3 fused with fc1 (flatten permutation baked
    # into fc1's weights).  The extra ReLU after flatten is a no-op (inputs >= 0).
    h = None
    for r in range(4):                                  # r = h2 row of the 4x4 map
        blk = jnp.maximum(y3[pl.ds(2 * r, bt, 8), :],
                          y3[pl.ds(2 * r + 1, bt, 8), :])        # (bt, 4*C3)
        d = jnp.dot(blk.astype(jnp.bfloat16), fc1w_ref[r],
                    preferred_element_type=jnp.float32)
        h = d if r == 0 else h + d
    h = jnp.maximum(h + fc1b_ref[...], 0.0)
    logits = jnp.dot(h.astype(jnp.bfloat16), fc2w_ref[...],
                     preferred_element_type=jnp.float32) + fc2b_ref[...]
    o_ref[:, 0, :] = logits


# ----------------------------------------------------------------------------
# One-time parameter repacking (wrapper-side, plain JAX)
# ----------------------------------------------------------------------------
def _banded_conv_weights(w_hwio, w):
    """K_dy[wi*cin + ci, col(wo, co)] = w_hwio[dy, wi-wo+1, ci, co] for |wi-wo|<=1.

    Output columns are reordered [all even wo | all odd wo] so that the 2x2
    maxpool's column reduction is a contiguous half-lane max in the kernel.
    SAME-pad taps outside [0, w) multiply zeros and are simply dropped."""
    kh, kw, cin, cout = w_hwio.shape
    wi = jnp.arange(w)[:, None]
    wo = jnp.arange(w)[None, :]
    dx = wi - wo + 1
    valid = (dx >= 0) & (dx < kw)
    dxc = jnp.clip(dx, 0, kw - 1)
    col_order = jnp.concatenate([jnp.arange(0, w, 2), jnp.arange(1, w, 2)])
    bands = []
    for dy in range(kh):
        g = w_hwio[dy][dxc]                             # (wi, wo, cin, cout)
        g = jnp.where(valid[:, :, None, None], g, 0.0)
        g = g[:, col_order]                             # even cols first, then odd
        bands.append(jnp.transpose(g, (0, 2, 1, 3)).reshape(w * cin, w * cout))
    return jnp.stack(bands, axis=0).astype(jnp.bfloat16)   # (3, w*cin, w*cout)


def prepare_kernel_params(params):
    """Repack torch-layout parameters into the kernel layout (done once)."""
    w1, w2, w3 = params["w1"], params["w2"], params["w3"]   # HWIO conv weights
    cin = w1.shape[2]
    cin_p = ((cin + 3) // 4) * 4          # pad Cin so 32*Cin is a multiple of 128
    if cin_p != cin:
        w1 = jnp.pad(w1, ((0, 0), (0, 0), (0, cin_p - cin), (0, 0)))
    c1, c2, c3 = w1.shape[3], w2.shape[3], w3.shape[3]

    # torch flattens NCHW: feature index = c*16 + h2*4 + w2.  Pooled layer-3 rows
    # are (b, h2) and lanes are (w2*c3 + c); bake that permutation into fc1.
    h2g, w2g, cg = jnp.meshgrid(jnp.arange(4), jnp.arange(4), jnp.arange(c3),
                                indexing="ij")
    perm = (cg * 16 + h2g * 4 + w2g).reshape(-1)
    fc1w = params["fc1_w"][perm, :]
    fc1w = fc1w.reshape(4, 4 * c3, fc1w.shape[1]).astype(jnp.bfloat16)

    nclass = params["fc2_w"].shape[1]
    assert nclass <= 128
    fc2w = jnp.zeros((params["fc2_w"].shape[0], 128), jnp.float32)
    fc2w = fc2w.at[:, :nclass].set(params["fc2_w"]).astype(jnp.bfloat16)
    fc2b = jnp.zeros((1, 128), jnp.float32).at[0, :nclass].set(params["fc2_b"])

    return {
        "k1": _banded_conv_weights(w1, 32),
        "b1": jnp.tile(params["b1"], 16)[None, :].astype(jnp.float32),
        "k2": _banded_conv_weights(w2, 16),
        "b2": jnp.tile(params["b2"], 8)[None, :].astype(jnp.float32),
        "k3": _banded_conv_weights(w3, 8),
        "b3": jnp.tile(params["b3"], 4)[None, :].astype(jnp.float32),
        "fc1_w": fc1w, "fc1_b": params["fc1_b"][None, :].astype(jnp.float32),
        "fc2_w": fc2w, "fc2_b": fc2b,
    }


# ----------------------------------------------------------------------------
# Forward pass wrapper (one pallas_call for the whole network)
# ----------------------------------------------------------------------------
def _pick_batch_tile(n):
    # Large bt keeps the MXU M-dimension well fed and amortizes per-step cost;
    # keep >= 2 grid steps when possible so dual-TensorCore chips split the work.
    for bt in (64, 32, 16, 8, 4, 2):
        if n >= 2 * bt:
            return bt
    return 1


def _const_spec(arr):
    if arr.ndim == 3:
        return pl.BlockSpec(arr.shape, lambda i: (0, 0, 0))
    return pl.BlockSpec(arr.shape, lambda i: (0, 0))


def cnn_forward(kparams, x_nchw, *, num_classes):
    n, cin, hh, ww = x_nchw.shape
    assert (hh, ww) == (32, 32), "fc1 shape implies 32x32 spatial inputs"
    cin_p = kparams["k1"].shape[1] // 32
    c1 = kparams["k1"].shape[2] // 32
    c2 = kparams["k2"].shape[2] // 16
    c3 = kparams["k3"].shape[2] // 8

    bt = _pick_batch_tile(n)
    n_pad = ((n + bt - 1) // bt) * bt

    # NCHW -> NHWC with (W, C) packed into the lane dim; pad Cin with zero lanes.
    x = jnp.transpose(x_nchw, (0, 2, 3, 1))
    if cin_p != cin:
        x = jnp.pad(x, ((0, 0), (0, 0), (0, 0), (0, cin_p - cin)))
    x = x.reshape(n, 32, 32 * cin_p)
    if n_pad != n:
        x = jnp.pad(x, ((0, n_pad - n), (0, 0), (0, 0)))

    weight_names = ["k1", "b1", "k2", "b2", "k3", "b3",
                    "fc1_w", "fc1_b", "fc2_w", "fc2_b"]
    weights = [kparams[nm] for nm in weight_names]

    in_specs = [pl.BlockSpec((bt, 32, 32 * cin_p), lambda i: (i, 0, 0))]
    in_specs += [_const_spec(w) for w in weights]

    out = pl.pallas_call(
        _cnn_fused_kernel,
        out_shape=jax.ShapeDtypeStruct((n_pad, 1, 128), jnp.float32),
        grid=(n_pad // bt,),
        in_specs=in_specs,
        out_specs=pl.BlockSpec((bt, 1, 128), lambda i: (i, 0, 0)),
        scratch_shapes=[
            pltpu.VMEM((bt, 34, 32 * cin_p), jnp.float32),   # a0: padded input
            pltpu.VMEM((bt * 32, 16 * c1), jnp.float32),     # y1: conv1 col-pooled
            pltpu.VMEM((bt, 18, 16 * c1), jnp.float32),      # a1: padded pool1
            pltpu.VMEM((bt * 16, 8 * c2), jnp.float32),      # y2: conv2 col-pooled
            pltpu.VMEM((bt, 10, 8 * c2), jnp.float32),       # a2: padded pool2
            pltpu.VMEM((bt * 8, 4 * c3), jnp.float32),       # y3: conv3 col-pooled
        ],
        compiler_params=pltpu.CompilerParams(
            dimension_semantics=("parallel",),
            vmem_limit_bytes=32 * 1024 * 1024),
    )(x, *weights)

    return out[:n, 0, :num_classes]


# ----------------------------------------------------------------------------
# Pure-JAX reference (for correctness check)
# ----------------------------------------------------------------------------
def cnn_reference(params, x_nchw):
    def conv_relu(x, w, b):
        y = lax.conv_general_dilated(
            x, w, window_strides=(1, 1), padding="SAME",
            dimension_numbers=("NHWC", "HWIO", "NHWC"))
        return jnp.maximum(y + b[None, None, None, :], 0.0)

    def pool(x):
        n, h, w, c = x.shape
        return jnp.max(x.reshape(n, h // 2, 2, w // 2, 2, c), axis=(2, 4))

    x = jnp.transpose(x_nchw, (0, 2, 3, 1))
    x = pool(conv_relu(x, params["w1"], params["b1"]))
    x = pool(conv_relu(x, params["w2"], params["b2"]))
    x = pool(conv_relu(x, params["w3"], params["b3"]))
    x = jnp.transpose(x, (0, 3, 1, 2)).reshape(x.shape[0], -1)
    x = jnp.maximum(x, 0.0)
    h = jnp.maximum(x @ params["fc1_w"] + params["fc1_b"], 0.0)
    return h @ params["fc2_w"] + params["fc2_b"]


# ----------------------------------------------------------------------------
# Deterministic parameter init (shapes follow the torch module; synthetic values)
# ----------------------------------------------------------------------------
def init_params(key, input_channel, output_channel, num_classes):
    c1, c2, c3 = output_channel, output_channel * 2, output_channel * 4
    ks = jax.random.split(key, 10)

    def conv_w(k, cout, cin):
        w = jax.random.normal(k, (cout, cin, 3, 3), jnp.float32) / jnp.sqrt(cin * 9.0)
        return jnp.transpose(w, (2, 3, 1, 0))       # OIHW -> HWIO

    def lin_w(k, dout, din):
        w = jax.random.normal(k, (dout, din), jnp.float32) / jnp.sqrt(float(din))
        return jnp.transpose(w)                     # (out, in) -> (in, out)

    return {
        "w1": conv_w(ks[0], c1, input_channel),
        "b1": 0.1 * jax.random.normal(ks[1], (c1,), jnp.float32),
        "w2": conv_w(ks[2], c2, c1),
        "b2": 0.1 * jax.random.normal(ks[3], (c2,), jnp.float32),
        "w3": conv_w(ks[4], c3, c2),
        "b3": 0.1 * jax.random.normal(ks[5], (c3,), jnp.float32),
        "fc1_w": lin_w(ks[6], 512, c3 * 4 * 4),
        "fc1_b": 0.1 * jax.random.normal(ks[7], (512,), jnp.float32),
        "fc2_w": lin_w(ks[8], num_classes, 512),
        "fc2_b": 0.1 * jax.random.normal(ks[9], (num_classes,), jnp.float32),
    }


if __name__ == "__main__":
    # fc1 expects output_channel*4*4*4 features => spatial size must be 32
    # (32 -> 16 -> 8 -> 4 after three 2x2 pools), as with CIFAR-10.
    input_channel, output_channel, num_classes = 3, 8, 10
    batch = 2

    key = jax.random.PRNGKey(0)
    kx, kp = jax.random.split(key)
    params = init_params(kp, input_channel, output_channel, num_classes)
    x = jax.random.normal(kx, (batch, input_channel, 32, 32), jnp.float32)

    kparams = prepare_kernel_params(params)          # one-time repack
    fwd = jax.jit(functools.partial(cnn_forward, num_classes=num_classes))
    out = jax.block_until_ready(fwd(kparams, x))
    assert out.shape == (batch, num_classes)

    ref = cnn_reference(params, x)
    # Tolerance accounts for bf16 MXU operands (f32 accumulation) in the kernel.
    if not jnp.allclose(out, ref, atol=5e-2, rtol=5e-2):
        raise AssertionError(
            f"Pallas output mismatch vs reference, max abs err = "
            f"{float(jnp.max(jnp.abs(out - ref)))}")

    print("KERNEL_OK")
</pallas_src>

<mosaic_0001>
module attributes {stable_mosaic.version = 11 : i64} {
  func.func @_cnn_fused_kernel(%arg0: i32, %arg1: memref<1x32x128xf32, #tpu.memory_space<vmem>>, %arg2: memref<3x128x256xbf16, #tpu.memory_space<vmem>>, %arg3: memref<1x128xf32, #tpu.memory_space<vmem>>, %arg4: memref<3x128x256xbf16, #tpu.memory_space<vmem>>, %arg5: memref<1x128xf32, #tpu.memory_space<vmem>>, %arg6: memref<3x128x256xbf16, #tpu.memory_space<vmem>>, %arg7: memref<1x128xf32, #tpu.memory_space<vmem>>, %arg8: memref<4x128x512xbf16, #tpu.memory_space<vmem>>, %arg9: memref<1x512xf32, #tpu.memory_space<vmem>>, %arg10: memref<512x128xbf16, #tpu.memory_space<vmem>>, %arg11: memref<1x128xf32, #tpu.memory_space<vmem>>, %arg12: memref<1x1x128xf32, #tpu.memory_space<vmem>>, %arg13: memref<1x34x128xf32, #tpu.memory_space<vmem>>, %arg14: memref<32x128xf32, #tpu.memory_space<vmem>>, %arg15: memref<1x18x128xf32, #tpu.memory_space<vmem>>, %arg16: memref<16x128xf32, #tpu.memory_space<vmem>>, %arg17: memref<1x10x128xf32, #tpu.memory_space<vmem>>, %arg18: memref<8x128xf32, #tpu.memory_space<vmem>>) attributes {dimension_semantics = [#tpu.dimension_semantics<parallel>], iteration_bounds = array<i64: 2>, scalar_prefetch = 0 : i64, scratch_operands = 6 : i64, tpu.core_type = #tpu.core_type<tc>, window_params = [{transform_indices = @transform_0, window_bounds = array<i64: 1, 32, 128>}, {pipeline_mode = #tpu.pipeline_mode<synchronous>, transform_indices = @transform_1, window_bounds = array<i64: 3, 128, 256>}, {pipeline_mode = #tpu.pipeline_mode<synchronous>, transform_indices = @transform_2, window_bounds = array<i64: 1, 128>}, {pipeline_mode = #tpu.pipeline_mode<synchronous>, transform_indices = @transform_3, window_bounds = array<i64: 3, 128, 256>}, {pipeline_mode = #tpu.pipeline_mode<synchronous>, transform_indices = @transform_4, window_bounds = array<i64: 1, 128>}, {pipeline_mode = #tpu.pipeline_mode<synchronous>, transform_indices = @transform_5, window_bounds = array<i64: 3, 128, 256>}, {pipeline_mode = #tpu.pipeline_mode<synchronous>, transform_indices = @transform_6, window_bounds = array<i64: 1, 128>}, {pipeline_mode = #tpu.pipeline_mode<synchronous>, transform_indices = @transform_7, window_bounds = array<i64: 4, 128, 512>}, {pipeline_mode = #tpu.pipeline_mode<synchronous>, transform_indices = @transform_8, window_bounds = array<i64: 1, 512>}, {pipeline_mode = #tpu.pipeline_mode<synchronous>, transform_indices = @transform_9, window_bounds = array<i64: 512, 128>}, {pipeline_mode = #tpu.pipeline_mode<synchronous>, transform_indices = @transform_10, window_bounds = array<i64: 1, 128>}, {transform_indices = @transform_11, window_bounds = array<i64: 1, 1, 128>}]} {
    %c0 = arith.constant 0 : index
    %c0_0 = arith.constant 0 : index
    %c0_1 = arith.constant 0 : index
    %0 = vector.load %arg1[%c0, %c0_0, %c0_1] : memref<1x32x128xf32, #tpu.memory_space<vmem>>, vector<1x32x128xf32>
    %cst = arith.constant 0.000000e+00 : f32
    %1 = vector.broadcast %cst : f32 to vector<1x1x128xf32>
    %c0_2 = arith.constant 0 : index
    %c0_3 = arith.constant 0 : index
    %c0_4 = arith.constant 0 : index
    %2 = vector.load %arg13[%c0_2, %c0_3, %c0_4] : memref<1x34x128xf32, #tpu.memory_space<vmem>>, vector<1x1x128xf32>
    tpu.vector_store %arg13[%c0_2, %c0_3, %c0_4], %1 {strides = array<i32>} : memref<1x34x128xf32, #tpu.memory_space<vmem>>, vector<1x1x128xf32>,
    %c0_5 = arith.constant 0 : index
    %c33 = arith.constant 33 : index
    %c0_6 = arith.constant 0 : index
    %3 = vector.load %arg13[%c0_5, %c33, %c0_6] : memref<1x34x128xf32, #tpu.memory_space<vmem>>, vector<1x1x128xf32>
    tpu.vector_store %arg13[%c0_5, %c33, %c0_6], %1 {strides = array<i32>} : memref<1x34x128xf32, #tpu.memory_space<vmem>>, vector<1x1x128xf32>,
    %c0_7 = arith.constant 0 : index
    %c1 = arith.constant 1 : index
    %c0_8 = arith.constant 0 : index
    %4 = vector.load %arg13[%c0_7, %c1, %c0_8] : memref<1x34x128xf32, #tpu.memory_space<vmem>>, vector<1x32x128xf32>
    tpu.vector_store %arg13[%c0_7, %c1, %c0_8], %0 {strides = array<i32>} : memref<1x34x128xf32, #tpu.memory_space<vmem>>, vector<1x32x128xf32>,
    %c0_9 = arith.constant 0 : index
    %c0_10 = arith.constant 0 : index
    %c0_11 = arith.constant 0 : index
    %5 = vector.load %arg13[%c0_9, %c0_10, %c0_11] : memref<1x34x128xf32, #tpu.memory_space<vmem>>, vector<1x32x128xf32>
    %6 = vector.shape_cast %5 : vector<1x32x128xf32> to vector<32x128xf32>
    %7 = arith.truncf %6 : vector<32x128xf32> to vector<32x128xbf16>
    %c0_12 = arith.constant 0 : index
    %c0_13 = arith.constant 0 : index
    %c0_14 = arith.constant 0 : index
    %8 = vector.load %arg2[%c0_12, %c0_13, %c0_14] : memref<3x128x256xbf16, #tpu.memory_space<vmem>>, vector<1x128x256xbf16>
    %9 = vector.shape_cast %8 : vector<1x128x256xbf16> to vector<128x256xbf16>
    %cst_15 = arith.constant dense<0.000000e+00> : vector<32x256xf32>
    %10 = tpu.matmul %7, %9, %cst_15 {dimension_numbers = #tpu.dot_dimension_numbers<[1], [0], [0], [1], [0, 0, 1, 1], [], []>} : vector<32x128xbf16>, vector<128x256xbf16>, vector<32x256xf32> -> vector<32x256xf32>
    %c0_16 = arith.constant 0 : index
    %c1_17 = arith.constant 1 : index
    %c0_18 = arith.constant 0 : index
    %11 = vector.load %arg13[%c0_16, %c1_17, %c0_18] : memref<1x34x128xf32, #tpu.memory_space<vmem>>, vector<1x32x128xf32>
    %12 = vector.shape_cast %11 : vector<1x32x128xf32> to vector<32x128xf32>
    %13 = arith.truncf %12 : vector<32x128xf32> to vector<32x128xbf16>
    %c1_19 = arith.constant 1 : index
    %c0_20 = arith.constant 0 : index
    %c0_21 = arith.constant 0 : index
    %14 = vector.load %arg2[%c1_19, %c0_20, %c0_21] : memref<3x128x256xbf16, #tpu.memory_space<vmem>>, vector<1x128x256xbf16>
    %15 = vector.shape_cast %14 : vector<1x128x256xbf16> to vector<128x256xbf16>
    %cst_22 = arith.constant dense<0.000000e+00> : vector<32x256xf32>
    %16 = tpu.matmul %13, %15, %cst_22 {dimension_numbers = #tpu.dot_dimension_numbers<[1], [0], [0], [1], [0, 0, 1, 1], [], []>} : vector<32x128xbf16>, vector<128x256xbf16>, vector<32x256xf32> -> vector<32x256xf32>
    %17 = arith.addf %10, %16 : vector<32x256xf32>
    %c0_23 = arith.constant 0 : index
    %c2 = arith.constant 2 : index
    %c0_24 = arith.constant 0 : index
    %18 = vector.load %arg13[%c0_23, %c2, %c0_24] : memref<1x34x128xf32, #tpu.memory_space<vmem>>, vector<1x32x128xf32>
    %19 = vector.shape_cast %18 : vector<1x32x128xf32> to vector<32x128xf32>
    %20 = arith.truncf %19 : vector<32x128xf32> to vector<32x128xbf16>
    %c2_25 = arith.constant 2 : index
    %c0_26 = arith.constant 0 : index
    %c0_27 = arith.constant 0 : index
    %21 = vector.load %arg2[%c2_25, %c0_26, %c0_27] : memref<3x128x256xbf16, #tpu.memory_space<vmem>>, vector<1x128x256xbf16>
    %22 = vector.shape_cast %21 : vector<1x128x256xbf16> to vector<128x256xbf16>
    %cst_28 = arith.constant dense<0.000000e+00> : vector<32x256xf32>
    %23 = tpu.matmul %20, %22, %cst_28 {dimension_numbers = #tpu.dot_dimension_numbers<[1], [0], [0], [1], [0, 0, 1, 1], [], []>} : vector<32x128xbf16>, vector<128x256xbf16>, vector<32x256xf32> -> vector<32x256xf32>
    %24 = arith.addf %17, %23 : vector<32x256xf32>
    %25 = vector.extract_strided_slice %24 {offsets = [0, 0], sizes = [32, 128], strides = [1, 1]} : vector<32x256xf32> to vector<32x128xf32>
    %26 = vector.extract_strided_slice %24 {offsets = [0, 128], sizes = [32, 128], strides = [1, 1]} : vector<32x256xf32> to vector<32x128xf32>
    %27 = arith.maximumf %25, %26 : vector<32x128xf32>
    %c0_29 = arith.constant 0 : index
    %c0_30 = arith.constant 0 : index
    %28 = vector.load %arg3[%c0_29, %c0_30] : memref<1x128xf32, #tpu.memory_space<vmem>>, vector<1x128xf32>
    %29 = vector.broadcast %28 : vector<1x128xf32> to vector<32x128xf32>
    %30 = arith.addf %27, %29 : vector<32x128xf32>
    %cst_31 = arith.constant 0.000000e+00 : f32
    %31 = vector.broadcast %cst_31 : f32 to vector<32x128xf32>
    %32 = arith.maximumf %30, %31 : vector<32x128xf32>
    %c0_32 = arith.constant 0 : index
    %c0_33 = arith.constant 0 : index
    %33 = vector.load %arg14[%c0_32, %c0_33] : memref<32x128xf32, #tpu.memory_space<vmem>>, vector<32x128xf32>
    tpu.vector_store %arg14[%c0_32, %c0_33], %32 {strides = array<i32>} : memref<32x128xf32, #tpu.memory_space<vmem>>, vector<32x128xf32>,
    %c0_34 = arith.constant 0 : index
    %c0_35 = arith.constant 0 : index
    %34 = tpu.strided_load %arg14[%c0_34, %c0_35] {strides = array<i32: 2, 1>} : memref<32x128xf32, #tpu.memory_space<vmem>>, vector<16x128xf32>
    %c1_36 = arith.constant 1 : index
    %c0_37 = arith.constant 0 : index
    %35 = tpu.strided_load %arg14[%c1_36, %c0_37] {strides = array<i32: 2, 1>} : memref<32x128xf32, #tpu.memory_space<vmem>>, vector<16x128xf32>
    %36 = arith.maximumf %34, %35 : vector<16x128xf32>
    %37 = vector.shape_cast %36 : vector<16x128xf32> to vector<1x16x128xf32>
    %cst_38 = arith.constant 0.000000e+00 : f32
    %38 = vector.broadcast %cst_38 : f32 to vector<1x1x128xf32>
    %c0_39 = arith.constant 0 : index
    %c0_40 = arith.constant 0 : index
    %c0_41 = arith.constant 0 : index
    %39 = vector.load %arg15[%c0_39, %c0_40, %c0_41] : memref<1x18x128xf32, #tpu.memory_space<vmem>>, vector<1x1x128xf32>
    tpu.vector_store %arg15[%c0_39, %c0_40, %c0_41], %38 {strides = array<i32>} : memref<1x18x128xf32, #tpu.memory_space<vmem>>, vector<1x1x128xf32>,
    %c0_42 = arith.constant 0 : index
    %c17 = arith.constant 17 : index
    %c0_43 = arith.constant 0 : index
    %40 = vector.load %arg15[%c0_42, %c17, %c0_43] : memref<1x18x128xf32, #tpu.memory_space<vmem>>, vector<1x1x128xf32>
    tpu.vector_store %arg15[%c0_42, %c17, %c0_43], %38 {strides = array<i32>} : memref<1x18x128xf32, #tpu.memory_space<vmem>>, vector<1x1x128xf32>,
    %c0_44 = arith.constant 0 : index
    %c1_45 = arith.constant 1 : index
    %c0_46 = arith.constant 0 : index
    %41 = vector.load %arg15[%c0_44, %c1_45, %c0_46] : memref<1x18x128xf32, #tpu.memory_space<vmem>>, vector<1x16x128xf32>
    tpu.vector_store %arg15[%c0_44, %c1_45, %c0_46], %37 {strides = array<i32>} : memref<1x18x128xf32, #tpu.memory_space<vmem>>, vector<1x16x128xf32>,
    %c0_47 = arith.constant 0 : index
    %c0_48 = arith.constant 0 : index
    %c0_49 = arith.constant 0 : index
    %42 = vector.load %arg15[%c0_47, %c0_48, %c0_49] : memref<1x18x128xf32, #tpu.memory_space<vmem>>, vector<1x16x128xf32>
    %43 = vector.shape_cast %42 : vector<1x16x128xf32> to vector<16x128xf32>
    %44 = arith.truncf %43 : vector<16x128xf32> to vector<16x128xbf16>
    %c0_50 = arith.constant 0 : index
    %c0_51 = arith.constant 0 : index
    %c0_52 = arith.constant 0 : index
    %45 = vector.load %arg4[%c0_50, %c0_51, %c0_52] : memref<3x128x256xbf16, #tpu.memory_space<vmem>>, vector<1x128x256xbf16>
    %46 = vector.shape_cast %45 : vector<1x128x256xbf16> to vector<128x256xbf16>
    %cst_53 = arith.constant dense<0.000000e+00> : vector<16x256xf32>
    %47 = tpu.matmul %44, %46, %cst_53 {dimension_numbers = #tpu.dot_dimension_numbers<[1], [0], [0], [1], [0, 0, 1, 1], [], []>} : vector<16x128xbf16>, vector<128x256xbf16>, vector<16x256xf32> -> vector<16x256xf32>
    %c0_54 = arith.constant 0 : index
    %c1_55 = arith.constant 1 : index
    %c0_56 = arith.constant 0 : index
    %48 = vector.load %arg15[%c0_54, %c1_55, %c0_56] : memref<1x18x128xf32, #tpu.memory_space<vmem>>, vector<1x16x128xf32>
    %49 = vector.shape_cast %48 : vector<1x16x128xf32> to vector<16x128xf32>
    %50 = arith.truncf %49 : vector<16x128xf32> to vector<16x128xbf16>
    %c1_57 = arith.constant 1 : index
    %c0_58 = arith.constant 0 : index
    %c0_59 = arith.constant 0 : index
    %51 = vector.load %arg4[%c1_57, %c0_58, %c0_59] : memref<3x128x256xbf16, #tpu.memory_space<vmem>>, vector<1x128x256xbf16>
    %52 = vector.shape_cast %51 : vector<1x128x256xbf16> to vector<128x256xbf16>
    %cst_60 = arith.constant dense<0.000000e+00> : vector<16x256xf32>
    %53 = tpu.matmul %50, %52, %cst_60 {dimension_numbers = #tpu.dot_dimension_numbers<[1], [0], [0], [1], [0, 0, 1, 1], [], []>} : vector<16x128xbf16>, vector<128x256xbf16>, vector<16x256xf32> -> vector<16x256xf32>
    %54 = arith.addf %47, %53 : vector<16x256xf32>
    %c0_61 = arith.constant 0 : index
    %c2_62 = arith.constant 2 : index
    %c0_63 = arith.constant 0 : index
    %55 = vector.load %arg15[%c0_61, %c2_62, %c0_63] : memref<1x18x128xf32, #tpu.memory_space<vmem>>, vector<1x16x128xf32>
    %56 = vector.shape_cast %55 : vector<1x16x128xf32> to vector<16x128xf32>
    %57 = arith.truncf %56 : vector<16x128xf32> to vector<16x128xbf16>
    %c2_64 = arith.constant 2 : index
    %c0_65 = arith.constant 0 : index
    %c0_66 = arith.constant 0 : index
    %58 = vector.load %arg4[%c2_64, %c0_65, %c0_66] : memref<3x128x256xbf16, #tpu.memory_space<vmem>>, vector<1x128x256xbf16>
    %59 = vector.shape_cast %58 : vector<1x128x256xbf16> to vector<128x256xbf16>
    %cst_67 = arith.constant dense<0.000000e+00> : vector<16x256xf32>
    %60 = tpu.matmul %57, %59, %cst_67 {dimension_numbers = #tpu.dot_dimension_numbers<[1], [0], [0], [1], [0, 0, 1, 1], [], []>} : vector<16x128xbf16>, vector<128x256xbf16>, vector<16x256xf32> -> vector<16x256xf32>
    %61 = arith.addf %54, %60 : vector<16x256xf32>
    %62 = vector.extract_strided_slice %61 {offsets = [0, 0], sizes = [16, 128], strides = [1, 1]} : vector<16x256xf32> to vector<16x128xf32>
    %63 = vector.extract_strided_slice %61 {offsets = [0, 128], sizes = [16, 128], strides = [1, 1]} : vector<16x256xf32> to vector<16x128xf32>
    %64 = arith.maximumf %62, %63 : vector<16x128xf32>
    %c0_68 = arith.constant 0 : index
    %c0_69 = arith.constant 0 : index
    %65 = vector.load %arg5[%c0_68, %c0_69] : memref<1x128xf32, #tpu.memory_space<vmem>>, vector<1x128xf32>
    %66 = vector.broadcast %65 : vector<1x128xf32> to vector<16x128xf32>
    %67 = arith.addf %64, %66 : vector<16x128xf32>
    %cst_70 = arith.constant 0.000000e+00 : f32
    %68 = vector.broadcast %cst_70 : f32 to vector<16x128xf32>
    %69 = arith.maximumf %67, %68 : vector<16x128xf32>
    %c0_71 = arith.constant 0 : index
    %c0_72 = arith.constant 0 : index
    %70 = vector.load %arg16[%c0_71, %c0_72] : memref<16x128xf32, #tpu.memory_space<vmem>>, vector<16x128xf32>
    tpu.vector_store %arg16[%c0_71, %c0_72], %69 {strides = array<i32>} : memref<16x128xf32, #tpu.memory_space<vmem>>, vector<16x128xf32>,
    %c0_73 = arith.constant 0 : index
    %c0_74 = arith.constant 0 : index
    %71 = tpu.strided_load %arg16[%c0_73, %c0_74] {strides = array<i32: 2, 1>} : memref<16x128xf32, #tpu.memory_space<vmem>>, vector<8x128xf32>
    %c1_75 = arith.constant 1 : index
    %c0_76 = arith.constant 0 : index
    %72 = tpu.strided_load %arg16[%c1_75, %c0_76] {strides = array<i32: 2, 1>} : memref<16x128xf32, #tpu.memory_space<vmem>>, vector<8x128xf32>
    %73 = arith.maximumf %71, %72 : vector<8x128xf32>
    %74 = vector.shape_cast %73 : vector<8x128xf32> to vector<1x8x128xf32>
    %cst_77 = arith.constant 0.000000e+00 : f32
    %75 = vector.broadcast %cst_77 : f32 to vector<1x1x128xf32>
    %c0_78 = arith.constant 0 : index
    %c0_79 = arith.constant 0 : index
    %c0_80 = arith.constant 0 : index
    %76 = vector.load %arg17[%c0_78, %c0_79, %c0_80] : memref<1x10x128xf32, #tpu.memory_space<vmem>>, vector<1x1x128xf32>
    tpu.vector_store %arg17[%c0_78, %c0_79, %c0_80], %75 {strides = array<i32>} : memref<1x10x128xf32, #tpu.memory_space<vmem>>, vector<1x1x128xf32>,
    %c0_81 = arith.constant 0 : index
    %c9 = arith.constant 9 : index
    %c0_82 = arith.constant 0 : index
    %77 = vector.load %arg17[%c0_81, %c9, %c0_82] : memref<1x10x128xf32, #tpu.memory_space<vmem>>, vector<1x1x128xf32>
    tpu.vector_store %arg17[%c0_81, %c9, %c0_82], %75 {strides = array<i32>} : memref<1x10x128xf32, #tpu.memory_space<vmem>>, vector<1x1x128xf32>,
    %c0_83 = arith.constant 0 : index
    %c1_84 = arith.constant 1 : index
    %c0_85 = arith.constant 0 : index
    %78 = vector.load %arg17[%c0_83, %c1_84, %c0_85] : memref<1x10x128xf32, #tpu.memory_space<vmem>>, vector<1x8x128xf32>
    tpu.vector_store %arg17[%c0_83, %c1_84, %c0_85], %74 {strides = array<i32>} : memref<1x10x128xf32, #tpu.memory_space<vmem>>, vector<1x8x128xf32>,
    %c0_86 = arith.constant 0 : index
    %c0_87 = arith.constant 0 : index
    %c0_88 = arith.constant 0 : index
    %79 = vector.load %arg17[%c0_86, %c0_87, %c0_88] : memref<1x10x128xf32, #tpu.memory_space<vmem>>, vector<1x8x128xf32>
    %80 = vector.shape_cast %79 : vector<1x8x128xf32> to vector<8x128xf32>
    %81 = arith.truncf %80 : vector<8x128xf32> to vector<8x128xbf16>
    %c0_89 = arith.constant 0 : index
    %c0_90 = arith.constant 0 : index
    %c0_91 = arith.constant 0 : index
    %82 = vector.load %arg6[%c0_89, %c0_90, %c0_91] : memref<3x128x256xbf16, #tpu.memory_space<vmem>>, vector<1x128x256xbf16>
    %83 = vector.shape_cast %82 : vector<1x128x256xbf16> to vector<128x256xbf16>
    %cst_92 = arith.constant dense<0.000000e+00> : vector<8x256xf32>
    %84 = tpu.matmul %81, %83, %cst_92 {dimension_numbers = #tpu.dot_dimension_numbers<[1], [0], [0], [1], [0, 0, 1, 1], [], []>} : vector<8x128xbf16>, vector<128x256xbf16>, vector<8x256xf32> -> vector<8x256xf32>
    %c0_93 = arith.constant 0 : index
    %c1_94 = arith.constant 1 : index
    %c0_95 = arith.constant 0 : index
    %85 = vector.load %arg17[%c0_93, %c1_94, %c0_95] : memref<1x10x128xf32, #tpu.memory_space<vmem>>, vector<1x8x128xf32>
    %86 = vector.shape_cast %85 : vector<1x8x128xf32> to vector<8x128xf32>
    %87 = arith.truncf %86 : vector<8x128xf32> to vector<8x128xbf16>
    %c1_96 = arith.constant 1 : index
    %c0_97 = arith.constant 0 : index
    %c0_98 = arith.constant 0 : index
    %88 = vector.load %arg6[%c1_96, %c0_97, %c0_98] : memref<3x128x256xbf16, #tpu.memory_space<vmem>>, vector<1x128x256xbf16>
    %89 = vector.shape_cast %88 : vector<1x128x256xbf16> to vector<128x256xbf16>
    %cst_99 = arith.constant dense<0.000000e+00> : vector<8x256xf32>
    %90 = tpu.matmul %87, %89, %cst_99 {dimension_numbers = #tpu.dot_dimension_numbers<[1], [0], [0], [1], [0, 0, 1, 1], [], []>} : vector<8x128xbf16>, vector<128x256xbf16>, vector<8x256xf32> -> vector<8x256xf32>
    %91 = arith.addf %84, %90 : vector<8x256xf32>
    %c0_100 = arith.constant 0 : index
    %c2_101 = arith.constant 2 : index
    %c0_102 = arith.constant 0 : index
    %92 = vector.load %arg17[%c0_100, %c2_101, %c0_102] : memref<1x10x128xf32, #tpu.memory_space<vmem>>, vector<1x8x128xf32>
    %93 = vector.shape_cast %92 : vector<1x8x128xf32> to vector<8x128xf32>
    %94 = arith.truncf %93 : vector<8x128xf32> to vector<8x128xbf16>
    %c2_103 = arith.constant 2 : index
    %c0_104 = arith.constant 0 : index
    %c0_105 = arith.constant 0 : index
    %95 = vector.load %arg6[%c2_103, %c0_104, %c0_105] : memref<3x128x256xbf16, #tpu.memory_space<vmem>>, vector<1x128x256xbf16>
    %96 = vector.shape_cast %95 : vector<1x128x256xbf16> to vector<128x256xbf16>
    %cst_106 = arith.constant dense<0.000000e+00> : vector<8x256xf32>
    %97 = tpu.matmul %94, %96, %cst_106 {dimension_numbers = #tpu.dot_dimension_numbers<[1], [0], [0], [1], [0, 0, 1, 1], [], []>} : vector<8x128xbf16>, vector<128x256xbf16>, vector<8x256xf32> -> vector<8x256xf32>
    %98 = arith.addf %91, %97 : vector<8x256xf32>
    %99 = vector.extract_strided_slice %98 {offsets = [0, 0], sizes = [8, 128], strides = [1, 1]} : vector<8x256xf32> to vector<8x128xf32>
    %100 = vector.extract_strided_slice %98 {offsets = [0, 128], sizes = [8, 128], strides = [1, 1]} : vector<8x256xf32> to vector<8x128xf32>
    %101 = arith.maximumf %99, %100 : vector<8x128xf32>
    %c0_107 = arith.constant 0 : index
    %c0_108 = arith.constant 0 : index
    %102 = vector.load %arg7[%c0_107, %c0_108] : memref<1x128xf32, #tpu.memory_space<vmem>>, vector<1x128xf32>
    %103 = vector.broadcast %102 : vector<1x128xf32> to vector<8x128xf32>
    %104 = arith.addf %101, %103 : vector<8x128xf32>
    %cst_109 = arith.constant 0.000000e+00 : f32
    %105 = vector.broadcast %cst_109 : f32 to vector<8x128xf32>
    %106 = arith.maximumf %104, %105 : vector<8x128xf32>
    %c0_110 = arith.constant 0 : index
    %c0_111 = arith.constant 0 : index
    %107 = vector.load %arg18[%c0_110, %c0_111] : memref<8x128xf32, #tpu.memory_space<vmem>>, vector<8x128xf32>
    tpu.vector_store %arg18[%c0_110, %c0_111], %106 {strides = array<i32>} : memref<8x128xf32, #tpu.memory_space<vmem>>, vector<8x128xf32>,
    %c0_112 = arith.constant 0 : index
    %c0_113 = arith.constant 0 : index
    %108 = tpu.strided_load %arg18[%c0_112, %c0_113] {strides = array<i32: 8, 1>} : memref<8x128xf32, #tpu.memory_space<vmem>>, vector<1x128xf32>
    %c1_114 = arith.constant 1 : index
    %c0_115 = arith.constant 0 : index
    %109 = tpu.strided_load %arg18[%c1_114, %c0_115] {strides = array<i32: 8, 1>} : memref<8x128xf32, #tpu.memory_space<vmem>>, vector<1x128xf32>
    %110 = arith.maximumf %108, %109 : vector<1x128xf32>
    %111 = arith.truncf %110 : vector<1x128xf32> to vector<1x128xbf16>
    %c0_116 = arith.constant 0 : index
    %c0_117 = arith.constant 0 : index
    %c0_118 = arith.constant 0 : index
    %112 = vector.load %arg8[%c0_116, %c0_117, %c0_118] : memref<4x128x512xbf16, #tpu.memory_space<vmem>>, vector<1x128x512xbf16>
    %113 = vector.shape_cast %112 : vector<1x128x512xbf16> to vector<128x512xbf16>
    %cst_119 = arith.constant dense<0.000000e+00> : vector<1x512xf32>
    %114 = tpu.matmul %111, %113, %cst_119 {dimension_numbers = #tpu.dot_dimension_numbers<[1], [0], [0], [1], [0, 0, 1, 1], [], []>} : vector<1x128xbf16>, vector<128x512xbf16>, vector<1x512xf32> -> vector<1x512xf32>
    %c2_120 = arith.constant 2 : index
    %c0_121 = arith.constant 0 : index
    %115 = tpu.strided_load %arg18[%c2_120, %c0_121] {strides = array<i32: 8, 1>} : memref<8x128xf32, #tpu.memory_space<vmem>>, vector<1x128xf32>
    %c3 = arith.constant 3 : index
    %c0_122 = arith.constant 0 : index
    %116 = tpu.strided_load %arg18[%c3, %c0_122] {strides = array<i32: 8, 1>} : memref<8x128xf32, #tpu.memory_space<vmem>>, vector<1x128xf32>
    %117 = arith.maximumf %115, %116 : vector<1x128xf32>
    %118 = arith.truncf %117 : vector<1x128xf32> to vector<1x128xbf16>
    %c1_123 = arith.constant 1 : index
    %c0_124 = arith.constant 0 : index
    %c0_125 = arith.constant 0 : index
    %119 = vector.load %arg8[%c1_123, %c0_124, %c0_125] : memref<4x128x512xbf16, #tpu.memory_space<vmem>>, vector<1x128x512xbf16>
    %120 = vector.shape_cast %119 : vector<1x128x512xbf16> to vector<128x512xbf16>
    %cst_126 = arith.constant dense<0.000000e+00> : vector<1x512xf32>
    %121 = tpu.matmul %118, %120, %cst_126 {dimension_numbers = #tpu.dot_dimension_numbers<[1], [0], [0], [1], [0, 0, 1, 1], [], []>} : vector<1x128xbf16>, vector<128x512xbf16>, vector<1x512xf32> -> vector<1x512xf32>
    %122 = arith.addf %114, %121 : vector<1x512xf32>
    %c4 = arith.constant 4 : index
    %c0_127 = arith.constant 0 : index
    %123 = tpu.strided_load %arg18[%c4, %c0_127] {strides = array<i32: 8, 1>} : memref<8x128xf32, #tpu.memory_space<vmem>>, vector<1x128xf32>
    %c5 = arith.constant 5 : index
    %c0_128 = arith.constant 0 : index
    %124 = tpu.strided_load %arg18[%c5, %c0_128] {strides = array<i32: 8, 1>} : memref<8x128xf32, #tpu.memory_space<vmem>>, vector<1x128xf32>
    %125 = arith.maximumf %123, %124 : vector<1x128xf32>
    %126 = arith.truncf %125 : vector<1x128xf32> to vector<1x128xbf16>
    %c2_129 = arith.constant 2 : index
    %c0_130 = arith.constant 0 : index
    %c0_131 = arith.constant 0 : index
    %127 = vector.load %arg8[%c2_129, %c0_130, %c0_131] : memref<4x128x512xbf16, #tpu.memory_space<vmem>>, vector<1x128x512xbf16>
    %128 = vector.shape_cast %127 : vector<1x128x512xbf16> to vector<128x512xbf16>
    %cst_132 = arith.constant dense<0.000000e+00> : vector<1x512xf32>
    %129 = tpu.matmul %126, %128, %cst_132 {dimension_numbers = #tpu.dot_dimension_numbers<[1], [0], [0], [1], [0, 0, 1, 1], [], []>} : vector<1x128xbf16>, vector<128x512xbf16>, vector<1x512xf32> -> vector<1x512xf32>
    %130 = arith.addf %122, %129 : vector<1x512xf32>
    %c6 = arith.constant 6 : index
    %c0_133 = arith.constant 0 : index
    %131 = tpu.strided_load %arg18[%c6, %c0_133] {strides = array<i32: 8, 1>} : memref<8x128xf32, #tpu.memory_space<vmem>>, vector<1x128xf32>
    %c7 = arith.constant 7 : index
    %c0_134 = arith.constant 0 : index
    %132 = tpu.strided_load %arg18[%c7, %c0_134] {strides = array<i32: 8, 1>} : memref<8x128xf32, #tpu.memory_space<vmem>>, vector<1x128xf32>
    %133 = arith.maximumf %131, %132 : vector<1x128xf32>
    %134 = arith.truncf %133 : vector<1x128xf32> to vector<1x128xbf16>
    %c3_135 = arith.constant 3 : index
    %c0_136 = arith.constant 0 : index
    %c0_137 = arith.constant 0 : index
    %135 = vector.load %arg8[%c3_135, %c0_136, %c0_137] : memref<4x128x512xbf16, #tpu.memory_space<vmem>>, vector<1x128x512xbf16>
    %136 = vector.shape_cast %135 : vector<1x128x512xbf16> to vector<128x512xbf16>
    %cst_138 = arith.constant dense<0.000000e+00> : vector<1x512xf32>
    %137 = tpu.matmul %134, %136, %cst_138 {dimension_numbers = #tpu.dot_dimension_numbers<[1], [0], [0], [1], [0, 0, 1, 1], [], []>} : vector<1x128xbf16>, vector<128x512xbf16>, vector<1x512xf32> -> vector<1x512xf32>
    %138 = arith.addf %130, %137 : vector<1x512xf32>
    %c0_139 = arith.constant 0 : index
    %c0_140 = arith.constant 0 : index
    %139 = vector.load %arg9[%c0_139, %c0_140] : memref<1x512xf32, #tpu.memory_space<vmem>>, vector<1x512xf32>
    %140 = arith.addf %138, %139 : vector<1x512xf32>
    %cst_141 = arith.constant 0.000000e+00 : f32
    %141 = vector.broadcast %cst_141 : f32 to vector<1x512xf32>
    %142 = arith.maximumf %140, %141 : vector<1x512xf32>
    %143 = arith.truncf %142 : vector<1x512xf32> to vector<1x512xbf16>
    %c0_142 = arith.constant 0 : index
    %c0_143 = arith.constant 0 : index
    %144 = vector.load %arg10[%c0_142, %c0_143] : memref<512x128xbf16, #tpu.memory_space<vmem>>, vector<512x128xbf16>
    %cst_144 = arith.constant dense<0.000000e+00> : vector<1x128xf32>
    %145 = tpu.matmul %143, %144, %cst_144 {dimension_numbers = #tpu.dot_dimension_numbers<[1], [0], [0], [1], [0, 0, 1, 1], [], []>} : vector<1x512xbf16>, vector<512x128xbf16>, vector<1x128xf32> -> vector<1x128xf32>
    %c0_145 = arith.constant 0 : index
    %c0_146 = arith.constant 0 : index
    %146 = vector.load %arg11[%c0_145, %c0_146] : memref<1x128xf32, #tpu.memory_space<vmem>>, vector<1x128xf32>
    %147 = arith.addf %145, %146 : vector<1x128xf32>
    %c0_147 = arith.constant 0 : index
    %c0_148 = arith.constant 0 : index
    %c0_149 = arith.constant 0 : index
    %148 = vector.load %arg12[%c0_147, %c0_148, %c0_149] : memref<1x1x128xf32, #tpu.memory_space<vmem>>, vector<1x1x128xf32>
    %149 = vector.shape_cast %148 : vector<1x1x128xf32> to vector<1x128xf32>
    %150 = vector.shape_cast %147 : vector<1x128xf32> to vector<1x1x128xf32>
    tpu.vector_store %arg12[%c0_147, %c0_148, %c0_149], %150 {strides = array<i32>} : memref<1x1x128xf32, #tpu.memory_space<vmem>>, vector<1x1x128xf32>,
    return
  }
  func.func @transform_0(%arg0: i32) -> (i32, i32, i32) {
    %c0_i32 = arith.constant 0 : i32
    %c0_i32_0 = arith.constant 0 : i32
    %c0_i32_1 = arith.constant 0 : i32
    return %arg0, %c0_i32, %c0_i32_0 : i32, i32, i32
  }
  func.func @transform_1(%arg0: i32) -> (i32, i32, i32) {
    %c0_i32 = arith.constant 0 : i32
    %c0_i32_0 = arith.constant 0 : i32
    %c0_i32_1 = arith.constant 0 : i32
    %c0_i32_2 = arith.constant 0 : i32
    return %c0_i32, %c0_i32_0, %c0_i32_1 : i32, i32, i32
  }
  func.func @transform_2(%arg0: i32) -> (i32, i32) {
    %c0_i32 = arith.constant 0 : i32
    %c0_i32_0 = arith.constant 0 : i32
    %c0_i32_1 = arith.constant 0 : i32
    return %c0_i32, %c0_i32_0 : i32, i32
  }
  func.func @transform_3(%arg0: i32) -> (i32, i32, i32) {
    %c0_i32 = arith.constant 0 : i32
    %c0_i32_0 = arith.constant 0 : i32
    %c0_i32_1 = arith.constant 0 : i32
    %c0_i32_2 = arith.constant 0 : i32
    return %c0_i32, %c0_i32_0, %c0_i32_1 : i32, i32, i32
  }
  func.func @transform_4(%arg0: i32) -> (i32, i32) {
    %c0_i32 = arith.constant 0 : i32
    %c0_i32_0 = arith.constant 0 : i32
    %c0_i32_1 = arith.constant 0 : i32
    return %c0_i32, %c0_i32_0 : i32, i32
  }
  func.func @transform_5(%arg0: i32) -> (i32, i32, i32) {
    %c0_i32 = arith.constant 0 : i32
    %c0_i32_0 = arith.constant 0 : i32
    %c0_i32_1 = arith.constant 0 : i32
    %c0_i32_2 = arith.constant 0 : i32
    return %c0_i32, %c0_i32_0, %c0_i32_1 : i32, i32, i32
  }
  func.func @transform_6(%arg0: i32) -> (i32, i32) {
    %c0_i32 = arith.constant 0 : i32
    %c0_i32_0 = arith.constant 0 : i32
    %c0_i32_1 = arith.constant 0 : i32
    return %c0_i32, %c0_i32_0 : i32, i32
  }
  func.func @transform_7(%arg0: i32) -> (i32, i32, i32) {
    %c0_i32 = arith.constant 0 : i32
    %c0_i32_0 = arith.constant 0 : i32
    %c0_i32_1 = arith.constant 0 : i32
    %c0_i32_2 = arith.constant 0 : i32
    return %c0_i32, %c0_i32_0, %c0_i32_1 : i32, i32, i32
  }
  func.func @transform_8(%arg0: i32) -> (i32, i32) {
    %c0_i32 = arith.constant 0 : i32
    %c0_i32_0 = arith.constant 0 : i32
    %c0_i32_1 = arith.constant 0 : i32
    return %c0_i32, %c0_i32_0 : i32, i32
  }
  func.func @transform_9(%arg0: i32) -> (i32, i32) {
    %c0_i32 = arith.constant 0 : i32
    %c0_i32_0 = arith.constant 0 : i32
    %c0_i32_1 = arith.constant 0 : i32
    return %c0_i32, %c0_i32_0 : i32, i32
  }
  func.func @transform_10(%arg0: i32) -> (i32, i32) {
    %c0_i32 = arith.constant 0 : i32
    %c0_i32_0 = arith.constant 0 : i32
    %c0_i32_1 = arith.constant 0 : i32
    return %c0_i32, %c0_i32_0 : i32, i32
  }
  func.func @transform_11(%arg0: i32) -> (i32, i32, i32) {
    %c0_i32 = arith.constant 0 : i32
    %c0_i32_0 = arith.constant 0 : i32
    %c0_i32_1 = arith.constant 0 : i32
    return %arg0, %c0_i32, %c0_i32_0 : i32, i32, i32
  }
}

</mosaic_0001>

<llo_original>
// kernel: cnn_forward.1
$region0: #{cnn_forward.1}
  #allocation0 [shape = 'u32[]', space=smem, size = 0x4, offset = 0x4, fixed_abs, tag = 'smem constant byte address 0x4 - core index']
  #allocation1 [shape = 'u32[72,128]{1,0:T(1,128)}', space=vmem, size = 0x9000, scoped, tag = 'internal scratch']
  #allocation2 [shape = 'f32[1,34,128]{2,1,0:T(8,128)}', space=vmem, size = 0x5000, scoped, tag = 'scratch operand']
  #allocation3 [shape = 'f32[32,128]{1,0:T(8,128)}', space=vmem, size = 0x4000, scoped, tag = 'scratch operand']
  #allocation4 [shape = 'f32[1,18,128]{2,1,0:T(8,128)}', space=vmem, size = 0x3000, scoped, tag = 'scratch operand']
  #allocation5 [shape = 'f32[16,128]{1,0:T(8,128)}', space=vmem, size = 0x2000, scoped, tag = 'scratch operand']
  #allocation6 [shape = 'f32[1,10,128]{2,1,0:T(8,128)}', space=vmem, size = 0x2000, scoped, tag = 'scratch operand']
  #allocation7 [shape = 'f32[8,128]{1,0:T(8,128)}', space=vmem, size = 0x1000, scoped, tag = 'scratch operand']
  %s0 = inlined_call_operand.vmem [shape: f32[2,32,128], index: 0, kind: input, shape index: {}]
  %s1 = inlined_call_operand.hbm [shape: bf16[3,128,256], index: 1, kind: input, shape index: {}]
  %s2 = inlined_call_operand.vmem [shape: f32[1,128], index: 2, kind: input, shape index: {}]
  %s3 = inlined_call_operand.hbm [shape: bf16[3,128,256], index: 3, kind: input, shape index: {}]
  %s4 = inlined_call_operand.vmem [shape: f32[1,128], index: 4, kind: input, shape index: {}]
  %s5 = inlined_call_operand.hbm [shape: bf16[3,128,256], index: 5, kind: input, shape index: {}]
  %s6 = inlined_call_operand.hbm [shape: f32[1,128], index: 6, kind: input, shape index: {}]
  %s7 = inlined_call_operand.vmem [shape: bf16[4,128,512], index: 7, kind: input, shape index: {}]
  %s8 = inlined_call_operand.vmem [shape: f32[1,512], index: 8, kind: input, shape index: {}]
  %s9 = inlined_call_operand.vmem [shape: bf16[512,128], index: 9, kind: input, shape index: {}]
  %s10 = inlined_call_operand.hbm [shape: f32[1,128], index: 10, kind: input, shape index: {}]
  %s11 = inlined_call_operand.hbm [shape: f32[2,1,128], index: 11, kind: output, shape index: {}]
  %s12 = sld [smem:[#allocation0]]
  $region97: #{cnn_forward.1} parent=0
    _
  %s14 = ssub.s32 1, %s12
  %s15 = scalar_select 0, %s14, %s12
  $region1: #{cnn_forward.1} parent=0
    #allocation8 [shape = 'u8[196608]{0}', space=vmem, size = 0x30000, scoped, tag = 'input window, operand 1, single buffered']
    #allocation9 [shape = 's32[2]{0}', space=sflag, size = 0x8, scoped, tag = 'scoped memory for cnn_forward.1']
    #allocation10 [shape = 's32[2]{0}', space=sflag, size = 0x8, scoped, tag = 'scoped memory for cnn_forward.1']
    #allocation11 [shape = 'u8[196608]{0}', space=vmem, size = 0x30000, scoped, tag = 'input window, operand 3, single buffered']
    #allocation12 [shape = 's32[1]{0}', space=sflag, size = 0x4, scoped, tag = 'scoped memory for cnn_forward.1']
    #allocation13 [shape = 'u8[196608]{0}', space=vmem, size = 0x30000, scoped, tag = 'input window, operand 5, single buffered']
    #allocation14 [shape = 'u8[512]{0}', space=vmem, size = 0x400, scoped, tag = 'input window, operand 6, single buffered']
    #allocation15 [shape = 's32[1]{0}', space=sflag, size = 0x4, scoped, tag = 'scoped memory for cnn_forward.1']
    #allocation16 [shape = 'u8[512]{0}', space=vmem, size = 0x400, scoped, tag = 'input window, operand 10, single buffered']
    #allocation17 [shape = 'u8[1024]{0}', space=vmem, size = 0x400, scoped, tag = 'output window, operand 0']
    %16 = vsyncpa [#allocation9], 0
    %17 = vsyncpa [#allocation12], 0
    %18 = vsyncpa [#allocation15], 0
    %19 = vsyncpa [#allocation10], 0
    %s20 = scalar_lea.sflag [#allocation10], 1
    %21 = vsyncpa %s20, 0
    loop: start=0, step=1, limit=4
    $region2: #{cnn_forward.1} parent=1 // loop_pre_header
      _
    $region3: #{cnn_forward.1} parent=1 // loop_header
      %s23 = sphi 0, %s27
      %p24 = scmp.ge.s32.totalorder %s23, 4
      %s33 = sphi 0, %s35
      %s36 = sphi 0, %s33
      %s37 = sphi 0, %s36
      %s53 = sphi 0, %s37
      %s57 = sphi 0, %s57
      %s59 = sphi 0, %s57
      %s60 = sphi 0, %s59
      %s74 = sphi 0, %s60
      %s78 = sphi 0, %s78
      %s80 = sphi 0, %s78
      %s81 = sphi 0, %s80
      %s95 = sphi 0, %s81
      %s99 = sphi 0, %s99
      %s101 = sphi 0, %s99
      %s102 = sphi 0, %s101
      %s116 = sphi 0, %s102
      %s120 = sphi 0, %s120
      %s122 = sphi 0, %s120
      %s123 = sphi 0, %s122
      %s137 = sphi 0, %s123
      %s141 = sphi 0, %s141
      %s143 = sphi 0, %s141
      %s144 = sphi 0, %s143
      %s158 = sphi 0, %s144
      %s162 = sphi 0, %s162
      %s164 = sphi 0, %s162
      %s165 = sphi 0, %s164
      %s179 = sphi 0, %s165
      %s183 = sphi 0, %s183
      %s185 = sphi 0, %s183
      %s186 = sphi 0, %s185
      %s200 = sphi 0, %s186
      %s204 = sphi 0, %s204
      %s206 = sphi 0, %s204
      %s207 = sphi 0, %s206
      %s221 = sphi 0, %s207
      %s225 = sphi 0, %s225
      %s227 = sphi 0, %s225
      %s228 = sphi 0, %s227
      %s242 = sphi 0, %s228
      %s246 = sphi 0, %s246
      %s248 = sphi 0, %s246
      %s249 = sphi 0, %s248
      %s263 = sphi 0, %s249
      %s269 = sphi 0, %s271
      %s272 = sphi 0, %s269
      %s273 = sphi 0, %s272
      %s289 = sphi 0, %s273
    $region4: #{cnn_forward.1} parent=1 // loop_header_branch
      %26 = sbr.rel (%p24) target = $region8
    $region5: #{cnn_forward.1} parent=1 // loop_body
      %s28 = ssub.s32 %s23, 1
      %s29 = ssub.s32 %s23, 2
      %s30 = sadd.s32 %s23, 1
      %s31 = ssub.s32 %s23, %s30
      %p32 = scmp.eq.s32.totalorder %s31, 0
      %s34 = sadd.s32 %s33, 1
      %s35 = scalar_select %p32, %s33, %s34
      %p38 = pneg %p32
      %p39 = scmp.eq.s32.totalorder %s23, 1
      %p40 = por %p38, %p39
      %p41 = scmp.ne.s32.totalorder %s33, %s36
      %p42 = scmp.eq.s32.totalorder %s23, 0
      %p43 = por %p41, %p42
      %p44 = scmp.ne.s32.totalorder %s33, %s36
      %p45 = scmp.eq.s32.totalorder %s28, 1
      %p46 = por %p44, %p45
      %p47 = scmp.ne.s32.totalorder %s36, %s37
      %p48 = scmp.eq.s32.totalorder %s28, 0
      %p49 = por %p47, %p48
      %p50 = scmp.ne.s32.totalorder %s36, %s37
      %p51 = scmp.eq.s32.totalorder %s29, 1
      %p52 = por %p50, %p51
      %p54 = scmp.ne.s32.totalorder %s37, %s53
      %p55 = scmp.eq.s32.totalorder %s29, 0
      %p56 = por %p54, %p55
      %s58 = sadd.s32 %s57, 1
      %p61 = scmp.eq.s32.totalorder %s23, 1
      %p62 = scmp.ne.s32.totalorder %s57, %s59
      %p63 = scmp.eq.s32.totalorder %s23, 0
      %p64 = por %p62, %p63
      %p65 = scmp.ne.s32.totalorder %s57, %s59
      %p66 = scmp.eq.s32.totalorder %s28, 1
      %p67 = por %p65, %p66
      %p68 = scmp.ne.s32.totalorder %s59, %s60
      %p69 = scmp.eq.s32.totalorder %s28, 0
      %p70 = por %p68, %p69
      %p71 = scmp.ne.s32.totalorder %s59, %s60
      %p72 = scmp.eq.s32.totalorder %s29, 1
      %p73 = por %p71, %p72
      %p75 = scmp.ne.s32.totalorder %s60, %s74
      %p76 = scmp.eq.s32.totalorder %s29, 0
      %p77 = por %p75, %p76
      %s79 = sadd.s32 %s78, 1
      %p82 = scmp.eq.s32.totalorder %s23, 1
      %p83 = scmp.ne.s32.totalorder %s78, %s80
      %p84 = scmp.eq.s32.totalorder %s23, 0
      %p85 = por %p83, %p84
      %p86 = scmp.ne.s32.totalorder %s78, %s80
      %p87 = scmp.eq.s32.totalorder %s28, 1
      %p88 = por %p86, %p87
      %p89 = scmp.ne.s32.totalorder %s80, %s81
      %p90 = scmp.eq.s32.totalorder %s28, 0
      %p91 = por %p89, %p90
      %p92 = scmp.ne.s32.totalorder %s80, %s81
      %p93 = scmp.eq.s32.totalorder %s29, 1
      %p94 = por %p92, %p93
      %p96 = scmp.ne.s32.totalorder %s81, %s95
      %p97 = scmp.eq.s32.totalorder %s29, 0
      %p98 = por %p96, %p97
      %s100 = sadd.s32 %s99, 1
      %p103 = scmp.eq.s32.totalorder %s23, 1
      %p104 = scmp.ne.s32.totalorder %s99, %s101
      %p105 = scmp.eq.s32.totalorder %s23, 0
      %p106 = por %p104, %p105
      %p107 = scmp.ne.s32.totalorder %s99, %s101
      %p108 = scmp.eq.s32.totalorder %s28, 1
      %p109 = por %p107, %p108
      %p110 = scmp.ne.s32.totalorder %s101, %s102
      %p111 = scmp.eq.s32.totalorder %s28, 0
      %p112 = por %p110, %p111
      %p113 = scmp.ne.s32.totalorder %s101, %s102
      %p114 = scmp.eq.s32.totalorder %s29, 1
      %p115 = por %p113, %p114
      %p117 = scmp.ne.s32.totalorder %s102, %s116
      %p118 = scmp.eq.s32.totalorder %s29, 0
      %p119 = por %p117, %p118
      %s121 = sadd.s32 %s120, 1
      %p124 = scmp.eq.s32.totalorder %s23, 1
      %p125 = scmp.ne.s32.totalorder %s120, %s122
      %p126 = scmp.eq.s32.totalorder %s23, 0
      %p127 = por %p125, %p126
      %p128 = scmp.ne.s32.totalorder %s120, %s122
      %p129 = scmp.eq.s32.totalorder %s28, 1
      %p130 = por %p128, %p129
      %p131 = scmp.ne.s32.totalorder %s122, %s123
      %p132 = scmp.eq.s32.totalorder %s28, 0
      %p133 = por %p131, %p132
      %p134 = scmp.ne.s32.totalorder %s122, %s123
      %p135 = scmp.eq.s32.totalorder %s29, 1
      %p136 = por %p134, %p135
      %p138 = scmp.ne.s32.totalorder %s123, %s137
      %p139 = scmp.eq.s32.totalorder %s29, 0
      %p140 = por %p138, %p139
      %s142 = sadd.s32 %s141, 1
      %p145 = scmp.eq.s32.totalorder %s23, 1
      %p146 = scmp.ne.s32.totalorder %s141, %s143
      %p147 = scmp.eq.s32.totalorder %s23, 0
      %p148 = por %p146, %p147
      %p149 = scmp.ne.s32.totalorder %s141, %s143
      %p150 = scmp.eq.s32.totalorder %s28, 1
      %p151 = por %p149, %p150
      %p152 = scmp.ne.s32.totalorder %s143, %s144
      %p153 = scmp.eq.s32.totalorder %s28, 0
      %p154 = por %p152, %p153
      %p155 = scmp.ne.s32.totalorder %s143, %s144
      %p156 = scmp.eq.s32.totalorder %s29, 1
      %p157 = por %p155, %p156
      %p159 = scmp.ne.s32.totalorder %s144, %s158
      %p160 = scmp.eq.s32.totalorder %s29, 0
      %p161 = por %p159, %p160
      %s163 = sadd.s32 %s162, 1
      %p166 = scmp.eq.s32.totalorder %s23, 1
      %p167 = scmp.ne.s32.totalorder %s162, %s164
      %p168 = scmp.eq.s32.totalorder %s23, 0
      %p169 = por %p167, %p168
      %p170 = scmp.ne.s32.totalorder %s162, %s164
      %p171 = scmp.eq.s32.totalorder %s28, 1
      %p172 = por %p170, %p171
      %p173 = scmp.ne.s32.totalorder %s164, %s165
      %p174 = scmp.eq.s32.totalorder %s28, 0
      %p175 = por %p173, %p174
      %p176 = scmp.ne.s32.totalorder %s164, %s165
      %p177 = scmp.eq.s32.totalorder %s29, 1
      %p178 = por %p176, %p177
      %p180 = scmp.ne.s32.totalorder %s165, %s179
      %p181 = scmp.eq.s32.totalorder %s29, 0
      %p182 = por %p180, %p181
      %s184 = sadd.s32 %s183, 1
      %p187 = scmp.eq.s32.totalorder %s23, 1
      %p188 = scmp.ne.s32.totalorder %s183, %s185
      %p189 = scmp.eq.s32.totalorder %s23, 0
      %p190 = por %p188, %p189
      %p191 = scmp.ne.s32.totalorder %s183, %s185
      %p192 = scmp.eq.s32.totalorder %s28, 1
      %p193 = por %p191, %p192
      %p194 = scmp.ne.s32.totalorder %s185, %s186
      %p195 = scmp.eq.s32.totalorder %s28, 0
      %p196 = por %p194, %p195
      %p197 = scmp.ne.s32.totalorder %s185, %s186
      %p198 = scmp.eq.s32.totalorder %s29, 1
      %p199 = por %p197, %p198
      %p201 = scmp.ne.s32.totalorder %s186, %s200
      %p202 = scmp.eq.s32.totalorder %s29, 0
      %p203 = por %p201, %p202
      %s205 = sadd.s32 %s204, 1
      %p208 = scmp.eq.s32.totalorder %s23, 1
      %p209 = scmp.ne.s32.totalorder %s204, %s206
      %p210 = scmp.eq.s32.totalorder %s23, 0
      %p211 = por %p209, %p210
      %p212 = scmp.ne.s32.totalorder %s204, %s206
      %p213 = scmp.eq.s32.totalorder %s28, 1
      %p214 = por %p212, %p213
      %p215 = scmp.ne.s32.totalorder %s206, %s207
      %p216 = scmp.eq.s32.totalorder %s28, 0
      %p217 = por %p215, %p216
      %p218 = scmp.ne.s32.totalorder %s206, %s207
      %p219 = scmp.eq.s32.totalorder %s29, 1
      %p220 = por %p218, %p219
      %p222 = scmp.ne.s32.totalorder %s207, %s221
      %p223 = scmp.eq.s32.totalorder %s29, 0
      %p224 = por %p222, %p223
      %s226 = sadd.s32 %s225, 1
      %p229 = scmp.eq.s32.totalorder %s23, 1
      %p230 = scmp.ne.s32.totalorder %s225, %s227
      %p231 = scmp.eq.s32.totalorder %s23, 0
      %p232 = por %p230, %p231
      %p233 = scmp.ne.s32.totalorder %s225, %s227
      %p234 = scmp.eq.s32.totalorder %s28, 1
      %p235 = por %p233, %p234
      %p236 = scmp.ne.s32.totalorder %s227, %s228
      %p237 = scmp.eq.s32.totalorder %s28, 0
      %p238 = por %p236, %p237
      %p239 = scmp.ne.s32.totalorder %s227, %s228
      %p240 = scmp.eq.s32.totalorder %s29, 1
      %p241 = por %p239, %p240
      %p243 = scmp.ne.s32.totalorder %s228, %s242
      %p244 = scmp.eq.s32.totalorder %s29, 0
      %p245 = por %p243, %p244
      %s247 = sadd.s32 %s246, 1
      %p250 = scmp.eq.s32.totalorder %s23, 1
      %p251 = scmp.ne.s32.totalorder %s246, %s248
      %p252 = scmp.eq.s32.totalorder %s23, 0
      %p253 = por %p251, %p252
      %p254 = scmp.ne.s32.totalorder %s246, %s248
      %p255 = scmp.eq.s32.totalorder %s28, 1
      %p256 = por %p254, %p255
      %p257 = scmp.ne.s32.totalorder %s248, %s249
      %p258 = scmp.eq.s32.totalorder %s28, 0
      %p259 = por %p257, %p258
      %p260 = scmp.ne.s32.totalorder %s248, %s249
      %p261 = scmp.eq.s32.totalorder %s29, 1
      %p262 = por %p260, %p261
      %p264 = scmp.ne.s32.totalorder %s249, %s263
      %p265 = scmp.eq.s32.totalorder %s29, 0
      %p266 = por %p264, %p265
      %s267 = ssub.s32 %s23, %s30
      %p268 = scmp.eq.s32.totalorder %s267, 0
      %s270 = sadd.s32 %s269, 1
      %s271 = scalar_select %p268, %s269, %s270
      %p274 = pneg %p268
      %p275 = scmp.eq.s32.totalorder %s23, 1
      %p276 = por %p274, %p275
      %p277 = scmp.ne.s32.totalorder %s269, %s272
      %p278 = scmp.eq.s32.totalorder %s23, 0
      %p279 = por %p277, %p278
      %p280 = scmp.ne.s32.totalorder %s269, %s272
      %p281 = scmp.eq.s32.totalorder %s28, 1
      %p282 = por %p280, %p281
      %p283 = scmp.ne.s32.totalorder %s272, %s273
      %p284 = scmp.eq.s32.totalorder %s28, 0
      %p285 = por %p283, %p284
      %p286 = scmp.ne.s32.totalorder %s272, %s273
      %p287 = scmp.eq.s32.totalorder %s29, 1
      %p288 = por %p286, %p287
      %p290 = scmp.ne.s32.totalorder %s273, %s289
      %p291 = scmp.eq.s32.totalorder %s29, 0
      %p292 = por %p290, %p291
      %p293 = scmp.le.s32.totalorder 1, %s23
      %p294 = scmp.lt.s32.totalorder %s23, 3
      %p295 = pnand %p293, %p294
      %p296 = pneg %p295
      // Predicated region
      $region9: #{cnn_forward.1} parent=5 // pred_check
        _
      $region10: #{cnn_forward.1} parent=5 // pred_check_branch
        %298 = sbr.rel (%p295) target = $region12
      $region11: #{cnn_forward.1} parent=5 // pred_region
        %s299 = ssub.s32 %s23, 1
        // Predicated region
        $region13: #{cnn_forward.1} parent=11 // pred_check
          %p300 = pneg %p70
        $region14: #{cnn_forward.1} parent=11 // pred_check_branch
          %302 = sbr.rel (%p300) target = $region16
        $region15: #{cnn_forward.1} parent=11 // pred_region
          %304 = vsyncadd [#allocation9], 0
          %s305 = sshll.u32 %s1, 4
          %s306 = int_to_ptr.hbm [resolvable:$true] %s305
          %s307 = sshll.u32 [#allocation8], 4
          %s308 = int_to_ptr.vmem [resolvable:$true] %s307
          %313 = dma.hbm_to_vmem [thread:$0]  %s306, 6144, %s308, [#allocation9], 128, 128, 8
        $region16: #{cnn_forward.1} parent=11 // pred_fallthru
          _
        // Predicated region
        $region17: #{cnn_forward.1} parent=11 // pred_check
          %p314 = pneg %p91
        $region18: #{cnn_forward.1} parent=11 // pred_check_branch
          %316 = sbr.rel (%p314) target = $region20
        $region19: #{cnn_forward.1} parent=11 // pred_region
          _
        $region20: #{cnn_forward.1} parent=11 // pred_fallthru
          _
        // Predicated region
        $region21: #{cnn_forward.1} parent=11 // pred_check
          %p317 = pneg %p112
        $region22: #{cnn_forward.1} parent=11 // pred_check_branch
          %319 = sbr.rel (%p317) target = $region24
        $region23: #{cnn_forward.1} parent=11 // pred_region
          %321 = vsyncadd [#allocation12], 0
          %s322 = sshll.u32 %s3, 4
          %s323 = int_to_ptr.hbm [resolvable:$true] %s322
          %s324 = sshll.u32 [#allocation11], 4
          %s325 = int_to_ptr.vmem [resolvable:$true] %s324
          %330 = dma.hbm_to_vmem [thread:$0]  %s323, 6144, %s325, [#allocation12], 128, 128, 8
        $region24: #{cnn_forward.1} parent=11 // pred_fallthru
          _
        // Predicated region
        $region25: #{cnn_forward.1} parent=11 // pred_check
          %p331 = pneg %p133
        $region26: #{cnn_forward.1} parent=11 // pred_check_branch
          %333 = sbr.rel (%p331) target = $region28
        $region27: #{cnn_forward.1} parent=11 // pred_region
          _
        $region28: #{cnn_forward.1} parent=11 // pred_fallthru
          _
        // Predicated region
        $region29: #{cnn_forward.1} parent=11 // pred_check
          %p334 = pneg %p154
        $region30: #{cnn_forward.1} parent=11 // pred_check_branch
          %336 = sbr.rel (%p334) target = $region32
        $region31: #{cnn_forward.1} parent=11 // pred_region
          %338 = vsyncadd [#allocation12], 0
          %s339 = sshll.u32 %s5, 4
          %s340 = int_to_ptr.hbm [resolvable:$true] %s339
          %s341 = sshll.u32 [#allocation13], 4
          %s342 = int_to_ptr.vmem [resolvable:$true] %s341
          %347 = dma.hbm_to_vmem [thread:$0]  %s340, 6144, %s342, [#allocation12], 128, 128, 8
        $region32: #{cnn_forward.1} parent=11 // pred_fallthru
          _
        // Predicated region
        $region33: #{cnn_forward.1} parent=11 // pred_check
          %p348 = pneg %p175
        $region34: #{cnn_forward.1} parent=11 // pred_check_branch
          %350 = sbr.rel (%p348) target = $region36
        $region35: #{cnn_forward.1} parent=11 // pred_region
          %352 = vsyncadd [#allocation15], 0
          %s354 = sshll.u32 %s6, 4
          %s355 = int_to_ptr.hbm [resolvable:$true] %s354
          %s356 = sshll.u32 [#allocation14], 4
          %s357 = int_to_ptr.vmem [resolvable:$true] %s356
          %359 = dma.hbm_to_vmem [thread:$0]  %s355, 16, %s357, [#allocation15]
        $region36: #{cnn_forward.1} parent=11 // pred_fallthru
          _
        // Predicated region
        $region37: #{cnn_forward.1} parent=11 // pred_check
          %p360 = pneg %p196
        $region38: #{cnn_forward.1} parent=11 // pred_check_branch
          %362 = sbr.rel (%p360) target = $region40
        $region39: #{cnn_forward.1} parent=11 // pred_region
          _
        $region40: #{cnn_forward.1} parent=11 // pred_fallthru
          _
        // Predicated region
        $region41: #{cnn_forward.1} parent=11 // pred_check
          %p363 = pneg %p217
        $region42: #{cnn_forward.1} parent=11 // pred_check_branch
          %365 = sbr.rel (%p363) target = $region44
        $region43: #{cnn_forward.1} parent=11 // pred_region
          _
        $region44: #{cnn_forward.1} parent=11 // pred_fallthru
          _
        // Predicated region
        $region45: #{cnn_forward.1} parent=11 // pred_check
          %p366 = pneg %p238
        $region46: #{cnn_forward.1} parent=11 // pred_check_branch
          %368 = sbr.rel (%p366) target = $region48
        $region47: #{cnn_forward.1} parent=11 // pred_region
          _
        $region48: #{cnn_forward.1} parent=11 // pred_fallthru
          _
        // Predicated region
        $region49: #{cnn_forward.1} parent=11 // pred_check
          %p369 = pneg %p259
        $region50: #{cnn_forward.1} parent=11 // pred_check_branch
          %371 = sbr.rel (%p369) target = $region52
        $region51: #{cnn_forward.1} parent=11 // pred_region
          %373 = vsyncadd [#allocation15], 0
          %s375 = sshll.u32 %s10, 4
          %s376 = int_to_ptr.hbm [resolvable:$true] %s375
          %s377 = sshll.u32 [#allocation16], 4
          %s378 = int_to_ptr.vmem [resolvable:$true] %s377
          %380 = dma.hbm_to_vmem [thread:$0]  %s376, 16, %s378, [#allocation15]
        $region52: #{cnn_forward.1} parent=11 // pred_fallthru
          _
      $region12: #{cnn_forward.1} parent=5 // pred_fallthru
        _
      %p381 = scmp.lt.s32.totalorder %s23, 2
      // Predicated region
      $region53: #{cnn_forward.1} parent=5 // pred_check
        %p382 = pneg %p381
      $region54: #{cnn_forward.1} parent=5 // pred_check_branch
        %384 = sbr.rel (%p382) target = $region56
      $region55: #{cnn_forward.1} parent=5 // pred_region
        // Predicated region
        $region57: #{cnn_forward.1} parent=55 // pred_check
          %p385 = pneg %p43
        $region58: #{cnn_forward.1} parent=55 // pred_check_branch
          %387 = sbr.rel (%p385) target = $region60
        $region59: #{cnn_forward.1} parent=55 // pred_region
          %p388 = scmp.lt.s32.totalorder %s23, 1
          %s389 = scalar_select %p388, %s23, 1
          %s390 = smul.addr %s389, 4
          %s391 = smul.addr %s390, 8
          %s392 = scalar_lea.vmem %s0, %s391
        $region60: #{cnn_forward.1} parent=55 // pred_fallthru
          _
      $region56: #{cnn_forward.1} parent=5 // pred_fallthru
        _
      %p393 = scmp.le.s32.totalorder 1, %s23
      %p394 = scmp.lt.s32.totalorder %s23, 3
      %p395 = pnand %p393, %p394
      %p396 = pneg %p395
      // Predicated region
      $region61: #{cnn_forward.1} parent=5 // pred_check
        _
      $region62: #{cnn_forward.1} parent=5 // pred_check_branch
        %398 = sbr.rel (%p395) target = $region64
      $region63: #{cnn_forward.1} parent=5 // pred_region
        %s399 = ssub.s32 %s23, 1
        // Predicated region
        $region65: #{cnn_forward.1} parent=63 // pred_check
          %p400 = pneg %p70
        $region66: #{cnn_forward.1} parent=63 // pred_check_branch
          %402 = sbr.rel (%p400) target = $region68
        $region67: #{cnn_forward.1} parent=63 // pred_region
          %404 = dma.done [#allocation9], 6144
        $region68: #{cnn_forward.1} parent=63 // pred_fallthru
          _
        // Predicated region
        $region69: #{cnn_forward.1} parent=63 // pred_check
          %p405 = pneg %p112
        $region70: #{cnn_forward.1} parent=63 // pred_check_branch
          %407 = sbr.rel (%p405) target = $region72
        $region71: #{cnn_forward.1} parent=63 // pred_region
          %409 = dma.done [#allocation12], 6144
        $region72: #{cnn_forward.1} parent=63 // pred_fallthru
          _
        // Predicated region
        $region73: #{cnn_forward.1} parent=63 // pred_check
          %p410 = pneg %p154
        $region74: #{cnn_forward.1} parent=63 // pred_check_branch
          %412 = sbr.rel (%p410) target = $region76
        $region75: #{cnn_forward.1} parent=63 // pred_region
          %414 = dma.done [#allocation12], 6144
        $region76: #{cnn_forward.1} parent=63 // pred_fallthru
          _
        // Predicated region
        $region77: #{cnn_forward.1} parent=63 // pred_check
          %p415 = pneg %p175
        $region78: #{cnn_forward.1} parent=63 // pred_check_branch
          %417 = sbr.rel (%p415) target = $region80
        $region79: #{cnn_forward.1} parent=63 // pred_region
          %419 = dma.done [#allocation15], 16
        $region80: #{cnn_forward.1} parent=63 // pred_fallthru
          _
        // Predicated region
        $region81: #{cnn_forward.1} parent=63 // pred_check
          %p420 = pneg %p259
        $region82: #{cnn_forward.1} parent=63 // pred_check_branch
          %422 = sbr.rel (%p420) target = $region84
        $region83: #{cnn_forward.1} parent=63 // pred_region
          %424 = dma.done [#allocation15], 16
        $region84: #{cnn_forward.1} parent=63 // pred_fallthru
          _
        %p425 = scmp.lt.s32.totalorder %s28, 1
        %s426 = scalar_select %p425, %s28, 1
        %s427 = smul.addr %s426, 4
        %s428 = smul.addr %s427, 8
        %s429 = scalar_lea.vmem %s0, %s428
        %p430 = pneg %p49
        %p431 = pneg %p46
        %p432 = pneg %p70
        %p433 = pneg %p67
        %p434 = pneg %p91
        %p435 = pneg %p88
        %p436 = pneg %p112
        %p437 = pneg %p109
        %p438 = pneg %p133
        %p439 = pneg %p130
        %p440 = pneg %p154
        %p441 = pneg %p151
        %p442 = pneg %p175
        %p443 = pneg %p172
        %p444 = pneg %p196
        %p445 = pneg %p193
        %p446 = pneg %p217
        %p447 = pneg %p214
        %p448 = pneg %p238
        %p449 = pneg %p235
        %p450 = pneg %p259
        %p451 = pneg %p256
        %p452 = pneg %p285
        %p453 = pneg %p282
        %s454 = sand.u32 %s272, 1
        %s455 = scalar_lea.sflag [#allocation10], %s454
        %s456 = sand.u32 %s272, 1
        %s457 = scalar_lea.vmem [#allocation17], %s456
        %p458 = scmp.lt.s32.totalorder %s28, 1
        %s459 = scalar_select %p458, %s28, 1
        %s460 = smul.addr %s459, 4
        %s461 = smul.addr %s460, 8
        %s462 = scalar_lea.vmem %s0, %s461
        %v463 = vld [vmem:[%s462] sm:$0xff]
        %v464 = vld [vmem:[%s462 + $0x8] sm:$0xff]
        %v465 = vld [vmem:[%s462 + $0x10] sm:$0xff]
        %v466 = vld [vmem:[%s462 + $0x18] sm:$0xff]
        %467 = vst [vmem:[#allocation2] sm:$0x1] 0.0
        %468 = vst [vmem:[#allocation2 + $0x21] sm:$0x1] 0.0
        %469 = vst [vmem:[#allocation2 + $0x1] sm:$0xff] %v463
        %470 = vst [vmem:[#allocation2 + $0x9] sm:$0xff] %v464
        %471 = vst [vmem:[#allocation2 + $0x11] sm:$0xff] %v465
        %472 = vst [vmem:[#allocation2 + $0x19] sm:$0xff] %v466
        %v473 = vld [vmem:[#allocation2] sm:$0xff]
        %v474 = vld [vmem:[#allocation2 + $0x8] sm:$0xff]
        %v475 = vld [vmem:[#allocation2 + $0x10] sm:$0xff]
        %v476 = vld [vmem:[#allocation2 + $0x18] sm:$0xff]
        %v477 = vpack.c.bf16 %v474, %v473
        %v478 = vpack.c.bf16 %v476, %v475
        %v479 = vld [vmem:[#allocation8] sm:$0xff]
        %v480 = vld [vmem:[#allocation8 + $0x8] sm:$0xff]
        %v481 = vld [vmem:[#allocation8 + $0x10] sm:$0xff]
        %v482 = vld [vmem:[#allocation8 + $0x18] sm:$0xff]
        %v483 = vld [vmem:[#allocation8 + $0x20] sm:$0xff]
        %v484 = vld [vmem:[#allocation8 + $0x28] sm:$0xff]
        %v485 = vld [vmem:[#allocation8 + $0x30] sm:$0xff]
        %v486 = vld [vmem:[#allocation8 + $0x38] sm:$0xff]
        %v487 = vld [vmem:[#allocation8 + $0x40] sm:$0xff]
        %v488 = vld [vmem:[#allocation8 + $0x48] sm:$0xff]
        %v489 = vld [vmem:[#allocation8 + $0x50] sm:$0xff]
        %v490 = vld [vmem:[#allocation8 + $0x58] sm:$0xff]
        %v491 = vld [vmem:[#allocation8 + $0x60] sm:$0xff]
        %v492 = vld [vmem:[#allocation8 + $0x68] sm:$0xff]
        %v493 = vld [vmem:[#allocation8 + $0x70] sm:$0xff]
        %v494 = vld [vmem:[#allocation8 + $0x78] sm:$0xff]
        %v495 = vld [vmem:[#allocation2 + $0x1] sm:$0xff]
        %v496 = vld [vmem:[#allocation2 + $0x9] sm:$0xff]
        %v497 = vld [vmem:[#allocation2 + $0x11] sm:$0xff]
        %v498 = vld [vmem:[#allocation2 + $0x19] sm:$0xff]
        %v499 = vpack.c.bf16 %v496, %v495
        %v500 = vpack.c.bf16 %v498, %v497
        %s501 = scalar_lea.vmem [#allocation8], 128
        %v502 = vld [vmem:[%s501] sm:$0xff]
        %v503 = vld [vmem:[%s501 + $0x8] sm:$0xff]
        %v504 = vld [vmem:[%s501 + $0x10] sm:$0xff]
        %v505 = vld [vmem:[%s501 + $0x18] sm:$0xff]
        %v506 = vld [vmem:[%s501 + $0x20] sm:$0xff]
        %v507 = vld [vmem:[%s501 + $0x28] sm:$0xff]
        %v508 = vld [vmem:[%s501 + $0x30] sm:$0xff]
        %v509 = vld [vmem:[%s501 + $0x38] sm:$0xff]
        %v510 = vld [vmem:[%s501 + $0x40] sm:$0xff]
        %v511 = vld [vmem:[%s501 + $0x48] sm:$0xff]
        %v512 = vld [vmem:[%s501 + $0x50] sm:$0xff]
        %v513 = vld [vmem:[%s501 + $0x58] sm:$0xff]
        %v514 = vld [vmem:[%s501 + $0x60] sm:$0xff]
        %v515 = vld [vmem:[%s501 + $0x68] sm:$0xff]
        %v516 = vld [vmem:[%s501 + $0x70] sm:$0xff]
        %v517 = vld [vmem:[%s501 + $0x78] sm:$0xff]
        %v534 = vunpack.c.l.b16 %v502
        %v535 = vunpack.c.h.b16 %v502
        %v536 = vunpack.c.l.b16 %v503
        %v537 = vunpack.c.h.b16 %v503
        %v538 = vunpack.c.l.b16 %v504
        %v539 = vunpack.c.h.b16 %v504
        %v540 = vunpack.c.l.b16 %v505
        %v541 = vunpack.c.h.b16 %v505
        %v542 = vunpack.c.l.b16 %v506
        %v543 = vunpack.c.h.b16 %v506
        %v544 = vunpack.c.l.b16 %v507
        %v545 = vunpack.c.h.b16 %v507
        %v546 = vunpack.c.l.b16 %v508
        %v547 = vunpack.c.h.b16 %v508
        %v548 = vunpack.c.l.b16 %v509
        %v549 = vunpack.c.h.b16 %v509
        %v550 = vunpack.c.l.b16 %v510
        %v551 = vunpack.c.h.b16 %v510
        %v552 = vunpack.c.l.b16 %v511
        %v553 = vunpack.c.h.b16 %v511
        %v554 = vunpack.c.l.b16 %v512
        %v555 = vunpack.c.h.b16 %v512
        %v556 = vunpack.c.l.b16 %v513
        %v557 = vunpack.c.h.b16 %v513
        %v558 = vunpack.c.l.b16 %v514
        %v559 = vunpack.c.h.b16 %v514
        %v560 = vunpack.c.l.b16 %v515
        %v561 = vunpack.c.h.b16 %v515
        %v562 = vunpack.c.l.b16 %v516
        %v563 = vunpack.c.h.b16 %v516
        %v564 = vunpack.c.l.b16 %v517
        %v565 = vunpack.c.h.b16 %v517
        %v566 = vpack.c.b16 %v536, %v534
        %v567 = vpack.c.b16 %v537, %v535
        %v568 = vpack.c.b16 %v540, %v538
        %v569 = vpack.c.b16 %v541, %v539
        %v570 = vpack.c.b16 %v544, %v542
        %v571 = vpack.c.b16 %v545, %v543
        %v572 = vpack.c.b16 %v548, %v546
        %v573 = vpack.c.b16 %v549, %v547
        %v574 = vpack.c.b16 %v552, %v550
        %v575 = vpack.c.b16 %v553, %v551
        %v576 = vpack.c.b16 %v556, %v554
        %v577 = vpack.c.b16 %v557, %v555
        %v578 = vpack.c.b16 %v560, %v558
        %v579 = vpack.c.b16 %v561, %v559
        %v580 = vpack.c.b16 %v564, %v562
        %v581 = vpack.c.b16 %v565, %v563
        %598 = vmatpush.bf16.msra.mxu0 %v580
        %599 = vmatpush.bf16.msra.mxu0 %v578
        %600 = vmatpush.bf16.msra.mxu0 %v576
        %601 = vmatpush.bf16.msra.mxu0 %v574
        %602 = vmatpush.bf16.msra.mxu0 %v572
        %603 = vmatpush.bf16.msra.mxu0 %v570
        %604 = vmatpush.bf16.msra.mxu0 %v568
        %605 = vmatpush.bf16.msra.mxu0 %v566
        %606 = vmatmul.bf16.gmra.mxu0 %v499
        %v607 = vpop.f32.mrf.mxu0
        %v608 = vadd.f32 0.0, %v607
        %v609 = vpop.f32.mrf.mxu0
        %v610 = vadd.f32 0.0, %v609
        %611 = vmatmul.bf16.gmra.mxu0 %v500
        %v612 = vpop.f32.mrf.mxu0
        %v613 = vadd.f32 0.0, %v612
        %v614 = vpop.f32.mrf.mxu0
        %v615 = vadd.f32 0.0, %v614
        %616 = vdwg.mxu0
        %617 = vmatpush.bf16.msra.mxu0 %v581
        %618 = vmatpush.bf16.msra.mxu0 %v579
        %619 = vmatpush.bf16.msra.mxu0 %v577
        %620 = vmatpush.bf16.msra.mxu0 %v575
        %621 = vmatpush.bf16.msra.mxu0 %v573
        %622 = vmatpush.bf16.msra.mxu0 %v571
        %623 = vmatpush.bf16.msra.mxu0 %v569
        %624 = vmatpush.bf16.msra.mxu0 %v567
        %625 = vmatmul.bf16.gmra.mxu0 %v499
        %v626 = vpop.f32.mrf.mxu0
        %v627 = vadd.f32 0.0, %v626
        %v628 = vpop.f32.mrf.mxu0
        %v629 = vadd.f32 0.0, %v628
        %630 = vmatmul.bf16.gmra.mxu0 %v500
        %v631 = vpop.f32.mrf.mxu0
        %v632 = vadd.f32 0.0, %v631
        %v633 = vpop.f32.mrf.mxu0
        %v634 = vadd.f32 0.0, %v633
        %635 = vdwg.mxu0
        %v652 = vunpack.c.l.b16 %v479
        %v653 = vunpack.c.h.b16 %v479
        %v654 = vunpack.c.l.b16 %v480
        %v655 = vunpack.c.h.b16 %v480
        %v656 = vunpack.c.l.b16 %v481
        %v657 = vunpack.c.h.b16 %v481
        %v658 = vunpack.c.l.b16 %v482
        %v659 = vunpack.c.h.b16 %v482
        %v660 = vunpack.c.l.b16 %v483
        %v661 = vunpack.c.h.b16 %v483
        %v662 = vunpack.c.l.b16 %v484
        %v663 = vunpack.c.h.b16 %v484
        %v664 = vunpack.c.l.b16 %v485
        %v665 = vunpack.c.h.b16 %v485
        %v666 = vunpack.c.l.b16 %v486
        %v667 = vunpack.c.h.b16 %v486
        %v668 = vunpack.c.l.b16 %v487
        %v669 = vunpack.c.h.b16 %v487
        %v670 = vunpack.c.l.b16 %v488
        %v671 = vunpack.c.h.b16 %v488
        %v672 = vunpack.c.l.b16 %v489
        %v673 = vunpack.c.h.b16 %v489
        %v674 = vunpack.c.l.b16 %v490
        %v675 = vunpack.c.h.b16 %v490
        %v676 = vunpack.c.l.b16 %v491
        %v677 = vunpack.c.h.b16 %v491
        %v678 = vunpack.c.l.b16 %v492
        %v679 = vunpack.c.h.b16 %v492
        %v680 = vunpack.c.l.b16 %v493
        %v681 = vunpack.c.h.b16 %v493
        %v682 = vunpack.c.l.b16 %v494
        %v683 = vunpack.c.h.b16 %v494
        %v684 = vpack.c.b16 %v654, %v652
        %v685 = vpack.c.b16 %v655, %v653
        %v686 = vpack.c.b16 %v658, %v656
        %v687 = vpack.c.b16 %v659, %v657
        %v688 = vpack.c.b16 %v662, %v660
        %v689 = vpack.c.b16 %v663, %v661
        %v690 = vpack.c.b16 %v666, %v664
        %v691 = vpack.c.b16 %v667, %v665
        %v692 = vpack.c.b16 %v670, %v668
        %v693 = vpack.c.b16 %v671, %v669
        %v694 = vpack.c.b16 %v674, %v672
        %v695 = vpack.c.b16 %v675, %v673
        %v696 = vpack.c.b16 %v678, %v676
        %v697 = vpack.c.b16 %v679, %v677
        %v698 = vpack.c.b16 %v682, %v680
        %v699 = vpack.c.b16 %v683, %v681
        %716 = vmatpush.bf16.msra.mxu0 %v698
        %717 = vmatpush.bf16.msra.mxu0 %v696
        %718 = vmatpush.bf16.msra.mxu0 %v694
        %719 = vmatpush.bf16.msra.mxu0 %v692
        %720 = vmatpush.bf16.msra.mxu0 %v690
        %721 = vmatpush.bf16.msra.mxu0 %v688
        %722 = vmatpush.bf16.msra.mxu0 %v686
        %723 = vmatpush.bf16.msra.mxu0 %v684
        %724 = vmatmul.bf16.gmra.mxu0 %v477
        %v725 = vpop.f32.mrf.mxu0
        %v726 = vadd.f32 %v608, %v725
        %v727 = vpop.f32.mrf.mxu0
        %v728 = vadd.f32 %v610, %v727
        %729 = vmatmul.bf16.gmra.mxu0 %v478
        %v730 = vpop.f32.mrf.mxu0
        %v731 = vadd.f32 %v613, %v730
        %v732 = vpop.f32.mrf.mxu0
        %v733 = vadd.f32 %v615, %v732
        %734 = vdwg.mxu0
        %735 = vmatpush.bf16.msra.mxu0 %v699
        %736 = vmatpush.bf16.msra.mxu0 %v697
        %737 = vmatpush.bf16.msra.mxu0 %v695
        %738 = vmatpush.bf16.msra.mxu0 %v693
        %739 = vmatpush.bf16.msra.mxu0 %v691
        %740 = vmatpush.bf16.msra.mxu0 %v689
        %741 = vmatpush.bf16.msra.mxu0 %v687
        %742 = vmatpush.bf16.msra.mxu0 %v685
        %743 = vmatmul.bf16.gmra.mxu0 %v477
        %v744 = vpop.f32.mrf.mxu0
        %v745 = vadd.f32 %v627, %v744
        %v746 = vpop.f32.mrf.mxu0
        %v747 = vadd.f32 %v629, %v746
        %748 = vmatmul.bf16.gmra.mxu0 %v478
        %v749 = vpop.f32.mrf.mxu0
        %v750 = vadd.f32 %v632, %v749
        %v751 = vpop.f32.mrf.mxu0
        %v752 = vadd.f32 %v634, %v751
        %753 = vdwg.mxu0
        %v754 = vld [vmem:[#allocation2 + $0x2] sm:$0xff]
        %v755 = vld [vmem:[#allocation2 + $0xa] sm:$0xff]
        %v756 = vld [vmem:[#allocation2 + $0x12] sm:$0xff]
        %v757 = vld [vmem:[#allocation2 + $0x1a] sm:$0xff]
        %v758 = vpack.c.bf16 %v755, %v754
        %v759 = vpack.c.bf16 %v757, %v756
        %s760 = scalar_lea.vmem [#allocation8], 256
        %v761 = vld [vmem:[%s760] sm:$0xff]
        %v762 = vld [vmem:[%s760 + $0x8] sm:$0xff]
        %v763 = vld [vmem:[%s760 + $0x10] sm:$0xff]
        %v764 = vld [vmem:[%s760 + $0x18] sm:$0xff]
        %v765 = vld [vmem:[%s760 + $0x20] sm:$0xff]
        %v766 = vld [vmem:[%s760 + $0x28] sm:$0xff]
        %v767 = vld [vmem:[%s760 + $0x30] sm:$0xff]
        %v768 = vld [vmem:[%s760 + $0x38] sm:$0xff]
        %v769 = vld [vmem:[%s760 + $0x40] sm:$0xff]
        %v770 = vld [vmem:[%s760 + $0x48] sm:$0xff]
        %v771 = vld [vmem:[%s760 + $0x50] sm:$0xff]
        %v772 = vld [vmem:[%s760 + $0x58] sm:$0xff]
        %v773 = vld [vmem:[%s760 + $0x60] sm:$0xff]
        %v774 = vld [vmem:[%s760 + $0x68] sm:$0xff]
        %v775 = vld [vmem:[%s760 + $0x70] sm:$0xff]
        %v776 = vld [vmem:[%s760 + $0x78] sm:$0xff]
        %v793 = vunpack.c.l.b16 %v761
        %v794 = vunpack.c.h.b16 %v761
        %v795 = vunpack.c.l.b16 %v762
        %v796 = vunpack.c.h.b16 %v762
        %v797 = vunpack.c.l.b16 %v763
        %v798 = vunpack.c.h.b16 %v763
        %v799 = vunpack.c.l.b16 %v764
        %v800 = vunpack.c.h.b16 %v764
        %v801 = vunpack.c.l.b16 %v765
        %v802 = vunpack.c.h.b16 %v765
        %v803 = vunpack.c.l.b16 %v766
        %v804 = vunpack.c.h.b16 %v766
        %v805 = vunpack.c.l.b16 %v767
        %v806 = vunpack.c.h.b16 %v767
        %v807 = vunpack.c.l.b16 %v768
        %v808 = vunpack.c.h.b16 %v768
        %v809 = vunpack.c.l.b16 %v769
        %v810 = vunpack.c.h.b16 %v769
        %v811 = vunpack.c.l.b16 %v770
        %v812 = vunpack.c.h.b16 %v770
        %v813 = vunpack.c.l.b16 %v771
        %v814 = vunpack.c.h.b16 %v771
        %v815 = vunpack.c.l.b16 %v772
        %v816 = vunpack.c.h.b16 %v772
        %v817 = vunpack.c.l.b16 %v773
        %v818 = vunpack.c.h.b16 %v773
        %v819 = vunpack.c.l.b16 %v774
        %v820 = vunpack.c.h.b16 %v774
        %v821 = vunpack.c.l.b16 %v775
        %v822 = vunpack.c.h.b16 %v775
        %v823 = vunpack.c.l.b16 %v776
        %v824 = vunpack.c.h.b16 %v776
        %v825 = vpack.c.b16 %v795, %v793
        %v826 = vpack.c.b16 %v796, %v794
        %v827 = vpack.c.b16 %v799, %v797
        %v828 = vpack.c.b16 %v800, %v798
        %v829 = vpack.c.b16 %v803, %v801
        %v830 = vpack.c.b16 %v804, %v802
        %v831 = vpack.c.b16 %v807, %v805
        %v832 = vpack.c.b16 %v808, %v806
        %v833 = vpack.c.b16 %v811, %v809
        %v834 = vpack.c.b16 %v812, %v810
        %v835 = vpack.c.b16 %v815, %v813
        %v836 = vpack.c.b16 %v816, %v814
        %v837 = vpack.c.b16 %v819, %v817
        %v838 = vpack.c.b16 %v820, %v818
        %v839 = vpack.c.b16 %v823, %v821
        %v840 = vpack.c.b16 %v824, %v822
        %857 = vmatpush.bf16.msra.mxu0 %v839
        %858 = vmatpush.bf16.msra.mxu0 %v837
        %859 = vmatpush.bf16.msra.mxu0 %v835
        %860 = vmatpush.bf16.msra.mxu0 %v833
        %861 = vmatpush.bf16.msra.mxu0 %v831
        %862 = vmatpush.bf16.msra.mxu0 %v829
        %863 = vmatpush.bf16.msra.mxu0 %v827
        %864 = vmatpush.bf16.msra.mxu0 %v825
        %865 = vmatmul.bf16.gmra.mxu0 %v758
        %v866 = vpop.f32.mrf.mxu0
        %v867 = vadd.f32 0.0, %v866
        %v868 = vpop.f32.mrf.mxu0
        %v869 = vadd.f32 0.0, %v868
        %870 = vmatmul.bf16.gmra.mxu0 %v759
        %v871 = vpop.f32.mrf.mxu0
        %v872 = vadd.f32 0.0, %v871
        %v873 = vpop.f32.mrf.mxu0
        %v874 = vadd.f32 0.0, %v873
        %875 = vdwg.mxu0
        %876 = vmatpush.bf16.msra.mxu0 %v840
        %877 = vmatpush.bf16.msra.mxu0 %v838
        %878 = vmatpush.bf16.msra.mxu0 %v836
        %879 = vmatpush.bf16.msra.mxu0 %v834
        %880 = vmatpush.bf16.msra.mxu0 %v832
        %881 = vmatpush.bf16.msra.mxu0 %v830
        %882 = vmatpush.bf16.msra.mxu0 %v828
        %883 = vmatpush.bf16.msra.mxu0 %v826
        %884 = vmatmul.bf16.gmra.mxu0 %v758
        %v885 = vpop.f32.mrf.mxu0
        %v886 = vadd.f32 0.0, %v885
        %v887 = vpop.f32.mrf.mxu0
        %v888 = vadd.f32 0.0, %v887
        %889 = vmatmul.bf16.gmra.mxu0 %v759
        %v890 = vpop.f32.mrf.mxu0
        %v891 = vadd.f32 0.0, %v890
        %v892 = vpop.f32.mrf.mxu0
        %v893 = vadd.f32 0.0, %v892
        %894 = vdwg.mxu0
        %v895 = vadd.f32 %v726, %v867
        %v896 = vadd.f32 %v745, %v886
        %v897 = vadd.f32 %v728, %v869
        %v898 = vadd.f32 %v747, %v888
        %v899 = vadd.f32 %v731, %v872
        %v900 = vadd.f32 %v750, %v891
        %v901 = vadd.f32 %v733, %v874
        %v902 = vadd.f32 %v752, %v893
        %v903 = vmax.f32 %v895, %v896
        %v904 = vmax.f32 %v897, %v898
        %v905 = vmax.f32 %v899, %v900
        %v906 = vmax.f32 %v901, %v902
        %v907 = vld [vmem:[%s2] sm:$0x1]
        %v909 = vperm.slane %v907, 0
        %v911 = vadd.f32 %v903, %v909
        %v912 = vadd.f32 %v904, %v909
        %v913 = vadd.f32 %v905, %v909
        %v914 = vadd.f32 %v906, %v909
        %v915 = vmax.f32 %v911, 0.0
        %v916 = vmax.f32 %v912, 0.0
        %v917 = vmax.f32 %v913, 0.0
        %v918 = vmax.f32 %v914, 0.0
        %919 = vst [vmem:[#allocation3] sm:$0xff] %v915
        %920 = vst [vmem:[#allocation3 + $0x8] sm:$0xff] %v916
        %921 = vst [vmem:[#allocation3 + $0x10] sm:$0xff] %v917
        %922 = vst [vmem:[#allocation3 + $0x18] sm:$0xff] %v918
        %v923 = vld [vmem:[#allocation3] ss:$2 sm:$0xff]
        %s924 = scalar_lea.vmem [#allocation3], 16
        %v925 = vld [vmem:[%s924] ss:$2 sm:$0xff]
        %s926 = scalar_lea.vmem [#allocation3], 1
        %v927 = vld [vmem:[%s926] ss:$2 sm:$0xff]
        %s928 = scalar_lea.vmem [#allocation3], 17
        %v929 = vld [vmem:[%s928] ss:$2 sm:$0xff]
        %v930 = vmax.f32 %v923, %v927
        %v931 = vmax.f32 %v925, %v929
        %932 = vst [vmem:[#allocation4] sm:$0x1] 0.0
        %933 = vst [vmem:[#allocation4 + $0x11] sm:$0x1] 0.0
        %934 = vst [vmem:[#allocation4 + $0x1] sm:$0xff] %v930
        %935 = vst [vmem:[#allocation4 + $0x9] sm:$0xff] %v931
        %v936 = vld [vmem:[#allocation4] sm:$0xff]
        %v937 = vld [vmem:[#allocation4 + $0x8] sm:$0xff]
        %v938 = vpack.c.bf16 %v937, %v936
        %v939 = vld [vmem:[#allocation11] sm:$0xff]
        %v940 = vld [vmem:[#allocation11 + $0x8] sm:$0xff]
        %v941 = vld [vmem:[#allocation11 + $0x10] sm:$0xff]
        %v942 = vld [vmem:[#allocation11 + $0x18] sm:$0xff]
        %v943 = vld [vmem:[#allocation11 + $0x20] sm:$0xff]
        %v944 = vld [vmem:[#allocation11 + $0x28] sm:$0xff]
        %v945 = vld [vmem:[#allocation11 + $0x30] sm:$0xff]
        %v946 = vld [vmem:[#allocation11 + $0x38] sm:$0xff]
        %v947 = vld [vmem:[#allocation11 + $0x40] sm:$0xff]
        %v948 = vld [vmem:[#allocation11 + $0x48] sm:$0xff]
        %v949 = vld [vmem:[#allocation11 + $0x50] sm:$0xff]
        %v950 = vld [vmem:[#allocation11 + $0x58] sm:$0xff]
        %v951 = vld [vmem:[#allocation11 + $0x60] sm:$0xff]
        %v952 = vld [vmem:[#allocation11 + $0x68] sm:$0xff]
        %v953 = vld [vmem:[#allocation11 + $0x70] sm:$0xff]
        %v954 = vld [vmem:[#allocation11 + $0x78] sm:$0xff]
        %v955 = vld [vmem:[#allocation4 + $0x1] sm:$0xff]
        %v956 = vld [vmem:[#allocation4 + $0x9] sm:$0xff]
        %v957 = vpack.c.bf16 %v956, %v955
        %s958 = scalar_lea.vmem [#allocation11], 128
        %v959 = vld [vmem:[%s958] sm:$0xff]
        %v960 = vld [vmem:[%s958 + $0x8] sm:$0xff]
        %v961 = vld [vmem:[%s958 + $0x10] sm:$0xff]
        %v962 = vld [vmem:[%s958 + $0x18] sm:$0xff]
        %v963 = vld [vmem:[%s958 + $0x20] sm:$0xff]
        %v964 = vld [vmem:[%s958 + $0x28] sm:$0xff]
        %v965 = vld [vmem:[%s958 + $0x30] sm:$0xff]
        %v966 = vld [vmem:[%s958 + $0x38] sm:$0xff]
        %v967 = vld [vmem:[%s958 + $0x40] sm:$0xff]
        %v968 = vld [vmem:[%s958 + $0x48] sm:$0xff]
        %v969 = vld [vmem:[%s958 + $0x50] sm:$0xff]
        %v970 = vld [vmem:[%s958 + $0x58] sm:$0xff]
        %v971 = vld [vmem:[%s958 + $0x60] sm:$0xff]
        %v972 = vld [vmem:[%s958 + $0x68] sm:$0xff]
        %v973 = vld [vmem:[%s958 + $0x70] sm:$0xff]
        %v974 = vld [vmem:[%s958 + $0x78] sm:$0xff]
        %v991 = vunpack.c.l.b16 %v959
        %v992 = vunpack.c.h.b16 %v959
        %v993 = vunpack.c.l.b16 %v960
        %v994 = vunpack.c.h.b16 %v960
        %v995 = vunpack.c.l.b16 %v961
        %v996 = vunpack.c.h.b16 %v961
        %v997 = vunpack.c.l.b16 %v962
        %v998 = vunpack.c.h.b16 %v962
        %v999 = vunpack.c.l.b16 %v963
        %v1000 = vunpack.c.h.b16 %v963
        %v1001 = vunpack.c.l.b16 %v964
        %v1002 = vunpack.c.h.b16 %v964
        %v1003 = vunpack.c.l.b16 %v965
        %v1004 = vunpack.c.h.b16 %v965
        %v1005 = vunpack.c.l.b16 %v966
        %v1006 = vunpack.c.h.b16 %v966
        %v1007 = vunpack.c.l.b16 %v967
        %v1008 = vunpack.c.h.b16 %v967
        %v1009 = vunpack.c.l.b16 %v968
        %v1010 = vunpack.c.h.b16 %v968
        %v1011 = vunpack.c.l.b16 %v969
        %v1012 = vunpack.c.h.b16 %v969
        %v1013 = vunpack.c.l.b16 %v970
        %v1014 = vunpack.c.h.b16 %v970
        %v1015 = vunpack.c.l.b16 %v971
        %v1016 = vunpack.c.h.b16 %v971
        %v1017 = vunpack.c.l.b16 %v972
        %v1018 = vunpack.c.h.b16 %v972
        %v1019 = vunpack.c.l.b16 %v973
        %v1020 = vunpack.c.h.b16 %v973
        %v1021 = vunpack.c.l.b16 %v974
        %v1022 = vunpack.c.h.b16 %v974
        %v1023 = vpack.c.b16 %v993, %v991
        %v1024 = vpack.c.b16 %v994, %v992
        %v1025 = vpack.c.b16 %v997, %v995
        %v1026 = vpack.c.b16 %v998, %v996
        %v1027 = vpack.c.b16 %v1001, %v999
        %v1028 = vpack.c.b16 %v1002, %v1000
        %v1029 = vpack.c.b16 %v1005, %v1003
        %v1030 = vpack.c.b16 %v1006, %v1004
        %v1031 = vpack.c.b16 %v1009, %v1007
        %v1032 = vpack.c.b16 %v1010, %v1008
        %v1033 = vpack.c.b16 %v1013, %v1011
        %v1034 = vpack.c.b16 %v1014, %v1012
        %v1035 = vpack.c.b16 %v1017, %v1015
        %v1036 = vpack.c.b16 %v1018, %v1016
        %v1037 = vpack.c.b16 %v1021, %v1019
        %v1038 = vpack.c.b16 %v1022, %v1020
        %1055 = vmatpush.bf16.msra.mxu0 %v1037
        %1056 = vmatpush.bf16.msra.mxu0 %v1035
        %1057 = vmatpush.bf16.msra.mxu0 %v1033
        %1058 = vmatpush.bf16.msra.mxu0 %v1031
        %1059 = vmatpush.bf16.msra.mxu0 %v1029
        %1060 = vmatpush.bf16.msra.mxu0 %v1027
        %1061 = vmatpush.bf16.msra.mxu0 %v1025
        %1062 = vmatpush.bf16.msra.mxu0 %v1023
        %1063 = vmatmul.bf16.gmra.mxu0 %v957
        %v1064 = vpop.f32.mrf.mxu0
        %v1065 = vadd.f32 0.0, %v1064
        %v1066 = vpop.f32.mrf.mxu0
        %v1067 = vadd.f32 0.0, %v1066
        %1068 = vdwg.mxu0
        %1069 = vmatpush.bf16.msra.mxu0 %v1038
        %1070 = vmatpush.bf16.msra.mxu0 %v1036
        %1071 = vmatpush.bf16.msra.mxu0 %v1034
        %1072 = vmatpush.bf16.msra.mxu0 %v1032
        %1073 = vmatpush.bf16.msra.mxu0 %v1030
        %1074 = vmatpush.bf16.msra.mxu0 %v1028
        %1075 = vmatpush.bf16.msra.mxu0 %v1026
        %1076 = vmatpush.bf16.msra.mxu0 %v1024
        %1077 = vmatmul.bf16.gmra.mxu0 %v957
        %v1078 = vpop.f32.mrf.mxu0
        %v1079 = vadd.f32 0.0, %v1078
        %v1080 = vpop.f32.mrf.mxu0
        %v1081 = vadd.f32 0.0, %v1080
        %1082 = vdwg.mxu0
        %v1099 = vunpack.c.l.b16 %v939
        %v1100 = vunpack.c.h.b16 %v939
        %v1101 = vunpack.c.l.b16 %v940
        %v1102 = vunpack.c.h.b16 %v940
        %v1103 = vunpack.c.l.b16 %v941
        %v1104 = vunpack.c.h.b16 %v941
        %v1105 = vunpack.c.l.b16 %v942
        %v1106 = vunpack.c.h.b16 %v942
        %v1107 = vunpack.c.l.b16 %v943
        %v1108 = vunpack.c.h.b16 %v943
        %v1109 = vunpack.c.l.b16 %v944
        %v1110 = vunpack.c.h.b16 %v944
        %v1111 = vunpack.c.l.b16 %v945
        %v1112 = vunpack.c.h.b16 %v945
        %v1113 = vunpack.c.l.b16 %v946
        %v1114 = vunpack.c.h.b16 %v946
        %v1115 = vunpack.c.l.b16 %v947
        %v1116 = vunpack.c.h.b16 %v947
        %v1117 = vunpack.c.l.b16 %v948
        %v1118 = vunpack.c.h.b16 %v948
        %v1119 = vunpack.c.l.b16 %v949
        %v1120 = vunpack.c.h.b16 %v949
        %v1121 = vunpack.c.l.b16 %v950
        %v1122 = vunpack.c.h.b16 %v950
        %v1123 = vunpack.c.l.b16 %v951
        %v1124 = vunpack.c.h.b16 %v951
        %v1125 = vunpack.c.l.b16 %v952
        %v1126 = vunpack.c.h.b16 %v952
        %v1127 = vunpack.c.l.b16 %v953
        %v1128 = vunpack.c.h.b16 %v953
        %v1129 = vunpack.c.l.b16 %v954
        %v1130 = vunpack.c.h.b16 %v954
        %v1131 = vpack.c.b16 %v1101, %v1099
        %v1132 = vpack.c.b16 %v1102, %v1100
        %v1133 = vpack.c.b16 %v1105, %v1103
        %v1134 = vpack.c.b16 %v1106, %v1104
        %v1135 = vpack.c.b16 %v1109, %v1107
        %v1136 = vpack.c.b16 %v1110, %v1108
        %v1137 = vpack.c.b16 %v1113, %v1111
        %v1138 = vpack.c.b16 %v1114, %v1112
        %v1139 = vpack.c.b16 %v1117, %v1115
        %v1140 = vpack.c.b16 %v1118, %v1116
        %v1141 = vpack.c.b16 %v1121, %v1119
        %v1142 = vpack.c.b16 %v1122, %v1120
        %v1143 = vpack.c.b16 %v1125, %v1123
        %v1144 = vpack.c.b16 %v1126, %v1124
        %v1145 = vpack.c.b16 %v1129, %v1127
        %v1146 = vpack.c.b16 %v1130, %v1128
        %1163 = vmatpush.bf16.msra.mxu0 %v1145
        %1164 = vmatpush.bf16.msra.mxu0 %v1143
        %1165 = vmatpush.bf16.msra.mxu0 %v1141
        %1166 = vmatpush.bf16.msra.mxu0 %v1139
        %1167 = vmatpush.bf16.msra.mxu0 %v1137
        %1168 = vmatpush.bf16.msra.mxu0 %v1135
        %1169 = vmatpush.bf16.msra.mxu0 %v1133
        %1170 = vmatpush.bf16.msra.mxu0 %v1131
        %1171 = vmatmul.bf16.gmra.mxu0 %v938
        %v1172 = vpop.f32.mrf.mxu0
        %v1173 = vadd.f32 %v1065, %v1172
        %v1174 = vpop.f32.mrf.mxu0
        %v1175 = vadd.f32 %v1067, %v1174
        %1176 = vdwg.mxu0
        %1177 = vmatpush.bf16.msra.mxu0 %v1146
        %1178 = vmatpush.bf16.msra.mxu0 %v1144
        %1179 = vmatpush.bf16.msra.mxu0 %v1142
        %1180 = vmatpush.bf16.msra.mxu0 %v1140
        %1181 = vmatpush.bf16.msra.mxu0 %v1138
        %1182 = vmatpush.bf16.msra.mxu0 %v1136
        %1183 = vmatpush.bf16.msra.mxu0 %v1134
        %1184 = vmatpush.bf16.msra.mxu0 %v1132
        %1185 = vmatmul.bf16.gmra.mxu0 %v938
        %v1186 = vpop.f32.mrf.mxu0
        %v1187 = vadd.f32 %v1079, %v1186
        %v1188 = vpop.f32.mrf.mxu0
        %v1189 = vadd.f32 %v1081, %v1188
        %1190 = vdwg.mxu0
        %v1191 = vld [vmem:[#allocation4 + $0x2] sm:$0xff]
        %v1192 = vld [vmem:[#allocation4 + $0xa] sm:$0xff]
        %v1193 = vpack.c.bf16 %v1192, %v1191
        %s1194 = scalar_lea.vmem [#allocation11], 256
        %v1195 = vld [vmem:[%s1194] sm:$0xff]
        %v1196 = vld [vmem:[%s1194 + $0x8] sm:$0xff]
        %v1197 = vld [vmem:[%s1194 + $0x10] sm:$0xff]
        %v1198 = vld [vmem:[%s1194 + $0x18] sm:$0xff]
        %v1199 = vld [vmem:[%s1194 + $0x20] sm:$0xff]
        %v1200 = vld [vmem:[%s1194 + $0x28] sm:$0xff]
        %v1201 = vld [vmem:[%s1194 + $0x30] sm:$0xff]
        %v1202 = vld [vmem:[%s1194 + $0x38] sm:$0xff]
        %v1203 = vld [vmem:[%s1194 + $0x40] sm:$0xff]
        %v1204 = vld [vmem:[%s1194 + $0x48] sm:$0xff]
        %v1205 = vld [vmem:[%s1194 + $0x50] sm:$0xff]
        %v1206 = vld [vmem:[%s1194 + $0x58] sm:$0xff]
        %v1207 = vld [vmem:[%s1194 + $0x60] sm:$0xff]
        %v1208 = vld [vmem:[%s1194 + $0x68] sm:$0xff]
        %v1209 = vld [vmem:[%s1194 + $0x70] sm:$0xff]
        %v1210 = vld [vmem:[%s1194 + $0x78] sm:$0xff]
        %v1227 = vunpack.c.l.b16 %v1195
        %v1228 = vunpack.c.h.b16 %v1195
        %v1229 = vunpack.c.l.b16 %v1196
        %v1230 = vunpack.c.h.b16 %v1196
        %v1231 = vunpack.c.l.b16 %v1197
        %v1232 = vunpack.c.h.b16 %v1197
        %v1233 = vunpack.c.l.b16 %v1198
        %v1234 = vunpack.c.h.b16 %v1198
        %v1235 = vunpack.c.l.b16 %v1199
        %v1236 = vunpack.c.h.b16 %v1199
        %v1237 = vunpack.c.l.b16 %v1200
        %v1238 = vunpack.c.h.b16 %v1200
        %v1239 = vunpack.c.l.b16 %v1201
        %v1240 = vunpack.c.h.b16 %v1201
        %v1241 = vunpack.c.l.b16 %v1202
        %v1242 = vunpack.c.h.b16 %v1202
        %v1243 = vunpack.c.l.b16 %v1203
        %v1244 = vunpack.c.h.b16 %v1203
        %v1245 = vunpack.c.l.b16 %v1204
        %v1246 = vunpack.c.h.b16 %v1204
        %v1247 = vunpack.c.l.b16 %v1205
        %v1248 = vunpack.c.h.b16 %v1205
        %v1249 = vunpack.c.l.b16 %v1206
        %v1250 = vunpack.c.h.b16 %v1206
        %v1251 = vunpack.c.l.b16 %v1207
        %v1252 = vunpack.c.h.b16 %v1207
        %v1253 = vunpack.c.l.b16 %v1208
        %v1254 = vunpack.c.h.b16 %v1208
        %v1255 = vunpack.c.l.b16 %v1209
        %v1256 = vunpack.c.h.b16 %v1209
        %v1257 = vunpack.c.l.b16 %v1210
        %v1258 = vunpack.c.h.b16 %v1210
        %v1259 = vpack.c.b16 %v1229, %v1227
        %v1260 = vpack.c.b16 %v1230, %v1228
        %v1261 = vpack.c.b16 %v1233, %v1231
        %v1262 = vpack.c.b16 %v1234, %v1232
        %v1263 = vpack.c.b16 %v1237, %v1235
        %v1264 = vpack.c.b16 %v1238, %v1236
        %v1265 = vpack.c.b16 %v1241, %v1239
        %v1266 = vpack.c.b16 %v1242, %v1240
        %v1267 = vpack.c.b16 %v1245, %v1243
        %v1268 = vpack.c.b16 %v1246, %v1244
        %v1269 = vpack.c.b16 %v1249, %v1247
        %v1270 = vpack.c.b16 %v1250, %v1248
        %v1271 = vpack.c.b16 %v1253, %v1251
        %v1272 = vpack.c.b16 %v1254, %v1252
        %v1273 = vpack.c.b16 %v1257, %v1255
        %v1274 = vpack.c.b16 %v1258, %v1256
        %1291 = vmatpush.bf16.msra.mxu0 %v1273
        %1292 = vmatpush.bf16.msra.mxu0 %v1271
        %1293 = vmatpush.bf16.msra.mxu0 %v1269
        %1294 = vmatpush.bf16.msra.mxu0 %v1267
        %1295 = vmatpush.bf16.msra.mxu0 %v1265
        %1296 = vmatpush.bf16.msra.mxu0 %v1263
        %1297 = vmatpush.bf16.msra.mxu0 %v1261
        %1298 = vmatpush.bf16.msra.mxu0 %v1259
        %1299 = vmatmul.bf16.gmra.mxu0 %v1193
        %v1300 = vpop.f32.mrf.mxu0
        %v1301 = vadd.f32 0.0, %v1300
        %v1302 = vpop.f32.mrf.mxu0
        %v1303 = vadd.f32 0.0, %v1302
        %1304 = vdwg.mxu0
        %1305 = vmatpush.bf16.msra.mxu0 %v1274
        %1306 = vmatpush.bf16.msra.mxu0 %v1272
        %1307 = vmatpush.bf16.msra.mxu0 %v1270
        %1308 = vmatpush.bf16.msra.mxu0 %v1268
        %1309 = vmatpush.bf16.msra.mxu0 %v1266
        %1310 = vmatpush.bf16.msra.mxu0 %v1264
        %1311 = vmatpush.bf16.msra.mxu0 %v1262
        %1312 = vmatpush.bf16.msra.mxu0 %v1260
        %1313 = vmatmul.bf16.gmra.mxu0 %v1193
        %v1314 = vpop.f32.mrf.mxu0
        %v1315 = vadd.f32 0.0, %v1314
        %v1316 = vpop.f32.mrf.mxu0
        %v1317 = vadd.f32 0.0, %v1316
        %1318 = vdwg.mxu0
        %v1319 = vadd.f32 %v1173, %v1301
        %v1320 = vadd.f32 %v1187, %v1315
        %v1321 = vadd.f32 %v1175, %v1303
        %v1322 = vadd.f32 %v1189, %v1317
        %v1323 = vmax.f32 %v1319, %v1320
        %v1324 = vmax.f32 %v1321, %v1322
        %v1325 = vld [vmem:[%s4] sm:$0x1]
        %v1327 = vperm.slane %v1325, 0
        %v1329 = vadd.f32 %v1323, %v1327
        %v1330 = vadd.f32 %v1324, %v1327
        %v1331 = vmax.f32 %v1329, 0.0
        %v1332 = vmax.f32 %v1330, 0.0
        %1333 = vst [vmem:[#allocation5] sm:$0xff] %v1331
        %1334 = vst [vmem:[#allocation5 + $0x8] sm:$0xff] %v1332
        %v1335 = vld [vmem:[#allocation5] ss:$2 sm:$0xff]
        %s1336 = scalar_lea.vmem [#allocation5], 1
        %v1337 = vld [vmem:[%s1336] ss:$2 sm:$0xff]
        %v1338 = vmax.f32 %v1335, %v1337
        %1339 = vst [vmem:[#allocation6] sm:$0x1] 0.0
        %1340 = vst [vmem:[#allocation6 + $0x9] sm:$0x1] 0.0
        %1341 = vst [vmem:[#allocation6 + $0x1] sm:$0xff] %v1338
        %v1342 = vld [vmem:[#allocation6] sm:$0xff]
        %v1343 = vpack.c.bf16 %v1342, %v1342
        %v1344 = vld [vmem:[#allocation13] sm:$0xff]
        %v1345 = vld [vmem:[#allocation13 + $0x8] sm:$0xff]
        %v1346 = vld [vmem:[#allocation13 + $0x10] sm:$0xff]
        %v1347 = vld [vmem:[#allocation13 + $0x18] sm:$0xff]
        %v1348 = vld [vmem:[#allocation13 + $0x20] sm:$0xff]
        %v1349 = vld [vmem:[#allocation13 + $0x28] sm:$0xff]
        %v1350 = vld [vmem:[#allocation13 + $0x30] sm:$0xff]
        %v1351 = vld [vmem:[#allocation13 + $0x38] sm:$0xff]
        %v1352 = vld [vmem:[#allocation13 + $0x40] sm:$0xff]
        %v1353 = vld [vmem:[#allocation13 + $0x48] sm:$0xff]
        %v1354 = vld [vmem:[#allocation13 + $0x50] sm:$0xff]
        %v1355 = vld [vmem:[#allocation13 + $0x58] sm:$0xff]
        %v1356 = vld [vmem:[#allocation13 + $0x60] sm:$0xff]
        %v1357 = vld [vmem:[#allocation13 + $0x68] sm:$0xff]
        %v1358 = vld [vmem:[#allocation13 + $0x70] sm:$0xff]
        %v1359 = vld [vmem:[#allocation13 + $0x78] sm:$0xff]
        %v1360 = vld [vmem:[#allocation6 + $0x1] sm:$0xff]
        %v1361 = vpack.c.bf16 %v1360, %v1360
        %s1362 = scalar_lea.vmem [#allocation13], 128
        %v1363 = vld [vmem:[%s1362] sm:$0xff]
        %v1364 = vld [vmem:[%s1362 + $0x8] sm:$0xff]
        %v1365 = vld [vmem:[%s1362 + $0x10] sm:$0xff]
        %v1366 = vld [vmem:[%s1362 + $0x18] sm:$0xff]
        %v1367 = vld [vmem:[%s1362 + $0x20] sm:$0xff]
        %v1368 = vld [vmem:[%s1362 + $0x28] sm:$0xff]
        %v1369 = vld [vmem:[%s1362 + $0x30] sm:$0xff]
        %v1370 = vld [vmem:[%s1362 + $0x38] sm:$0xff]
        %v1371 = vld [vmem:[%s1362 + $0x40] sm:$0xff]
        %v1372 = vld [vmem:[%s1362 + $0x48] sm:$0xff]
        %v1373 = vld [vmem:[%s1362 + $0x50] sm:$0xff]
        %v1374 = vld [vmem:[%s1362 + $0x58] sm:$0xff]
        %v1375 = vld [vmem:[%s1362 + $0x60] sm:$0xff]
        %v1376 = vld [vmem:[%s1362 + $0x68] sm:$0xff]
        %v1377 = vld [vmem:[%s1362 + $0x70] sm:$0xff]
        %v1378 = vld [vmem:[%s1362 + $0x78] sm:$0xff]
        %v1395 = vunpack.c.l.b16 %v1363
        %v1396 = vunpack.c.h.b16 %v1363
        %v1397 = vunpack.c.l.b16 %v1364
        %v1398 = vunpack.c.h.b16 %v1364
        %v1399 = vunpack.c.l.b16 %v1365
        %v1400 = vunpack.c.h.b16 %v1365
        %v1401 = vunpack.c.l.b16 %v1366
        %v1402 = vunpack.c.h.b16 %v1366
        %v1403 = vunpack.c.l.b16 %v1367
        %v1404 = vunpack.c.h.b16 %v1367
        %v1405 = vunpack.c.l.b16 %v1368
        %v1406 = vunpack.c.h.b16 %v1368
        %v1407 = vunpack.c.l.b16 %v1369
        %v1408 = vunpack.c.h.b16 %v1369
        %v1409 = vunpack.c.l.b16 %v1370
        %v1410 = vunpack.c.h.b16 %v1370
        %v1411 = vunpack.c.l.b16 %v1371
        %v1412 = vunpack.c.h.b16 %v1371
        %v1413 = vunpack.c.l.b16 %v1372
        %v1414 = vunpack.c.h.b16 %v1372
        %v1415 = vunpack.c.l.b16 %v1373
        %v1416 = vunpack.c.h.b16 %v1373
        %v1417 = vunpack.c.l.b16 %v1374
        %v1418 = vunpack.c.h.b16 %v1374
        %v1419 = vunpack.c.l.b16 %v1375
        %v1420 = vunpack.c.h.b16 %v1375
        %v1421 = vunpack.c.l.b16 %v1376
        %v1422 = vunpack.c.h.b16 %v1376
        %v1423 = vunpack.c.l.b16 %v1377
        %v1424 = vunpack.c.h.b16 %v1377
        %v1425 = vunpack.c.l.b16 %v1378
        %v1426 = vunpack.c.h.b16 %v1378
        %v1427 = vpack.c.b16 %v1397, %v1395
        %v1428 = vpack.c.b16 %v1398, %v1396
        %v1429 = vpack.c.b16 %v1401, %v1399
        %v1430 = vpack.c.b16 %v1402, %v1400
        %v1431 = vpack.c.b16 %v1405, %v1403
        %v1432 = vpack.c.b16 %v1406, %v1404
        %v1433 = vpack.c.b16 %v1409, %v1407
        %v1434 = vpack.c.b16 %v1410, %v1408
        %v1435 = vpack.c.b16 %v1413, %v1411
        %v1436 = vpack.c.b16 %v1414, %v1412
        %v1437 = vpack.c.b16 %v1417, %v1415
        %v1438 = vpack.c.b16 %v1418, %v1416
        %v1439 = vpack.c.b16 %v1421, %v1419
        %v1440 = vpack.c.b16 %v1422, %v1420
        %v1441 = vpack.c.b16 %v1425, %v1423
        %v1442 = vpack.c.b16 %v1426, %v1424
        %1459 = vmatpush.bf16.msra.mxu0 %v1441
        %1460 = vmatpush.bf16.msra.mxu0 %v1439
        %1461 = vmatpush.bf16.msra.mxu0 %v1437
        %1462 = vmatpush.bf16.msra.mxu0 %v1435
        %1463 = vmatpush.bf16.msra.mxu0 %v1433
        %1464 = vmatpush.bf16.msra.mxu0 %v1431
        %1465 = vmatpush.bf16.msra.mxu0 %v1429
        %1466 = vmatpush.bf16.msra.mxu0 %v1427
        %1467 = vmatmul.bf16.gmra.mxu0 %v1361
        %v1468 = vpop.f32.mrf.mxu0
        %v1469 = vadd.f32 0.0, %v1468
        %v1470 = vpop.f32.mrf.mxu0
        %1471 = vdwg.mxu0
        %1472 = vmatpush.bf16.msra.mxu0 %v1442
        %1473 = vmatpush.bf16.msra.mxu0 %v1440
        %1474 = vmatpush.bf16.msra.mxu0 %v1438
        %1475 = vmatpush.bf16.msra.mxu0 %v1436
        %1476 = vmatpush.bf16.msra.mxu0 %v1434
        %1477 = vmatpush.bf16.msra.mxu0 %v1432
        %1478 = vmatpush.bf16.msra.mxu0 %v1430
        %1479 = vmatpush.bf16.msra.mxu0 %v1428
        %1480 = vmatmul.bf16.gmra.mxu0 %v1361
        %v1481 = vpop.f32.mrf.mxu0
        %v1482 = vadd.f32 0.0, %v1481
        %v1483 = vpop.f32.mrf.mxu0
        %1484 = vdwg.mxu0
        %v1501 = vunpack.c.l.b16 %v1344
        %v1502 = vunpack.c.h.b16 %v1344
        %v1503 = vunpack.c.l.b16 %v1345
        %v1504 = vunpack.c.h.b16 %v1345
        %v1505 = vunpack.c.l.b16 %v1346
        %v1506 = vunpack.c.h.b16 %v1346
        %v1507 = vunpack.c.l.b16 %v1347
        %v1508 = vunpack.c.h.b16 %v1347
        %v1509 = vunpack.c.l.b16 %v1348
        %v1510 = vunpack.c.h.b16 %v1348
        %v1511 = vunpack.c.l.b16 %v1349
        %v1512 = vunpack.c.h.b16 %v1349
        %v1513 = vunpack.c.l.b16 %v1350
        %v1514 = vunpack.c.h.b16 %v1350
        %v1515 = vunpack.c.l.b16 %v1351
        %v1516 = vunpack.c.h.b16 %v1351
        %v1517 = vunpack.c.l.b16 %v1352
        %v1518 = vunpack.c.h.b16 %v1352
        %v1519 = vunpack.c.l.b16 %v1353
        %v1520 = vunpack.c.h.b16 %v1353
        %v1521 = vunpack.c.l.b16 %v1354
        %v1522 = vunpack.c.h.b16 %v1354
        %v1523 = vunpack.c.l.b16 %v1355
        %v1524 = vunpack.c.h.b16 %v1355
        %v1525 = vunpack.c.l.b16 %v1356
        %v1526 = vunpack.c.h.b16 %v1356
        %v1527 = vunpack.c.l.b16 %v1357
        %v1528 = vunpack.c.h.b16 %v1357
        %v1529 = vunpack.c.l.b16 %v1358
        %v1530 = vunpack.c.h.b16 %v1358
        %v1531 = vunpack.c.l.b16 %v1359
        %v1532 = vunpack.c.h.b16 %v1359
        %v1533 = vpack.c.b16 %v1503, %v1501
        %v1534 = vpack.c.b16 %v1504, %v1502
        %v1535 = vpack.c.b16 %v1507, %v1505
        %v1536 = vpack.c.b16 %v1508, %v1506
        %v1537 = vpack.c.b16 %v1511, %v1509
        %v1538 = vpack.c.b16 %v1512, %v1510
        %v1539 = vpack.c.b16 %v1515, %v1513
        %v1540 = vpack.c.b16 %v1516, %v1514
        %v1541 = vpack.c.b16 %v1519, %v1517
        %v1542 = vpack.c.b16 %v1520, %v1518
        %v1543 = vpack.c.b16 %v1523, %v1521
        %v1544 = vpack.c.b16 %v1524, %v1522
        %v1545 = vpack.c.b16 %v1527, %v1525
        %v1546 = vpack.c.b16 %v1528, %v1526
        %v1547 = vpack.c.b16 %v1531, %v1529
        %v1548 = vpack.c.b16 %v1532, %v1530
        %1565 = vmatpush.bf16.msra.mxu0 %v1547
        %1566 = vmatpush.bf16.msra.mxu0 %v1545
        %1567 = vmatpush.bf16.msra.mxu0 %v1543
        %1568 = vmatpush.bf16.msra.mxu0 %v1541
        %1569 = vmatpush.bf16.msra.mxu0 %v1539
        %1570 = vmatpush.bf16.msra.mxu0 %v1537
        %1571 = vmatpush.bf16.msra.mxu0 %v1535
        %1572 = vmatpush.bf16.msra.mxu0 %v1533
        %1573 = vmatmul.bf16.gmra.mxu0 %v1343
        %v1574 = vpop.f32.mrf.mxu0
        %v1575 = vadd.f32 %v1469, %v1574
        %v1576 = vpop.f32.mrf.mxu0
        %1577 = vdwg.mxu0
        %1578 = vmatpush.bf16.msra.mxu0 %v1548
        %1579 = vmatpush.bf16.msra.mxu0 %v1546
        %1580 = vmatpush.bf16.msra.mxu0 %v1544
        %1581 = vmatpush.bf16.msra.mxu0 %v1542
        %1582 = vmatpush.bf16.msra.mxu0 %v1540
        %1583 = vmatpush.bf16.msra.mxu0 %v1538
        %1584 = vmatpush.bf16.msra.mxu0 %v1536
        %1585 = vmatpush.bf16.msra.mxu0 %v1534
        %1586 = vmatmul.bf16.gmra.mxu0 %v1343
        %v1587 = vpop.f32.mrf.mxu0
        %v1588 = vadd.f32 %v1482, %v1587
        %v1589 = vpop.f32.mrf.mxu0
        %1590 = vdwg.mxu0
        %v1591 = vld [vmem:[#allocation6 + $0x2] sm:$0xff]
        %v1592 = vpack.c.bf16 %v1591, %v1591
        %s1593 = scalar_lea.vmem [#allocation13], 256
        %v1594 = vld [vmem:[%s1593] sm:$0xff]
        %v1595 = vld [vmem:[%s1593 + $0x8] sm:$0xff]
        %v1596 = vld [vmem:[%s1593 + $0x10] sm:$0xff]
        %v1597 = vld [vmem:[%s1593 + $0x18] sm:$0xff]
        %v1598 = vld [vmem:[%s1593 + $0x20] sm:$0xff]
        %v1599 = vld [vmem:[%s1593 + $0x28] sm:$0xff]
        %v1600 = vld [vmem:[%s1593 + $0x30] sm:$0xff]
        %v1601 = vld [vmem:[%s1593 + $0x38] sm:$0xff]
        %v1602 = vld [vmem:[%s1593 + $0x40] sm:$0xff]
        %v1603 = vld [vmem:[%s1593 + $0x48] sm:$0xff]
        %v1604 = vld [vmem:[%s1593 + $0x50] sm:$0xff]
        %v1605 = vld [vmem:[%s1593 + $0x58] sm:$0xff]
        %v1606 = vld [vmem:[%s1593 + $0x60] sm:$0xff]
        %v1607 = vld [vmem:[%s1593 + $0x68] sm:$0xff]
        %v1608 = vld [vmem:[%s1593 + $0x70] sm:$0xff]
        %v1609 = vld [vmem:[%s1593 + $0x78] sm:$0xff]
        %v1626 = vunpack.c.l.b16 %v1594
        %v1627 = vunpack.c.h.b16 %v1594
        %v1628 = vunpack.c.l.b16 %v1595
        %v1629 = vunpack.c.h.b16 %v1595
        %v1630 = vunpack.c.l.b16 %v1596
        %v1631 = vunpack.c.h.b16 %v1596
        %v1632 = vunpack.c.l.b16 %v1597
        %v1633 = vunpack.c.h.b16 %v1597
        %v1634 = vunpack.c.l.b16 %v1598
        %v1635 = vunpack.c.h.b16 %v1598
        %v1636 = vunpack.c.l.b16 %v1599
        %v1637 = vunpack.c.h.b16 %v1599
        %v1638 = vunpack.c.l.b16 %v1600
        %v1639 = vunpack.c.h.b16 %v1600
        %v1640 = vunpack.c.l.b16 %v1601
        %v1641 = vunpack.c.h.b16 %v1601
        %v1642 = vunpack.c.l.b16 %v1602
        %v1643 = vunpack.c.h.b16 %v1602
        %v1644 = vunpack.c.l.b16 %v1603
        %v1645 = vunpack.c.h.b16 %v1603
        %v1646 = vunpack.c.l.b16 %v1604
        %v1647 = vunpack.c.h.b16 %v1604
        %v1648 = vunpack.c.l.b16 %v1605
        %v1649 = vunpack.c.h.b16 %v1605
        %v1650 = vunpack.c.l.b16 %v1606
        %v1651 = vunpack.c.h.b16 %v1606
        %v1652 = vunpack.c.l.b16 %v1607
        %v1653 = vunpack.c.h.b16 %v1607
        %v1654 = vunpack.c.l.b16 %v1608
        %v1655 = vunpack.c.h.b16 %v1608
        %v1656 = vunpack.c.l.b16 %v1609
        %v1657 = vunpack.c.h.b16 %v1609
        %v1658 = vpack.c.b16 %v1628, %v1626
        %v1659 = vpack.c.b16 %v1629, %v1627
        %v1660 = vpack.c.b16 %v1632, %v1630
        %v1661 = vpack.c.b16 %v1633, %v1631
        %v1662 = vpack.c.b16 %v1636, %v1634
        %v1663 = vpack.c.b16 %v1637, %v1635
        %v1664 = vpack.c.b16 %v1640, %v1638
        %v1665 = vpack.c.b16 %v1641, %v1639
        %v1666 = vpack.c.b16 %v1644, %v1642
        %v1667 = vpack.c.b16 %v1645, %v1643
        %v1668 = vpack.c.b16 %v1648, %v1646
        %v1669 = vpack.c.b16 %v1649, %v1647
        %v1670 = vpack.c.b16 %v1652, %v1650
        %v1671 = vpack.c.b16 %v1653, %v1651
        %v1672 = vpack.c.b16 %v1656, %v1654
        %v1673 = vpack.c.b16 %v1657, %v1655
        %1690 = vmatpush.bf16.msra.mxu0 %v1672
        %1691 = vmatpush.bf16.msra.mxu0 %v1670
        %1692 = vmatpush.bf16.msra.mxu0 %v1668
        %1693 = vmatpush.bf16.msra.mxu0 %v1666
        %1694 = vmatpush.bf16.msra.mxu0 %v1664
        %1695 = vmatpush.bf16.msra.mxu0 %v1662
        %1696 = vmatpush.bf16.msra.mxu0 %v1660
        %1697 = vmatpush.bf16.msra.mxu0 %v1658
        %1698 = vmatmul.bf16.gmra.mxu0 %v1592
        %v1699 = vpop.f32.mrf.mxu0
        %v1700 = vadd.f32 0.0, %v1699
        %v1701 = vpop.f32.mrf.mxu0
        %1702 = vdwg.mxu0
        %1703 = vmatpush.bf16.msra.mxu0 %v1673
        %1704 = vmatpush.bf16.msra.mxu0 %v1671
        %1705 = vmatpush.bf16.msra.mxu0 %v1669
        %1706 = vmatpush.bf16.msra.mxu0 %v1667
        %1707 = vmatpush.bf16.msra.mxu0 %v1665
        %1708 = vmatpush.bf16.msra.mxu0 %v1663
        %1709 = vmatpush.bf16.msra.mxu0 %v1661
        %1710 = vmatpush.bf16.msra.mxu0 %v1659
        %1711 = vmatmul.bf16.gmra.mxu0 %v1592
        %v1712 = vpop.f32.mrf.mxu0
        %v1713 = vadd.f32 0.0, %v1712
        %v1714 = vpop.f32.mrf.mxu0
        %1715 = vdwg.mxu0
        %v1716 = vadd.f32 %v1575, %v1700
        %v1717 = vadd.f32 %v1588, %v1713
        %v1718 = vmax.f32 %v1716, %v1717
        %v1719 = vld [vmem:[#allocation14] sm:$0x1]
        %v1721 = vperm.slane %v1719, 0
        %v1723 = vadd.f32 %v1718, %v1721
        %v1724 = vmax.f32 %v1723, 0.0
        %1725 = vst [vmem:[#allocation7] sm:$0xff] %v1724
        %v1726 = vld [vmem:[#allocation7] ss:$8 sm:$0x1]
        %s1727 = scalar_lea.vmem [#allocation7], 1
        %v1728 = vld [vmem:[%s1727] ss:$8 sm:$0x1]
        %v1729 = vmax.f32 %v1726, %v1728
        %v1730 = vpack.c.bf16 %v1729, %v1729
        %v1731 = vld [vmem:[%s7] sm:$0xff]
        %v1732 = vld [vmem:[%s7 + $0x8] sm:$0xff]
        %v1733 = vld [vmem:[%s7 + $0x10] sm:$0xff]
        %v1734 = vld [vmem:[%s7 + $0x18] sm:$0xff]
        %v1735 = vld [vmem:[%s7 + $0x20] sm:$0xff]
        %v1736 = vld [vmem:[%s7 + $0x28] sm:$0xff]
        %v1737 = vld [vmem:[%s7 + $0x30] sm:$0xff]
        %v1738 = vld [vmem:[%s7 + $0x38] sm:$0xff]
        %v1739 = vld [vmem:[%s7 + $0x40] sm:$0xff]
        %v1740 = vld [vmem:[%s7 + $0x48] sm:$0xff]
        %v1741 = vld [vmem:[%s7 + $0x50] sm:$0xff]
        %v1742 = vld [vmem:[%s7 + $0x58] sm:$0xff]
        %v1743 = vld [vmem:[%s7 + $0x60] sm:$0xff]
        %v1744 = vld [vmem:[%s7 + $0x68] sm:$0xff]
        %v1745 = vld [vmem:[%s7 + $0x70] sm:$0xff]
        %v1746 = vld [vmem:[%s7 + $0x78] sm:$0xff]
        %v1747 = vld [vmem:[%s7 + $0x80] sm:$0xff]
        %v1748 = vld [vmem:[%s7 + $0x88] sm:$0xff]
        %v1749 = vld [vmem:[%s7 + $0x90] sm:$0xff]
        %v1750 = vld [vmem:[%s7 + $0x98] sm:$0xff]
        %v1751 = vld [vmem:[%s7 + $0xa0] sm:$0xff]
        %v1752 = vld [vmem:[%s7 + $0xa8] sm:$0xff]
        %v1753 = vld [vmem:[%s7 + $0xb0] sm:$0xff]
        %v1754 = vld [vmem:[%s7 + $0xb8] sm:$0xff]
        %v1755 = vld [vmem:[%s7 + $0xc0] sm:$0xff]
        %v1756 = vld [vmem:[%s7 + $0xc8] sm:$0xff]
        %v1757 = vld [vmem:[%s7 + $0xd0] sm:$0xff]
        %v1758 = vld [vmem:[%s7 + $0xd8] sm:$0xff]
        %v1759 = vld [vmem:[%s7 + $0xe0] sm:$0xff]
        %v1760 = vld [vmem:[%s7 + $0xe8] sm:$0xff]
        %v1761 = vld [vmem:[%s7 + $0xf0] sm:$0xff]
        %v1762 = vld [vmem:[%s7 + $0xf8] sm:$0xff]
        %s1763 = scalar_lea.vmem [#allocation7], 2
        %v1764 = vld [vmem:[%s1763] ss:$8 sm:$0x1]
        %s1765 = scalar_lea.vmem [#allocation7], 3
        %v1766 = vld [vmem:[%s1765] ss:$8 sm:$0x1]
        %v1767 = vmax.f32 %v1764, %v1766
        %v1768 = vpack.c.bf16 %v1767, %v1767
        %s1769 = scalar_lea.vmem %s7, 256
        %v1770 = vld [vmem:[%s1769] sm:$0xff]
        %v1771 = vld [vmem:[%s1769 + $0x8] sm:$0xff]
        %v1772 = vld [vmem:[%s1769 + $0x10] sm:$0xff]
        %v1773 = vld [vmem:[%s1769 + $0x18] sm:$0xff]
        %v1774 = vld [vmem:[%s1769 + $0x20] sm:$0xff]
        %v1775 = vld [vmem:[%s1769 + $0x28] sm:$0xff]
        %v1776 = vld [vmem:[%s1769 + $0x30] sm:$0xff]
        %v1777 = vld [vmem:[%s1769 + $0x38] sm:$0xff]
        %v1778 = vld [vmem:[%s1769 + $0x40] sm:$0xff]
        %v1779 = vld [vmem:[%s1769 + $0x48] sm:$0xff]
        %v1780 = vld [vmem:[%s1769 + $0x50] sm:$0xff]
        %v1781 = vld [vmem:[%s1769 + $0x58] sm:$0xff]
        %v1782 = vld [vmem:[%s1769 + $0x60] sm:$0xff]
        %v1783 = vld [vmem:[%s1769 + $0x68] sm:$0xff]
        %v1784 = vld [vmem:[%s1769 + $0x70] sm:$0xff]
        %v1785 = vld [vmem:[%s1769 + $0x78] sm:$0xff]
        %v1786 = vld [vmem:[%s1769 + $0x80] sm:$0xff]
        %v1787 = vld [vmem:[%s1769 + $0x88] sm:$0xff]
        %v1788 = vld [vmem:[%s1769 + $0x90] sm:$0xff]
        %v1789 = vld [vmem:[%s1769 + $0x98] sm:$0xff]
        %v1790 = vld [vmem:[%s1769 + $0xa0] sm:$0xff]
        %v1791 = vld [vmem:[%s1769 + $0xa8] sm:$0xff]
        %v1792 = vld [vmem:[%s1769 + $0xb0] sm:$0xff]
        %v1793 = vld [vmem:[%s1769 + $0xb8] sm:$0xff]
        %v1794 = vld [vmem:[%s1769 + $0xc0] sm:$0xff]
        %v1795 = vld [vmem:[%s1769 + $0xc8] sm:$0xff]
        %v1796 = vld [vmem:[%s1769 + $0xd0] sm:$0xff]
        %v1797 = vld [vmem:[%s1769 + $0xd8] sm:$0xff]
        %v1798 = vld [vmem:[%s1769 + $0xe0] sm:$0xff]
        %v1799 = vld [vmem:[%s1769 + $0xe8] sm:$0xff]
        %v1800 = vld [vmem:[%s1769 + $0xf0] sm:$0xff]
        %v1801 = vld [vmem:[%s1769 + $0xf8] sm:$0xff]
        %v1834 = vunpack.c.l.b16 %v1770
        %v1835 = vunpack.c.h.b16 %v1770
        %v1836 = vunpack.c.l.b16 %v1771
        %v1837 = vunpack.c.h.b16 %v1771
        %v1838 = vunpack.c.l.b16 %v1772
        %v1839 = vunpack.c.h.b16 %v1772
        %v1840 = vunpack.c.l.b16 %v1773
        %v1841 = vunpack.c.h.b16 %v1773
        %v1842 = vunpack.c.l.b16 %v1774
        %v1843 = vunpack.c.h.b16 %v1774
        %v1844 = vunpack.c.l.b16 %v1775
        %v1845 = vunpack.c.h.b16 %v1775
        %v1846 = vunpack.c.l.b16 %v1776
        %v1847 = vunpack.c.h.b16 %v1776
        %v1848 = vunpack.c.l.b16 %v1777
        %v1849 = vunpack.c.h.b16 %v1777
        %v1850 = vunpack.c.l.b16 %v1778
        %v1851 = vunpack.c.h.b16 %v1778
        %v1852 = vunpack.c.l.b16 %v1779
        %v1853 = vunpack.c.h.b16 %v1779
        %v1854 = vunpack.c.l.b16 %v1780
        %v1855 = vunpack.c.h.b16 %v1780
        %v1856 = vunpack.c.l.b16 %v1781
        %v1857 = vunpack.c.h.b16 %v1781
        %v1858 = vunpack.c.l.b16 %v1782
        %v1859 = vunpack.c.h.b16 %v1782
        %v1860 = vunpack.c.l.b16 %v1783
        %v1861 = vunpack.c.h.b16 %v1783
        %v1862 = vunpack.c.l.b16 %v1784
        %v1863 = vunpack.c.h.b16 %v1784
        %v1864 = vunpack.c.l.b16 %v1785
        %v1865 = vunpack.c.h.b16 %v1785
        %v1866 = vunpack.c.l.b16 %v1786
        %v1867 = vunpack.c.h.b16 %v1786
        %v1868 = vunpack.c.l.b16 %v1787
        %v1869 = vunpack.c.h.b16 %v1787
        %v1870 = vunpack.c.l.b16 %v1788
        %v1871 = vunpack.c.h.b16 %v1788
        %v1872 = vunpack.c.l.b16 %v1789
        %v1873 = vunpack.c.h.b16 %v1789
        %v1874 = vunpack.c.l.b16 %v1790
        %v1875 = vunpack.c.h.b16 %v1790
        %v1876 = vunpack.c.l.b16 %v1791
        %v1877 = vunpack.c.h.b16 %v1791
        %v1878 = vunpack.c.l.b16 %v1792
        %v1879 = vunpack.c.h.b16 %v1792
        %v1880 = vunpack.c.l.b16 %v1793
        %v1881 = vunpack.c.h.b16 %v1793
        %v1882 = vunpack.c.l.b16 %v1794
        %v1883 = vunpack.c.h.b16 %v1794
        %v1884 = vunpack.c.l.b16 %v1795
        %v1885 = vunpack.c.h.b16 %v1795
        %v1886 = vunpack.c.l.b16 %v1796
        %v1887 = vunpack.c.h.b16 %v1796
        %v1888 = vunpack.c.l.b16 %v1797
        %v1889 = vunpack.c.h.b16 %v1797
        %v1890 = vunpack.c.l.b16 %v1798
        %v1891 = vunpack.c.h.b16 %v1798
        %v1892 = vunpack.c.l.b16 %v1799
        %v1893 = vunpack.c.h.b16 %v1799
        %v1894 = vunpack.c.l.b16 %v1800
        %v1895 = vunpack.c.h.b16 %v1800
        %v1896 = vunpack.c.l.b16 %v1801
        %v1897 = vunpack.c.h.b16 %v1801
        %v1898 = vpack.c.b16 %v1838, %v1834
        %v1899 = vpack.c.b16 %v1839, %v1835
        %v1900 = vpack.c.b16 %v1840, %v1836
        %v1901 = vpack.c.b16 %v1841, %v1837
        %v1902 = vpack.c.b16 %v1846, %v1842
        %v1903 = vpack.c.b16 %v1847, %v1843
        %v1904 = vpack.c.b16 %v1848, %v1844
        %v1905 = vpack.c.b16 %v1849, %v1845
        %v1906 = vpack.c.b16 %v1854, %v1850
        %v1907 = vpack.c.b16 %v1855, %v1851
        %v1908 = vpack.c.b16 %v1856, %v1852
        %v1909 = vpack.c.b16 %v1857, %v1853
        %v1910 = vpack.c.b16 %v1862, %v1858
        %v1911 = vpack.c.b16 %v1863, %v1859
        %v1912 = vpack.c.b16 %v1864, %v1860
        %v1913 = vpack.c.b16 %v1865, %v1861
        %v1914 = vpack.c.b16 %v1870, %v1866
        %v1915 = vpack.c.b16 %v1871, %v1867
        %v1916 = vpack.c.b16 %v1872, %v1868
        %v1917 = vpack.c.b16 %v1873, %v1869
        %v1918 = vpack.c.b16 %v1878, %v1874
        %v1919 = vpack.c.b16 %v1879, %v1875
        %v1920 = vpack.c.b16 %v1880, %v1876
        %v1921 = vpack.c.b16 %v1881, %v1877
        %v1922 = vpack.c.b16 %v1886, %v1882
        %v1923 = vpack.c.b16 %v1887, %v1883
        %v1924 = vpack.c.b16 %v1888, %v1884
        %v1925 = vpack.c.b16 %v1889, %v1885
        %v1926 = vpack.c.b16 %v1894, %v1890
        %v1927 = vpack.c.b16 %v1895, %v1891
        %v1928 = vpack.c.b16 %v1896, %v1892
        %v1929 = vpack.c.b16 %v1897, %v1893
        %1962 = vmatpush.bf16.msra.mxu0 %v1926
        %1963 = vmatpush.bf16.msra.mxu0 %v1922
        %1964 = vmatpush.bf16.msra.mxu0 %v1918
        %1965 = vmatpush.bf16.msra.mxu0 %v1914
        %1966 = vmatpush.bf16.msra.mxu0 %v1910
        %1967 = vmatpush.bf16.msra.mxu0 %v1906
        %1968 = vmatpush.bf16.msra.mxu0 %v1902
        %1969 = vmatpush.bf16.msra.mxu0 %v1898
        %1970 = vmatmul.bf16.gmra.mxu0 %v1768
        %v1971 = vpop.f32.mrf.mxu0
        %v1972 = vadd.f32 0.0, %v1971
        %v1973 = vpop.f32.mrf.mxu0
        %1974 = vdwg.mxu0
        %1975 = vmatpush.bf16.msra.mxu0 %v1927
        %1976 = vmatpush.bf16.msra.mxu0 %v1923
        %1977 = vmatpush.bf16.msra.mxu0 %v1919
        %1978 = vmatpush.bf16.msra.mxu0 %v1915
        %1979 = vmatpush.bf16.msra.mxu0 %v1911
        %1980 = vmatpush.bf16.msra.mxu0 %v1907
        %1981 = vmatpush.bf16.msra.mxu0 %v1903
        %1982 = vmatpush.bf16.msra.mxu0 %v1899
        %1983 = vmatmul.bf16.gmra.mxu0 %v1768
        %v1984 = vpop.f32.mrf.mxu0
        %v1985 = vadd.f32 0.0, %v1984
        %v1986 = vpop.f32.mrf.mxu0
        %1987 = vdwg.mxu0
        %1988 = vmatpush.bf16.msra.mxu0 %v1928
        %1989 = vmatpush.bf16.msra.mxu0 %v1924
        %1990 = vmatpush.bf16.msra.mxu0 %v1920
        %1991 = vmatpush.bf16.msra.mxu0 %v1916
        %1992 = vmatpush.bf16.msra.mxu0 %v1912
        %1993 = vmatpush.bf16.msra.mxu0 %v1908
        %1994 = vmatpush.bf16.msra.mxu0 %v1904
        %1995 = vmatpush.bf16.msra.mxu0 %v1900
        %1996 = vmatmul.bf16.gmra.mxu0 %v1768
        %v1997 = vpop.f32.mrf.mxu0
        %v1998 = vadd.f32 0.0, %v1997
        %v1999 = vpop.f32.mrf.mxu0
        %2000 = vdwg.mxu0
        %2001 = vmatpush.bf16.msra.mxu0 %v1929
        %2002 = vmatpush.bf16.msra.mxu0 %v1925
        %2003 = vmatpush.bf16.msra.mxu0 %v1921
        %2004 = vmatpush.bf16.msra.mxu0 %v1917
        %2005 = vmatpush.bf16.msra.mxu0 %v1913
        %2006 = vmatpush.bf16.msra.mxu0 %v1909
        %2007 = vmatpush.bf16.msra.mxu0 %v1905
        %2008 = vmatpush.bf16.msra.mxu0 %v1901
        %2009 = vmatmul.bf16.gmra.mxu0 %v1768
        %v2010 = vpop.f32.mrf.mxu0
        %v2011 = vadd.f32 0.0, %v2010
        %v2012 = vpop.f32.mrf.mxu0
        %2013 = vdwg.mxu0
        %v2046 = vunpack.c.l.b16 %v1731
        %v2047 = vunpack.c.h.b16 %v1731
        %v2048 = vunpack.c.l.b16 %v1732
        %v2049 = vunpack.c.h.b16 %v1732
        %v2050 = vunpack.c.l.b16 %v1733
        %v2051 = vunpack.c.h.b16 %v1733
        %v2052 = vunpack.c.l.b16 %v1734
        %v2053 = vunpack.c.h.b16 %v1734
        %v2054 = vunpack.c.l.b16 %v1735
        %v2055 = vunpack.c.h.b16 %v1735
        %v2056 = vunpack.c.l.b16 %v1736
        %v2057 = vunpack.c.h.b16 %v1736
        %v2058 = vunpack.c.l.b16 %v1737
        %v2059 = vunpack.c.h.b16 %v1737
        %v2060 = vunpack.c.l.b16 %v1738
        %v2061 = vunpack.c.h.b16 %v1738
        %v2062 = vunpack.c.l.b16 %v1739
        %v2063 = vunpack.c.h.b16 %v1739
        %v2064 = vunpack.c.l.b16 %v1740
        %v2065 = vunpack.c.h.b16 %v1740
        %v2066 = vunpack.c.l.b16 %v1741
        %v2067 = vunpack.c.h.b16 %v1741
        %v2068 = vunpack.c.l.b16 %v1742
        %v2069 = vunpack.c.h.b16 %v1742
        %v2070 = vunpack.c.l.b16 %v1743
        %v2071 = vunpack.c.h.b16 %v1743
        %v2072 = vunpack.c.l.b16 %v1744
        %v2073 = vunpack.c.h.b16 %v1744
        %v2074 = vunpack.c.l.b16 %v1745
        %v2075 = vunpack.c.h.b16 %v1745
        %v2076 = vunpack.c.l.b16 %v1746
        %v2077 = vunpack.c.h.b16 %v1746
        %v2078 = vunpack.c.l.b16 %v1747
        %v2079 = vunpack.c.h.b16 %v1747
        %v2080 = vunpack.c.l.b16 %v1748
        %v2081 = vunpack.c.h.b16 %v1748
        %v2082 = vunpack.c.l.b16 %v1749
        %v2083 = vunpack.c.h.b16 %v1749
        %v2084 = vunpack.c.l.b16 %v1750
        %v2085 = vunpack.c.h.b16 %v1750
        %v2086 = vunpack.c.l.b16 %v1751
        %v2087 = vunpack.c.h.b16 %v1751
        %v2088 = vunpack.c.l.b16 %v1752
        %v2089 = vunpack.c.h.b16 %v1752
        %v2090 = vunpack.c.l.b16 %v1753
        %v2091 = vunpack.c.h.b16 %v1753
        %v2092 = vunpack.c.l.b16 %v1754
        %v2093 = vunpack.c.h.b16 %v1754
        %v2094 = vunpack.c.l.b16 %v1755
        %v2095 = vunpack.c.h.b16 %v1755
        %v2096 = vunpack.c.l.b16 %v1756
        %v2097 = vunpack.c.h.b16 %v1756
        %v2098 = vunpack.c.l.b16 %v1757
        %v2099 = vunpack.c.h.b16 %v1757
        %v2100 = vunpack.c.l.b16 %v1758
        %v2101 = vunpack.c.h.b16 %v1758
        %v2102 = vunpack.c.l.b16 %v1759
        %v2103 = vunpack.c.h.b16 %v1759
        %v2104 = vunpack.c.l.b16 %v1760
        %v2105 = vunpack.c.h.b16 %v1760
        %v2106 = vunpack.c.l.b16 %v1761
        %v2107 = vunpack.c.h.b16 %v1761
        %v2108 = vunpack.c.l.b16 %v1762
        %v2109 = vunpack.c.h.b16 %v1762
        %v2110 = vpack.c.b16 %v2050, %v2046
        %v2111 = vpack.c.b16 %v2051, %v2047
        %v2112 = vpack.c.b16 %v2052, %v2048
        %v2113 = vpack.c.b16 %v2053, %v2049
        %v2114 = vpack.c.b16 %v2058, %v2054
        %v2115 = vpack.c.b16 %v2059, %v2055
        %v2116 = vpack.c.b16 %v2060, %v2056
        %v2117 = vpack.c.b16 %v2061, %v2057
        %v2118 = vpack.c.b16 %v2066, %v2062
        %v2119 = vpack.c.b16 %v2067, %v2063
        %v2120 = vpack.c.b16 %v2068, %v2064
        %v2121 = vpack.c.b16 %v2069, %v2065
        %v2122 = vpack.c.b16 %v2074, %v2070
        %v2123 = vpack.c.b16 %v2075, %v2071
        %v2124 = vpack.c.b16 %v2076, %v2072
        %v2125 = vpack.c.b16 %v2077, %v2073
        %v2126 = vpack.c.b16 %v2082, %v2078
        %v2127 = vpack.c.b16 %v2083, %v2079
        %v2128 = vpack.c.b16 %v2084, %v2080
        %v2129 = vpack.c.b16 %v2085, %v2081
        %v2130 = vpack.c.b16 %v2090, %v2086
        %v2131 = vpack.c.b16 %v2091, %v2087
        %v2132 = vpack.c.b16 %v2092, %v2088
        %v2133 = vpack.c.b16 %v2093, %v2089
        %v2134 = vpack.c.b16 %v2098, %v2094
        %v2135 = vpack.c.b16 %v2099, %v2095
        %v2136 = vpack.c.b16 %v2100, %v2096
        %v2137 = vpack.c.b16 %v2101, %v2097
        %v2138 = vpack.c.b16 %v2106, %v2102
        %v2139 = vpack.c.b16 %v2107, %v2103
        %v2140 = vpack.c.b16 %v2108, %v2104
        %v2141 = vpack.c.b16 %v2109, %v2105
        %2174 = vmatpush.bf16.msra.mxu0 %v2138
        %2175 = vmatpush.bf16.msra.mxu0 %v2134
        %2176 = vmatpush.bf16.msra.mxu0 %v2130
        %2177 = vmatpush.bf16.msra.mxu0 %v2126
        %2178 = vmatpush.bf16.msra.mxu0 %v2122
        %2179 = vmatpush.bf16.msra.mxu0 %v2118
        %2180 = vmatpush.bf16.msra.mxu0 %v2114
        %2181 = vmatpush.bf16.msra.mxu0 %v2110
        %2182 = vmatmul.bf16.gmra.mxu0 %v1730
        %v2183 = vpop.f32.mrf.mxu0
        %v2184 = vadd.f32 %v1972, %v2183
        %v2185 = vpop.f32.mrf.mxu0
        %2186 = vdwg.mxu0
        %2187 = vmatpush.bf16.msra.mxu0 %v2139
        %2188 = vmatpush.bf16.msra.mxu0 %v2135
        %2189 = vmatpush.bf16.msra.mxu0 %v2131
        %2190 = vmatpush.bf16.msra.mxu0 %v2127
        %2191 = vmatpush.bf16.msra.mxu0 %v2123
        %2192 = vmatpush.bf16.msra.mxu0 %v2119
        %2193 = vmatpush.bf16.msra.mxu0 %v2115
        %2194 = vmatpush.bf16.msra.mxu0 %v2111
        %2195 = vmatmul.bf16.gmra.mxu0 %v1730
        %v2196 = vpop.f32.mrf.mxu0
        %v2197 = vadd.f32 %v1985, %v2196
        %v2198 = vpop.f32.mrf.mxu0
        %2199 = vdwg.mxu0
        %2200 = vmatpush.bf16.msra.mxu0 %v2140
        %2201 = vmatpush.bf16.msra.mxu0 %v2136
        %2202 = vmatpush.bf16.msra.mxu0 %v2132
        %2203 = vmatpush.bf16.msra.mxu0 %v2128
        %2204 = vmatpush.bf16.msra.mxu0 %v2124
        %2205 = vmatpush.bf16.msra.mxu0 %v2120
        %2206 = vmatpush.bf16.msra.mxu0 %v2116
        %2207 = vmatpush.bf16.msra.mxu0 %v2112
        %2208 = vmatmul.bf16.gmra.mxu0 %v1730
        %v2209 = vpop.f32.mrf.mxu0
        %v2210 = vadd.f32 %v1998, %v2209
        %v2211 = vpop.f32.mrf.mxu0
        %2212 = vdwg.mxu0
        %2213 = vmatpush.bf16.msra.mxu0 %v2141
        %2214 = vmatpush.bf16.msra.mxu0 %v2137
        %2215 = vmatpush.bf16.msra.mxu0 %v2133
        %2216 = vmatpush.bf16.msra.mxu0 %v2129
        %2217 = vmatpush.bf16.msra.mxu0 %v2125
        %2218 = vmatpush.bf16.msra.mxu0 %v2121
        %2219 = vmatpush.bf16.msra.mxu0 %v2117
        %2220 = vmatpush.bf16.msra.mxu0 %v2113
        %2221 = vmatmul.bf16.gmra.mxu0 %v1730
        %v2222 = vpop.f32.mrf.mxu0
        %v2223 = vadd.f32 %v2011, %v2222
        %v2224 = vpop.f32.mrf.mxu0
        %2225 = vdwg.mxu0
        %s2226 = scalar_lea.vmem [#allocation7], 4
        %v2227 = vld [vmem:[%s2226] ss:$8 sm:$0x1]
        %s2228 = scalar_lea.vmem [#allocation7], 5
        %v2229 = vld [vmem:[%s2228] ss:$8 sm:$0x1]
        %v2230 = vmax.f32 %v2227, %v2229
        %v2231 = vpack.c.bf16 %v2230, %v2230
        %s2232 = scalar_lea.vmem %s7, 512
        %v2233 = vld [vmem:[%s2232] sm:$0xff]
        %v2234 = vld [vmem:[%s2232 + $0x8] sm:$0xff]
        %v2235 = vld [vmem:[%s2232 + $0x10] sm:$0xff]
        %v2236 = vld [vmem:[%s2232 + $0x18] sm:$0xff]
        %v2237 = vld [vmem:[%s2232 + $0x20] sm:$0xff]
        %v2238 = vld [vmem:[%s2232 + $0x28] sm:$0xff]
        %v2239 = vld [vmem:[%s2232 + $0x30] sm:$0xff]
        %v2240 = vld [vmem:[%s2232 + $0x38] sm:$0xff]
        %v2241 = vld [vmem:[%s2232 + $0x40] sm:$0xff]
        %v2242 = vld [vmem:[%s2232 + $0x48] sm:$0xff]
        %v2243 = vld [vmem:[%s2232 + $0x50] sm:$0xff]
        %v2244 = vld [vmem:[%s2232 + $0x58] sm:$0xff]
        %v2245 = vld [vmem:[%s2232 + $0x60] sm:$0xff]
        %v2246 = vld [vmem:[%s2232 + $0x68] sm:$0xff]
        %v2247 = vld [vmem:[%s2232 + $0x70] sm:$0xff]
        %v2248 = vld [vmem:[%s2232 + $0x78] sm:$0xff]
        %v2249 = vld [vmem:[%s2232 + $0x80] sm:$0xff]
        %v2250 = vld [vmem:[%s2232 + $0x88] sm:$0xff]
        %v2251 = vld [vmem:[%s2232 + $0x90] sm:$0xff]
        %v2252 = vld [vmem:[%s2232 + $0x98] sm:$0xff]
        %v2253 = vld [vmem:[%s2232 + $0xa0] sm:$0xff]
        %v2254 = vld [vmem:[%s2232 + $0xa8] sm:$0xff]
        %v2255 = vld [vmem:[%s2232 + $0xb0] sm:$0xff]
        %v2256 = vld [vmem:[%s2232 + $0xb8] sm:$0xff]
        %v2257 = vld [vmem:[%s2232 + $0xc0] sm:$0xff]
        %v2258 = vld [vmem:[%s2232 + $0xc8] sm:$0xff]
        %v2259 = vld [vmem:[%s2232 + $0xd0] sm:$0xff]
        %v2260 = vld [vmem:[%s2232 + $0xd8] sm:$0xff]
        %v2261 = vld [vmem:[%s2232 + $0xe0] sm:$0xff]
        %v2262 = vld [vmem:[%s2232 + $0xe8] sm:$0xff]
        %v2263 = vld [vmem:[%s2232 + $0xf0] sm:$0xff]
        %v2264 = vld [vmem:[%s2232 + $0xf8] sm:$0xff]
        %v2297 = vunpack.c.l.b16 %v2233
        %v2298 = vunpack.c.h.b16 %v2233
        %v2299 = vunpack.c.l.b16 %v2234
        %v2300 = vunpack.c.h.b16 %v2234
        %v2301 = vunpack.c.l.b16 %v2235
        %v2302 = vunpack.c.h.b16 %v2235
        %v2303 = vunpack.c.l.b16 %v2236
        %v2304 = vunpack.c.h.b16 %v2236
        %v2305 = vunpack.c.l.b16 %v2237
        %v2306 = vunpack.c.h.b16 %v2237
        %v2307 = vunpack.c.l.b16 %v2238
        %v2308 = vunpack.c.h.b16 %v2238
        %v2309 = vunpack.c.l.b16 %v2239
        %v2310 = vunpack.c.h.b16 %v2239
        %v2311 = vunpack.c.l.b16 %v2240
        %v2312 = vunpack.c.h.b16 %v2240
        %v2313 = vunpack.c.l.b16 %v2241
        %v2314 = vunpack.c.h.b16 %v2241
        %v2315 = vunpack.c.l.b16 %v2242
        %v2316 = vunpack.c.h.b16 %v2242
        %v2317 = vunpack.c.l.b16 %v2243
        %v2318 = vunpack.c.h.b16 %v2243
        %v2319 = vunpack.c.l.b16 %v2244
        %v2320 = vunpack.c.h.b16 %v2244
        %v2321 = vunpack.c.l.b16 %v2245
        %v2322 = vunpack.c.h.b16 %v2245
        %v2323 = vunpack.c.l.b16 %v2246
        %v2324 = vunpack.c.h.b16 %v2246
        %v2325 = vunpack.c.l.b16 %v2247
        %v2326 = vunpack.c.h.b16 %v2247
        %v2327 = vunpack.c.l.b16 %v2248
        %v2328 = vunpack.c.h.b16 %v2248
        %v2329 = vunpack.c.l.b16 %v2249
        %v2330 = vunpack.c.h.b16 %v2249
        %v2331 = vunpack.c.l.b16 %v2250
        %v2332 = vunpack.c.h.b16 %v2250
        %v2333 = vunpack.c.l.b16 %v2251
        %v2334 = vunpack.c.h.b16 %v2251
        %v2335 = vunpack.c.l.b16 %v2252
        %v2336 = vunpack.c.h.b16 %v2252
        %v2337 = vunpack.c.l.b16 %v2253
        %v2338 = vunpack.c.h.b16 %v2253
        %v2339 = vunpack.c.l.b16 %v2254
        %v2340 = vunpack.c.h.b16 %v2254
        %v2341 = vunpack.c.l.b16 %v2255
        %v2342 = vunpack.c.h.b16 %v2255
        %v2343 = vunpack.c.l.b16 %v2256
        %v2344 = vunpack.c.h.b16 %v2256
        %v2345 = vunpack.c.l.b16 %v2257
        %v2346 = vunpack.c.h.b16 %v2257
        %v2347 = vunpack.c.l.b16 %v2258
        %v2348 = vunpack.c.h.b16 %v2258
        %v2349 = vunpack.c.l.b16 %v2259
        %v2350 = vunpack.c.h.b16 %v2259
        %v2351 = vunpack.c.l.b16 %v2260
        %v2352 = vunpack.c.h.b16 %v2260
        %v2353 = vunpack.c.l.b16 %v2261
        %v2354 = vunpack.c.h.b16 %v2261
        %v2355 = vunpack.c.l.b16 %v2262
        %v2356 = vunpack.c.h.b16 %v2262
        %v2357 = vunpack.c.l.b16 %v2263
        %v2358 = vunpack.c.h.b16 %v2263
        %v2359 = vunpack.c.l.b16 %v2264
        %v2360 = vunpack.c.h.b16 %v2264
        %v2361 = vpack.c.b16 %v2301, %v2297
        %v2362 = vpack.c.b16 %v2302, %v2298
        %v2363 = vpack.c.b16 %v2303, %v2299
        %v2364 = vpack.c.b16 %v2304, %v2300
        %v2365 = vpack.c.b16 %v2309, %v2305
        %v2366 = vpack.c.b16 %v2310, %v2306
        %v2367 = vpack.c.b16 %v2311, %v2307
        %v2368 = vpack.c.b16 %v2312, %v2308
        %v2369 = vpack.c.b16 %v2317, %v2313
        %v2370 = vpack.c.b16 %v2318, %v2314
        %v2371 = vpack.c.b16 %v2319, %v2315
        %v2372 = vpack.c.b16 %v2320, %v2316
        %v2373 = vpack.c.b16 %v2325, %v2321
        %v2374 = vpack.c.b16 %v2326, %v2322
        %v2375 = vpack.c.b16 %v2327, %v2323
        %v2376 = vpack.c.b16 %v2328, %v2324
        %v2377 = vpack.c.b16 %v2333, %v2329
        %v2378 = vpack.c.b16 %v2334, %v2330
        %v2379 = vpack.c.b16 %v2335, %v2331
        %v2380 = vpack.c.b16 %v2336, %v2332
        %v2381 = vpack.c.b16 %v2341, %v2337
        %v2382 = vpack.c.b16 %v2342, %v2338
        %v2383 = vpack.c.b16 %v2343, %v2339
        %v2384 = vpack.c.b16 %v2344, %v2340
        %v2385 = vpack.c.b16 %v2349, %v2345
        %v2386 = vpack.c.b16 %v2350, %v2346
        %v2387 = vpack.c.b16 %v2351, %v2347
        %v2388 = vpack.c.b16 %v2352, %v2348
        %v2389 = vpack.c.b16 %v2357, %v2353
        %v2390 = vpack.c.b16 %v2358, %v2354
        %v2391 = vpack.c.b16 %v2359, %v2355
        %v2392 = vpack.c.b16 %v2360, %v2356
        %2425 = vmatpush.bf16.msra.mxu0 %v2389
        %2426 = vmatpush.bf16.msra.mxu0 %v2385
        %2427 = vmatpush.bf16.msra.mxu0 %v2381
        %2428 = vmatpush.bf16.msra.mxu0 %v2377
        %2429 = vmatpush.bf16.msra.mxu0 %v2373
        %2430 = vmatpush.bf16.msra.mxu0 %v2369
        %2431 = vmatpush.bf16.msra.mxu0 %v2365
        %2432 = vmatpush.bf16.msra.mxu0 %v2361
        %2433 = vmatmul.bf16.gmra.mxu0 %v2231
        %v2434 = vpop.f32.mrf.mxu0
        %v2435 = vadd.f32 0.0, %v2434
        %v2436 = vpop.f32.mrf.mxu0
        %2437 = vdwg.mxu0
        %2438 = vmatpush.bf16.msra.mxu0 %v2390
        %2439 = vmatpush.bf16.msra.mxu0 %v2386
        %2440 = vmatpush.bf16.msra.mxu0 %v2382
        %2441 = vmatpush.bf16.msra.mxu0 %v2378
        %2442 = vmatpush.bf16.msra.mxu0 %v2374
        %2443 = vmatpush.bf16.msra.mxu0 %v2370
        %2444 = vmatpush.bf16.msra.mxu0 %v2366
        %2445 = vmatpush.bf16.msra.mxu0 %v2362
        %2446 = vmatmul.bf16.gmra.mxu0 %v2231
        %v2447 = vpop.f32.mrf.mxu0
        %v2448 = vadd.f32 0.0, %v2447
        %v2449 = vpop.f32.mrf.mxu0
        %2450 = vdwg.mxu0
        %2451 = vmatpush.bf16.msra.mxu0 %v2391
        %2452 = vmatpush.bf16.msra.mxu0 %v2387
        %2453 = vmatpush.bf16.msra.mxu0 %v2383
        %2454 = vmatpush.bf16.msra.mxu0 %v2379
        %2455 = vmatpush.bf16.msra.mxu0 %v2375
        %2456 = vmatpush.bf16.msra.mxu0 %v2371
        %2457 = vmatpush.bf16.msra.mxu0 %v2367
        %2458 = vmatpush.bf16.msra.mxu0 %v2363
        %2459 = vmatmul.bf16.gmra.mxu0 %v2231
        %v2460 = vpop.f32.mrf.mxu0
        %v2461 = vadd.f32 0.0, %v2460
        %v2462 = vpop.f32.mrf.mxu0
        %2463 = vdwg.mxu0
        %2464 = vmatpush.bf16.msra.mxu0 %v2392
        %2465 = vmatpush.bf16.msra.mxu0 %v2388
        %2466 = vmatpush.bf16.msra.mxu0 %v2384
        %2467 = vmatpush.bf16.msra.mxu0 %v2380
        %2468 = vmatpush.bf16.msra.mxu0 %v2376
        %2469 = vmatpush.bf16.msra.mxu0 %v2372
        %2470 = vmatpush.bf16.msra.mxu0 %v2368
        %2471 = vmatpush.bf16.msra.mxu0 %v2364
        %2472 = vmatmul.bf16.gmra.mxu0 %v2231
        %v2473 = vpop.f32.mrf.mxu0
        %v2474 = vadd.f32 0.0, %v2473
        %v2475 = vpop.f32.mrf.mxu0
        %2476 = vdwg.mxu0
        %v2477 = vadd.f32 %v2184, %v2435
        %v2478 = vadd.f32 %v2197, %v2448
        %v2479 = vadd.f32 %v2210, %v2461
        %v2480 = vadd.f32 %v2223, %v2474
        %s2481 = scalar_lea.vmem [#allocation7], 6
        %v2482 = vld [vmem:[%s2481] ss:$8 sm:$0x1]
        %s2483 = scalar_lea.vmem [#allocation7], 7
        %v2484 = vld [vmem:[%s2483] ss:$8 sm:$0x1]
        %v2485 = vmax.f32 %v2482, %v2484
        %v2486 = vpack.c.bf16 %v2485, %v2485
        %s2487 = scalar_lea.vmem %s7, 768
        %v2488 = vld [vmem:[%s2487] sm:$0xff]
        %v2489 = vld [vmem:[%s2487 + $0x8] sm:$0xff]
        %v2490 = vld [vmem:[%s2487 + $0x10] sm:$0xff]
        %v2491 = vld [vmem:[%s2487 + $0x18] sm:$0xff]
        %v2492 = vld [vmem:[%s2487 + $0x20] sm:$0xff]
        %v2493 = vld [vmem:[%s2487 + $0x28] sm:$0xff]
        %v2494 = vld [vmem:[%s2487 + $0x30] sm:$0xff]
        %v2495 = vld [vmem:[%s2487 + $0x38] sm:$0xff]
        %v2496 = vld [vmem:[%s2487 + $0x40] sm:$0xff]
        %v2497 = vld [vmem:[%s2487 + $0x48] sm:$0xff]
        %v2498 = vld [vmem:[%s2487 + $0x50] sm:$0xff]
        %v2499 = vld [vmem:[%s2487 + $0x58] sm:$0xff]
        %v2500 = vld [vmem:[%s2487 + $0x60] sm:$0xff]
        %v2501 = vld [vmem:[%s2487 + $0x68] sm:$0xff]
        %v2502 = vld [vmem:[%s2487 + $0x70] sm:$0xff]
        %v2503 = vld [vmem:[%s2487 + $0x78] sm:$0xff]
        %v2504 = vld [vmem:[%s2487 + $0x80] sm:$0xff]
        %v2505 = vld [vmem:[%s2487 + $0x88] sm:$0xff]
        %v2506 = vld [vmem:[%s2487 + $0x90] sm:$0xff]
        %v2507 = vld [vmem:[%s2487 + $0x98] sm:$0xff]
        %v2508 = vld [vmem:[%s2487 + $0xa0] sm:$0xff]
        %v2509 = vld [vmem:[%s2487 + $0xa8] sm:$0xff]
        %v2510 = vld [vmem:[%s2487 + $0xb0] sm:$0xff]
        %v2511 = vld [vmem:[%s2487 + $0xb8] sm:$0xff]
        %v2512 = vld [vmem:[%s2487 + $0xc0] sm:$0xff]
        %v2513 = vld [vmem:[%s2487 + $0xc8] sm:$0xff]
        %v2514 = vld [vmem:[%s2487 + $0xd0] sm:$0xff]
        %v2515 = vld [vmem:[%s2487 + $0xd8] sm:$0xff]
        %v2516 = vld [vmem:[%s2487 + $0xe0] sm:$0xff]
        %v2517 = vld [vmem:[%s2487 + $0xe8] sm:$0xff]
        %v2518 = vld [vmem:[%s2487 + $0xf0] sm:$0xff]
        %v2519 = vld [vmem:[%s2487 + $0xf8] sm:$0xff]
        %v2552 = vunpack.c.l.b16 %v2488
        %v2553 = vunpack.c.h.b16 %v2488
        %v2554 = vunpack.c.l.b16 %v2489
        %v2555 = vunpack.c.h.b16 %v2489
        %v2556 = vunpack.c.l.b16 %v2490
        %v2557 = vunpack.c.h.b16 %v2490
        %v2558 = vunpack.c.l.b16 %v2491
        %v2559 = vunpack.c.h.b16 %v2491
        %v2560 = vunpack.c.l.b16 %v2492
        %v2561 = vunpack.c.h.b16 %v2492
        %v2562 = vunpack.c.l.b16 %v2493
        %v2563 = vunpack.c.h.b16 %v2493
        %v2564 = vunpack.c.l.b16 %v2494
        %v2565 = vunpack.c.h.b16 %v2494
        %v2566 = vunpack.c.l.b16 %v2495
        %v2567 = vunpack.c.h.b16 %v2495
        %v2568 = vunpack.c.l.b16 %v2496
        %v2569 = vunpack.c.h.b16 %v2496
        %v2570 = vunpack.c.l.b16 %v2497
        %v2571 = vunpack.c.h.b16 %v2497
        %v2572 = vunpack.c.l.b16 %v2498
        %v2573 = vunpack.c.h.b16 %v2498
        %v2574 = vunpack.c.l.b16 %v2499
        %v2575 = vunpack.c.h.b16 %v2499
        %v2576 = vunpack.c.l.b16 %v2500
        %v2577 = vunpack.c.h.b16 %v2500
        %v2578 = vunpack.c.l.b16 %v2501
        %v2579 = vunpack.c.h.b16 %v2501
        %v2580 = vunpack.c.l.b16 %v2502
        %v2581 = vunpack.c.h.b16 %v2502
        %v2582 = vunpack.c.l.b16 %v2503
        %v2583 = vunpack.c.h.b16 %v2503
        %v2584 = vunpack.c.l.b16 %v2504
        %v2585 = vunpack.c.h.b16 %v2504
        %v2586 = vunpack.c.l.b16 %v2505
        %v2587 = vunpack.c.h.b16 %v2505
        %v2588 = vunpack.c.l.b16 %v2506
        %v2589 = vunpack.c.h.b16 %v2506
        %v2590 = vunpack.c.l.b16 %v2507
        %v2591 = vunpack.c.h.b16 %v2507
        %v2592 = vunpack.c.l.b16 %v2508
        %v2593 = vunpack.c.h.b16 %v2508
        %v2594 = vunpack.c.l.b16 %v2509
        %v2595 = vunpack.c.h.b16 %v2509
        %v2596 = vunpack.c.l.b16 %v2510
        %v2597 = vunpack.c.h.b16 %v2510
        %v2598 = vunpack.c.l.b16 %v2511
        %v2599 = vunpack.c.h.b16 %v2511
        %v2600 = vunpack.c.l.b16 %v2512
        %v2601 = vunpack.c.h.b16 %v2512
        %v2602 = vunpack.c.l.b16 %v2513
        %v2603 = vunpack.c.h.b16 %v2513
        %v2604 = vunpack.c.l.b16 %v2514
        %v2605 = vunpack.c.h.b16 %v2514
        %v2606 = vunpack.c.l.b16 %v2515
        %v2607 = vunpack.c.h.b16 %v2515
        %v2608 = vunpack.c.l.b16 %v2516
        %v2609 = vunpack.c.h.b16 %v2516
        %v2610 = vunpack.c.l.b16 %v2517
        %v2611 = vunpack.c.h.b16 %v2517
        %v2612 = vunpack.c.l.b16 %v2518
        %v2613 = vunpack.c.h.b16 %v2518
        %v2614 = vunpack.c.l.b16 %v2519
        %v2615 = vunpack.c.h.b16 %v2519
        %v2616 = vpack.c.b16 %v2556, %v2552
        %v2617 = vpack.c.b16 %v2557, %v2553
        %v2618 = vpack.c.b16 %v2558, %v2554
        %v2619 = vpack.c.b16 %v2559, %v2555
        %v2620 = vpack.c.b16 %v2564, %v2560
        %v2621 = vpack.c.b16 %v2565, %v2561
        %v2622 = vpack.c.b16 %v2566, %v2562
        %v2623 = vpack.c.b16 %v2567, %v2563
        %v2624 = vpack.c.b16 %v2572, %v2568
        %v2625 = vpack.c.b16 %v2573, %v2569
        %v2626 = vpack.c.b16 %v2574, %v2570
        %v2627 = vpack.c.b16 %v2575, %v2571
        %v2628 = vpack.c.b16 %v2580, %v2576
        %v2629 = vpack.c.b16 %v2581, %v2577
        %v2630 = vpack.c.b16 %v2582, %v2578
        %v2631 = vpack.c.b16 %v2583, %v2579
        %v2632 = vpack.c.b16 %v2588, %v2584
        %v2633 = vpack.c.b16 %v2589, %v2585
        %v2634 = vpack.c.b16 %v2590, %v2586
        %v2635 = vpack.c.b16 %v2591, %v2587
        %v2636 = vpack.c.b16 %v2596, %v2592
        %v2637 = vpack.c.b16 %v2597, %v2593
        %v2638 = vpack.c.b16 %v2598, %v2594
        %v2639 = vpack.c.b16 %v2599, %v2595
        %v2640 = vpack.c.b16 %v2604, %v2600
        %v2641 = vpack.c.b16 %v2605, %v2601
        %v2642 = vpack.c.b16 %v2606, %v2602
        %v2643 = vpack.c.b16 %v2607, %v2603
        %v2644 = vpack.c.b16 %v2612, %v2608
        %v2645 = vpack.c.b16 %v2613, %v2609
        %v2646 = vpack.c.b16 %v2614, %v2610
        %v2647 = vpack.c.b16 %v2615, %v2611
        %2680 = vmatpush.bf16.msra.mxu0 %v2644
        %2681 = vmatpush.bf16.msra.mxu0 %v2640
        %2682 = vmatpush.bf16.msra.mxu0 %v2636
        %2683 = vmatpush.bf16.msra.mxu0 %v2632
        %2684 = vmatpush.bf16.msra.mxu0 %v2628
        %2685 = vmatpush.bf16.msra.mxu0 %v2624
        %2686 = vmatpush.bf16.msra.mxu0 %v2620
        %2687 = vmatpush.bf16.msra.mxu0 %v2616
        %2688 = vmatmul.bf16.gmra.mxu0 %v2486
        %v2689 = vpop.f32.mrf.mxu0
        %v2690 = vadd.f32 0.0, %v2689
        %v2691 = vpop.f32.mrf.mxu0
        %2692 = vdwg.mxu0
        %2693 = vmatpush.bf16.msra.mxu0 %v2645
        %2694 = vmatpush.bf16.msra.mxu0 %v2641
        %2695 = vmatpush.bf16.msra.mxu0 %v2637
        %2696 = vmatpush.bf16.msra.mxu0 %v2633
        %2697 = vmatpush.bf16.msra.mxu0 %v2629
        %2698 = vmatpush.bf16.msra.mxu0 %v2625
        %2699 = vmatpush.bf16.msra.mxu0 %v2621
        %2700 = vmatpush.bf16.msra.mxu0 %v2617
        %2701 = vmatmul.bf16.gmra.mxu0 %v2486
        %v2702 = vpop.f32.mrf.mxu0
        %v2703 = vadd.f32 0.0, %v2702
        %v2704 = vpop.f32.mrf.mxu0
        %2705 = vdwg.mxu0
        %2706 = vmatpush.bf16.msra.mxu0 %v2646
        %2707 = vmatpush.bf16.msra.mxu0 %v2642
        %2708 = vmatpush.bf16.msra.mxu0 %v2638
        %2709 = vmatpush.bf16.msra.mxu0 %v2634
        %2710 = vmatpush.bf16.msra.mxu0 %v2630
        %2711 = vmatpush.bf16.msra.mxu0 %v2626
        %2712 = vmatpush.bf16.msra.mxu0 %v2622
        %2713 = vmatpush.bf16.msra.mxu0 %v2618
        %2714 = vmatmul.bf16.gmra.mxu0 %v2486
        %v2715 = vpop.f32.mrf.mxu0
        %v2716 = vadd.f32 0.0, %v2715
        %v2717 = vpop.f32.mrf.mxu0
        %2718 = vdwg.mxu0
        %2719 = vmatpush.bf16.msra.mxu0 %v2647
        %2720 = vmatpush.bf16.msra.mxu0 %v2643
        %2721 = vmatpush.bf16.msra.mxu0 %v2639
        %2722 = vmatpush.bf16.msra.mxu0 %v2635
        %2723 = vmatpush.bf16.msra.mxu0 %v2631
        %2724 = vmatpush.bf16.msra.mxu0 %v2627
        %2725 = vmatpush.bf16.msra.mxu0 %v2623
        %2726 = vmatpush.bf16.msra.mxu0 %v2619
        %2727 = vmatmul.bf16.gmra.mxu0 %v2486
        %v2728 = vpop.f32.mrf.mxu0
        %v2729 = vadd.f32 0.0, %v2728
        %v2730 = vpop.f32.mrf.mxu0
        %2731 = vdwg.mxu0
        %v2732 = vadd.f32 %v2477, %v2690
        %v2733 = vadd.f32 %v2478, %v2703
        %v2734 = vadd.f32 %v2479, %v2716
        %v2735 = vadd.f32 %v2480, %v2729
        %v2736 = vld [vmem:[%s8] sm:$0xf]
        %v2738 = vperm.slane %v2736, 0
        %v2739 = vperm.slane %v2736, 1
        %v2740 = vperm.slane %v2736, 2
        %v2741 = vperm.slane %v2736, 3
        %v2746 = vadd.f32 %v2732, %v2738
        %v2747 = vadd.f32 %v2733, %v2739
        %v2748 = vadd.f32 %v2734, %v2740
        %v2749 = vadd.f32 %v2735, %v2741
        %v2750 = vmax.f32 %v2746, 0.0
        %v2751 = vmax.f32 %v2747, 0.0
        %v2752 = vmax.f32 %v2748, 0.0
        %v2753 = vmax.f32 %v2749, 0.0
        %v2754 = vpack.c.bf16 %v2750, %v2750
        %v2755 = vpack.c.bf16 %v2751, %v2751
        %v2756 = vpack.c.bf16 %v2752, %v2752
        %v2757 = vpack.c.bf16 %v2753, %v2753
        %v2758 = vld [vmem:[%s9] sm:$0xf]
        %v2759 = vld [vmem:[%s9 + $0x4] sm:$0xf]
        %v2760 = vld [vmem:[%s9 + $0x8] sm:$0xf]
        %v2761 = vld [vmem:[%s9 + $0xc] sm:$0xf]
        %v2762 = vld [vmem:[%s9 + $0x10] sm:$0xf]
        %v2763 = vld [vmem:[%s9 + $0x14] sm:$0xf]
        %v2764 = vld [vmem:[%s9 + $0x18] sm:$0xf]
        %v2765 = vld [vmem:[%s9 + $0x1c] sm:$0xf]
        %v2766 = vld [vmem:[%s9 + $0x20] sm:$0xf]
        %v2767 = vld [vmem:[%s9 + $0x24] sm:$0xf]
        %v2768 = vld [vmem:[%s9 + $0x28] sm:$0xf]
        %v2769 = vld [vmem:[%s9 + $0x2c] sm:$0xf]
        %v2770 = vld [vmem:[%s9 + $0x30] sm:$0xf]
        %v2771 = vld [vmem:[%s9 + $0x34] sm:$0xf]
        %v2772 = vld [vmem:[%s9 + $0x38] sm:$0xf]
        %v2773 = vld [vmem:[%s9 + $0x3c] sm:$0xf]
        %v2774 = vld [vmem:[%s9 + $0x40] sm:$0xf]
        %v2775 = vld [vmem:[%s9 + $0x44] sm:$0xf]
        %v2776 = vld [vmem:[%s9 + $0x48] sm:$0xf]
        %v2777 = vld [vmem:[%s9 + $0x4c] sm:$0xf]
        %v2778 = vld [vmem:[%s9 + $0x50] sm:$0xf]
        %v2779 = vld [vmem:[%s9 + $0x54] sm:$0xf]
        %v2780 = vld [vmem:[%s9 + $0x58] sm:$0xf]
        %v2781 = vld [vmem:[%s9 + $0x5c] sm:$0xf]
        %v2782 = vld [vmem:[%s9 + $0x60] sm:$0xf]
        %v2783 = vld [vmem:[%s9 + $0x64] sm:$0xf]
        %v2784 = vld [vmem:[%s9 + $0x68] sm:$0xf]
        %v2785 = vld [vmem:[%s9 + $0x6c] sm:$0xf]
        %v2786 = vld [vmem:[%s9 + $0x70] sm:$0xf]
        %v2787 = vld [vmem:[%s9 + $0x74] sm:$0xf]
        %v2788 = vld [vmem:[%s9 + $0x78] sm:$0xf]
        %v2789 = vld [vmem:[%s9 + $0x7c] sm:$0xf]
        %v2790 = vld [vmem:[%s9 + $0x80] sm:$0xf]
        %v2791 = vld [vmem:[%s9 + $0x84] sm:$0xf]
        %v2792 = vld [vmem:[%s9 + $0x88] sm:$0xf]
        %v2793 = vld [vmem:[%s9 + $0x8c] sm:$0xf]
        %v2794 = vld [vmem:[%s9 + $0x90] sm:$0xf]
        %v2795 = vld [vmem:[%s9 + $0x94] sm:$0xf]
        %v2796 = vld [vmem:[%s9 + $0x98] sm:$0xf]
        %v2797 = vld [vmem:[%s9 + $0x9c] sm:$0xf]
        %v2798 = vld [vmem:[%s9 + $0xa0] sm:$0xf]
        %v2799 = vld [vmem:[%s9 + $0xa4] sm:$0xf]
        %v2800 = vld [vmem:[%s9 + $0xa8] sm:$0xf]
        %v2801 = vld [vmem:[%s9 + $0xac] sm:$0xf]
        %v2802 = vld [vmem:[%s9 + $0xb0] sm:$0xf]
        %v2803 = vld [vmem:[%s9 + $0xb4] sm:$0xf]
        %v2804 = vld [vmem:[%s9 + $0xb8] sm:$0xf]
        %v2805 = vld [vmem:[%s9 + $0xbc] sm:$0xf]
        %v2806 = vld [vmem:[%s9 + $0xc0] sm:$0xf]
        %v2807 = vld [vmem:[%s9 + $0xc4] sm:$0xf]
        %v2808 = vld [vmem:[%s9 + $0xc8] sm:$0xf]
        %v2809 = vld [vmem:[%s9 + $0xcc] sm:$0xf]
        %v2810 = vld [vmem:[%s9 + $0xd0] sm:$0xf]
        %v2811 = vld [vmem:[%s9 + $0xd4] sm:$0xf]
        %v2812 = vld [vmem:[%s9 + $0xd8] sm:$0xf]
        %v2813 = vld [vmem:[%s9 + $0xdc] sm:$0xf]
        %v2814 = vld [vmem:[%s9 + $0xe0] sm:$0xf]
        %v2815 = vld [vmem:[%s9 + $0xe4] sm:$0xf]
        %v2816 = vld [vmem:[%s9 + $0xe8] sm:$0xf]
        %v2817 = vld [vmem:[%s9 + $0xec] sm:$0xf]
        %v2818 = vld [vmem:[%s9 + $0xf0] sm:$0xf]
        %v2819 = vld [vmem:[%s9 + $0xf4] sm:$0xf]
        %v2820 = vld [vmem:[%s9 + $0xf8] sm:$0xf]
        %v2821 = vld [vmem:[%s9 + $0xfc] sm:$0xf]
        %v2822 = vld [vmem:[#allocation16] sm:$0x1]
        %v2887 = vunpack.c.l.b16 %v2758
        %v2888 = vunpack.c.l.b16 %v2759
        %v2889 = vunpack.c.l.b16 %v2760
        %v2890 = vunpack.c.l.b16 %v2761
        %v2891 = vunpack.c.l.b16 %v2762
        %v2892 = vunpack.c.l.b16 %v2763
        %v2893 = vunpack.c.l.b16 %v2764
        %v2894 = vunpack.c.l.b16 %v2765
        %v2895 = vunpack.c.l.b16 %v2766
        %v2896 = vunpack.c.l.b16 %v2767
        %v2897 = vunpack.c.l.b16 %v2768
        %v2898 = vunpack.c.l.b16 %v2769
        %v2899 = vunpack.c.l.b16 %v2770
        %v2900 = vunpack.c.l.b16 %v2771
        %v2901 = vunpack.c.l.b16 %v2772
        %v2902 = vunpack.c.l.b16 %v2773
        %v2903 = vunpack.c.l.b16 %v2774
        %v2904 = vunpack.c.l.b16 %v2775
        %v2905 = vunpack.c.l.b16 %v2776
        %v2906 = vunpack.c.l.b16 %v2777
        %v2907 = vunpack.c.l.b16 %v2778
        %v2908 = vunpack.c.l.b16 %v2779
        %v2909 = vunpack.c.l.b16 %v2780
        %v2910 = vunpack.c.l.b16 %v2781
        %v2911 = vunpack.c.l.b16 %v2782
        %v2912 = vunpack.c.l.b16 %v2783
        %v2913 = vunpack.c.l.b16 %v2784
        %v2914 = vunpack.c.l.b16 %v2785
        %v2915 = vunpack.c.l.b16 %v2786
        %v2916 = vunpack.c.l.b16 %v2787
        %v2917 = vunpack.c.l.b16 %v2788
        %v2918 = vunpack.c.l.b16 %v2789
        %v2919 = vunpack.c.l.b16 %v2790
        %v2920 = vunpack.c.l.b16 %v2791
        %v2921 = vunpack.c.l.b16 %v2792
        %v2922 = vunpack.c.l.b16 %v2793
        %v2923 = vunpack.c.l.b16 %v2794
        %v2924 = vunpack.c.l.b16 %v2795
        %v2925 = vunpack.c.l.b16 %v2796
        %v2926 = vunpack.c.l.b16 %v2797
        %v2927 = vunpack.c.l.b16 %v2798
        %v2928 = vunpack.c.l.b16 %v2799
        %v2929 = vunpack.c.l.b16 %v2800
        %v2930 = vunpack.c.l.b16 %v2801
        %v2931 = vunpack.c.l.b16 %v2802
        %v2932 = vunpack.c.l.b16 %v2803
        %v2933 = vunpack.c.l.b16 %v2804
        %v2934 = vunpack.c.l.b16 %v2805
        %v2935 = vunpack.c.l.b16 %v2806
        %v2936 = vunpack.c.l.b16 %v2807
        %v2937 = vunpack.c.l.b16 %v2808
        %v2938 = vunpack.c.l.b16 %v2809
        %v2939 = vunpack.c.l.b16 %v2810
        %v2940 = vunpack.c.l.b16 %v2811
        %v2941 = vunpack.c.l.b16 %v2812
        %v2942 = vunpack.c.l.b16 %v2813
        %v2943 = vunpack.c.l.b16 %v2814
        %v2944 = vunpack.c.l.b16 %v2815
        %v2945 = vunpack.c.l.b16 %v2816
        %v2946 = vunpack.c.l.b16 %v2817
        %v2947 = vunpack.c.l.b16 %v2818
        %v2948 = vunpack.c.l.b16 %v2819
        %v2949 = vunpack.c.l.b16 %v2820
        %v2950 = vunpack.c.l.b16 %v2821
        %v2951 = vpack.c.b16 %v2888, %v2887
        %v2952 = vpack.c.b16 %v2890, %v2889
        %v2953 = vpack.c.b16 %v2892, %v2891
        %v2954 = vpack.c.b16 %v2894, %v2893
        %v2955 = vpack.c.b16 %v2896, %v2895
        %v2956 = vpack.c.b16 %v2898, %v2897
        %v2957 = vpack.c.b16 %v2900, %v2899
        %v2958 = vpack.c.b16 %v2902, %v2901
        %v2959 = vpack.c.b16 %v2904, %v2903
        %v2960 = vpack.c.b16 %v2906, %v2905
        %v2961 = vpack.c.b16 %v2908, %v2907
        %v2962 = vpack.c.b16 %v2910, %v2909
        %v2963 = vpack.c.b16 %v2912, %v2911
        %v2964 = vpack.c.b16 %v2914, %v2913
        %v2965 = vpack.c.b16 %v2916, %v2915
        %v2966 = vpack.c.b16 %v2918, %v2917
        %v2967 = vpack.c.b16 %v2920, %v2919
        %v2968 = vpack.c.b16 %v2922, %v2921
        %v2969 = vpack.c.b16 %v2924, %v2923
        %v2970 = vpack.c.b16 %v2926, %v2925
        %v2971 = vpack.c.b16 %v2928, %v2927
        %v2972 = vpack.c.b16 %v2930, %v2929
        %v2973 = vpack.c.b16 %v2932, %v2931
        %v2974 = vpack.c.b16 %v2934, %v2933
        %v2975 = vpack.c.b16 %v2936, %v2935
        %v2976 = vpack.c.b16 %v2938, %v2937
        %v2977 = vpack.c.b16 %v2940, %v2939
        %v2978 = vpack.c.b16 %v2942, %v2941
        %v2979 = vpack.c.b16 %v2944, %v2943
        %v2980 = vpack.c.b16 %v2946, %v2945
        %v2981 = vpack.c.b16 %v2948, %v2947
        %v2982 = vpack.c.b16 %v2950, %v2949
        %3015 = vmatpush.bf16.msra.mxu0 %v2958
        %3016 = vmatpush.bf16.msra.mxu0 %v2957
        %3017 = vmatpush.bf16.msra.mxu0 %v2956
        %3018 = vmatpush.bf16.msra.mxu0 %v2955
        %3019 = vmatpush.bf16.msra.mxu0 %v2954
        %3020 = vmatpush.bf16.msra.mxu0 %v2953
        %3021 = vmatpush.bf16.msra.mxu0 %v2952
        %3022 = vmatpush.bf16.msra.mxu0 %v2951
        %3023 = vmatmul.bf16.gmra.mxu0 %v2754
        %v3024 = vpop.f32.mrf.mxu0
        %v3025 = vadd.f32 %v2822, %v3024
        %v3026 = vpop.f32.mrf.mxu0
        %3027 = vdwg.mxu0
        %3028 = vmatpush.bf16.msra.mxu0 %v2966
        %3029 = vmatpush.bf16.msra.mxu0 %v2965
        %3030 = vmatpush.bf16.msra.mxu0 %v2964
        %3031 = vmatpush.bf16.msra.mxu0 %v2963
        %3032 = vmatpush.bf16.msra.mxu0 %v2962
        %3033 = vmatpush.bf16.msra.mxu0 %v2961
        %3034 = vmatpush.bf16.msra.mxu0 %v2960
        %3035 = vmatpush.bf16.msra.mxu0 %v2959
        %3036 = vmatmul.bf16.gmra.mxu0 %v2755
        %v3037 = vpop.f32.mrf.mxu0
        %v3038 = vadd.f32 %v3025, %v3037
        %v3039 = vpop.f32.mrf.mxu0
        %3040 = vdwg.mxu0
        %3041 = vmatpush.bf16.msra.mxu0 %v2974
        %3042 = vmatpush.bf16.msra.mxu0 %v2973
        %3043 = vmatpush.bf16.msra.mxu0 %v2972
        %3044 = vmatpush.bf16.msra.mxu0 %v2971
        %3045 = vmatpush.bf16.msra.mxu0 %v2970
        %3046 = vmatpush.bf16.msra.mxu0 %v2969
        %3047 = vmatpush.bf16.msra.mxu0 %v2968
        %3048 = vmatpush.bf16.msra.mxu0 %v2967
        %3049 = vmatmul.bf16.gmra.mxu0 %v2756
        %v3050 = vpop.f32.mrf.mxu0
        %v3051 = vadd.f32 %v3038, %v3050
        %v3052 = vpop.f32.mrf.mxu0
        %3053 = vdwg.mxu0
        %3054 = vmatpush.bf16.msra.mxu0 %v2982
        %3055 = vmatpush.bf16.msra.mxu0 %v2981
        %3056 = vmatpush.bf16.msra.mxu0 %v2980
        %3057 = vmatpush.bf16.msra.mxu0 %v2979
        %3058 = vmatpush.bf16.msra.mxu0 %v2978
        %3059 = vmatpush.bf16.msra.mxu0 %v2977
        %3060 = vmatpush.bf16.msra.mxu0 %v2976
        %3061 = vmatpush.bf16.msra.mxu0 %v2975
        %3062 = vmatmul.bf16.gmra.mxu0 %v2757
        %v3063 = vpop.f32.mrf.mxu0
        %v3064 = vadd.f32 %v3051, %v3063
        %v3065 = vpop.f32.mrf.mxu0
        %3066 = vdwg.mxu0
        %3067 = vst [vmem:[%s457] sm:$0x1] %v3064
        %s3068 = sand.u32 %s272, 1
        %s3069 = scalar_lea.sflag [#allocation10], %s3068
        %s3070 = sand.u32 %s272, 1
        %s3071 = scalar_lea.vmem [#allocation17], %s3070
        // Predicated region
        $region85: #{cnn_forward.1} parent=63 // pred_check
          %p3072 = pneg %p282
        $region86: #{cnn_forward.1} parent=63 // pred_check_branch
          %3074 = sbr.rel (%p3072) target = $region88
        $region87: #{cnn_forward.1} parent=63 // pred_region
          %3076 = vsyncadd %s3069, 0
          %s3077 = scalar_lea.hbm %s11, %s28
          %s3079 = sshll.u32 %s3071, 4
          %s3080 = int_to_ptr.vmem [resolvable:$true] %s3079
          %s3081 = sshll.u32 %s3077, 4
          %s3082 = int_to_ptr.hbm [resolvable:$true] %s3081
          %3084 = dma.vmem_to_hbm [thread:$0]  %s3080, 16, %s3082, %s3069
        $region88: #{cnn_forward.1} parent=63 // pred_fallthru
          _
      $region64: #{cnn_forward.1} parent=5 // pred_fallthru
        _
      %p3085 = scmp.le.s32.totalorder 2, %s23
      // Predicated region
      $region89: #{cnn_forward.1} parent=5 // pred_check
        %p3086 = pneg %p3085
      $region90: #{cnn_forward.1} parent=5 // pred_check_branch
        %3088 = sbr.rel (%p3086) target = $region92
      $region91: #{cnn_forward.1} parent=5 // pred_region
        %s3089 = ssub.s32 %s23, 2
        // Predicated region
        $region93: #{cnn_forward.1} parent=91 // pred_check
          %p3090 = pneg %p288
        $region94: #{cnn_forward.1} parent=91 // pred_check_branch
          %3092 = sbr.rel (%p3090) target = $region96
        $region95: #{cnn_forward.1} parent=91 // pred_region
          %s3093 = sand.u32 %s273, 1
          %s3094 = scalar_lea.sflag [#allocation10], %s3093
          %s3095 = sand.u32 %s273, 1
          %s3096 = scalar_lea.vmem [#allocation17], %s3095
          %3098 = dma.done %s3094, 16
        $region96: #{cnn_forward.1} parent=91 // pred_fallthru
          _
      $region92: #{cnn_forward.1} parent=5 // pred_fallthru
        _
    $region6: #{cnn_forward.1} parent=1 // loop_footer
      %s27 = sadd.s32 1, %s23
    $region7: #{cnn_forward.1} parent=1 // loop_footer_branch
      %22 = sbr.rel target = $region3
    $region8: #{cnn_forward.1} parent=1 // loop_exit
      _
    %3099 = vsyncpa [#allocation9], 1
    %s3100 = scalar_lea.sflag [#allocation9], 1
    %3101 = vsyncpa %s3100, 1
    %3102 = vsyncpa [#allocation12], 1
    %3103 = vsyncpa [#allocation15], 1
    %3104 = vsyncpa [#allocation10], 1
    %s3105 = scalar_lea.sflag [#allocation10], 1
    %3106 = vsyncpa %s3105, 1

</llo_original>
